<compile_context>
chip_gen: v5e
topology: v5e:2x2
jax: 0.10.0
libtpu: 0.0.40
codegen_flags: <defaults>
</compile_context>

<pallas_src>
import functools

import jax
import jax.numpy as jnp
from jax import lax
from jax.experimental import pallas as pl
from jax.experimental.pallas import tpu as pltpu


def _round_up(x, m):
    return (x + m - 1) // m * m


def _double_conv_kernel(x_ref, w1_ref, b1_ref, w2_ref, b2_ref, out_ref,
                        xpad_ref, mid_ref, *, H, W, Wp):
    # x_ref   : (Nb, M, Cin)    bf16  wrapper-padded image rows, flat (M=H*Wp)
    # w1_ref  : (9, Cmid, Cin)  bf16  conv1 taps (transposed, BN1 scale folded)
    # b1_ref  : (Cmid, 1)       f32   folded BN1 bias
    # w2_ref  : (9, Cout, Cmid) bf16  conv2 taps (transposed, BN2 scale folded)
    # b2_ref  : (Cout, 1)       f32   folded BN2 bias
    # out_ref : (Nb, Cout, M)   f32   lane-dense output (junk cols dropped later)
    # xpad_ref: (XLEAD+(H+3)*Wp ->16, Cin)  bf16  flat zero-padded input
    # mid_ref : (MLEAD+(H+3)*Wp ->16, Cmid) bf16  flat zero-padded intermediate
    Nb, M, Cin = x_ref.shape
    Cmid = b1_ref.shape[0]
    Cout = out_ref.shape[1]
    XLEAD = (-Wp) % 16          # makes the xpad interior store 16-row aligned
    MLEAD = (-(Wp + 1)) % 16    # makes the mid  interior store 16-row aligned
    offs = [dy * Wp + dx for dy in range(3) for dx in range(3)]

    # ---- per-grid-step halo clears (full-width, aligned, unmasked stores) ---
    # Scratch is per-core (megacore) and persists across steps, so clear every
    # step; interior rows are fully overwritten per image below.
    xpad_ref[0:XLEAD + Wp, :] = jnp.zeros((XLEAD + Wp, Cin), jnp.bfloat16)
    xb = XLEAD + (H + 1) * Wp
    xpad_ref[xb:, :] = jnp.zeros((xpad_ref.shape[0] - xb, Cin), jnp.bfloat16)
    mid_ref[0:MLEAD + Wp + 1, :] = jnp.zeros((MLEAD + Wp + 1, Cmid),
                                             jnp.bfloat16)
    mb = MLEAD + Wp + 1 + M
    mid_ref[mb:, :] = jnp.zeros((mid_ref.shape[0] - mb, Cmid), jnp.bfloat16)

    # Junk-column mask for conv1's output: flat positions m with (m % Wp) >= W
    # are halo / alignment columns and must be stored as exact zeros (they
    # would otherwise alias the next row's left halo).  Hoisted out of the
    # per-image loop (broadcasts are not CSE'd).
    col = lax.broadcasted_iota(jnp.int32, (Cmid, M), 1) % Wp
    valid = col < W

    nt = (((1,), (1,)), ((), ()))     # (C_out_dim, K) x (M, K)^T contraction

    for n in range(Nb):
        # Zero-padding done in VMEM: the wrapper already supplies the side
        # halo columns, so one aligned flat store places the whole image.
        xpad_ref[pl.ds(XLEAD + Wp, M), :] = x_ref[n]

        # ---- conv1 (+ folded BN1 + ReLU), channel-major accumulation -------
        acc1 = jnp.zeros((Cmid, M), jnp.float32)
        for t, off in enumerate(offs):
            patch = xpad_ref[pl.ds(XLEAD + off, M), :]          # (M, Cin) bf16
            acc1 = acc1 + lax.dot_general(
                w1_ref[t], patch, nt, preferred_element_type=jnp.float32)
        mid = jnp.maximum(acc1 + b1_ref[...], 0.0)
        mid = jnp.where(valid, mid, 0.0)
        # One contiguous 16-aligned store of the whole block (single cast).
        mid_ref[pl.ds(MLEAD + Wp + 1, M), :] = (
            jnp.transpose(mid).astype(jnp.bfloat16))

        # ---- conv2 (+ folded BN2 + ReLU) -> lane-dense channel-major out ---
        acc2 = jnp.zeros((Cout, M), jnp.float32)
        for t, off in enumerate(offs):
            patch = mid_ref[pl.ds(MLEAD + off, M), :]           # (M, Cmid) bf16
            acc2 = acc2 + lax.dot_general(
                w2_ref[t], patch, nt, preferred_element_type=jnp.float32)
        out_ref[n] = jnp.maximum(acc2 + b2_ref[...], 0.0).astype(out_ref.dtype)


def double_conv_pallas(x_nchw, params, images_per_step=None):
    """DoubleConv forward.  x_nchw: (N, Cin, H, W) f32 -> (N, Cout, H, W) f32."""
    w1, g1, be1, rm1, rv1, w2, g2, be2, rm2, rv2 = params
    eps = 1e-5

    # Fold BN (inference) into the conv weights (scale) + per-channel bias.
    inv1 = g1 * lax.rsqrt(rv1 + eps)
    inv2 = g2 * lax.rsqrt(rv2 + eps)
    b1 = (be1 - rm1 * inv1).reshape(-1, 1).astype(jnp.float32)    # (Cmid, 1)
    b2 = (be2 - rm2 * inv2).reshape(-1, 1).astype(jnp.float32)    # (Cout, 1)

    Cin, Cmid = w1.shape[2], w1.shape[3]
    Cout = w2.shape[3]
    # Taps transposed to (9, C_out_dim, C_in_dim): both convs accumulate
    # channel-major, conv2's output is directly NCHW / lane-dense.
    w1f = jnp.transpose(w1 * inv1, (0, 1, 3, 2)).reshape(9, Cmid, Cin)
    w1f = w1f.astype(jnp.bfloat16)
    w2f = jnp.transpose(w2 * inv2, (0, 1, 3, 2)).reshape(9, Cout, Cmid)
    w2f = w2f.astype(jnp.bfloat16)

    N, _, H, W = x_nchw.shape
    Wp = _round_up(W + 2, 8)        # padded width, sublane-aligned
    M = H * Wp                      # "wide" rows per image (384 = 3*128 here)
    XLEAD = (-Wp) % 16
    MLEAD = (-(Wp + 1)) % 16

    # NCHW -> NHWC, add the left halo column + right zero columns up to Wp
    # (side halo + alignment), cast to bf16 once (MXU input dtype), flatten
    # spatial so the kernel needs no in-kernel reshape.
    x = jnp.transpose(x_nchw, (0, 2, 3, 1))
    x = jnp.pad(x, ((0, 0), (0, 0), (1, Wp - W - 1), (0, 0)))
    x = x.astype(jnp.bfloat16).reshape(N, M, Cin)

    if images_per_step is None:
        # Largest divisor of N that still leaves >=2 grid steps (keeps both
        # v7x TensorCores busy) while amortising per-step pipeline overhead.
        images_per_step = max(
            [d for d in range(1, N + 1) if N % d == 0 and N // d >= 2],
            default=N)
    Nb = images_per_step
    assert N % Nb == 0, (N, Nb)

    kernel = functools.partial(_double_conv_kernel, H=H, W=W, Wp=Wp)
    # NOTE: scratches are lane-padded to 128, so at tiny channel counts they
    # occupy ~128/C x their nominal size; still << VMEM at these shapes.
    xpad_rows = _round_up(XLEAD + (H + 3) * Wp, 16)
    mid_rows = _round_up(MLEAD + (H + 3) * Wp, 16)

    out_wide = pl.pallas_call(
        kernel,
        out_shape=jax.ShapeDtypeStruct((N, Cout, M), jnp.float32),
        grid_spec=pltpu.PrefetchScalarGridSpec(
            num_scalar_prefetch=0,
            grid=(N // Nb,),
            in_specs=[
                pl.BlockSpec((Nb, M, Cin), lambda b: (b, 0, 0)),
                pl.BlockSpec((9, Cmid, Cin), lambda b: (0, 0, 0)),
                pl.BlockSpec((Cmid, 1), lambda b: (0, 0)),
                pl.BlockSpec((9, Cout, Cmid), lambda b: (0, 0, 0)),
                pl.BlockSpec((Cout, 1), lambda b: (0, 0)),
            ],
            out_specs=pl.BlockSpec((Nb, Cout, M), lambda b: (b, 0, 0)),
            scratch_shapes=[
                pltpu.VMEM((xpad_rows, Cin), jnp.bfloat16),
                pltpu.VMEM((mid_rows, Cmid), jnp.bfloat16),
            ],
        ),
        compiler_params=pltpu.CompilerParams(
            dimension_semantics=("parallel",)),
    )(x, w1f, b1, w2f, b2)

    # (N, Cout, H*Wp) -> drop the halo/alignment columns -> NCHW (no transpose).
    return out_wide.reshape(N, Cout, H, Wp)[:, :, :, :W]


def _reference_f32(x_nchw, params):
    """Faithful f32 reference: (conv -> BN(inference) -> ReLU) x 2."""
    w1, g1, be1, rm1, rv1, w2, g2, be2, rm2, rv2 = params
    eps = 1e-5
    x = jnp.transpose(x_nchw, (0, 2, 3, 1))
    dn = lax.conv_dimension_numbers(x.shape, w1.shape, ("NHWC", "HWIO", "NHWC"))

    def block(h, w, g, be, rm, rv):
        h = lax.conv_general_dilated(h, w, (1, 1), "SAME", dimension_numbers=dn)
        h = (h - rm) / jnp.sqrt(rv + eps) * g + be
        return jnp.maximum(h, 0.0)

    h = block(x, w1, g1, be1, rm1, rv1)
    h = block(h, w2, g2, be2, rm2, rv2)
    return jnp.transpose(h, (0, 3, 1, 2))


def _reference_matched(x_nchw, params):
    """Precision-matched reference: same bf16 MXU inputs (BN scale folded into
    the bf16 weights), f32 accumulation, f32 bias + ReLU as the kernel."""
    w1, g1, be1, rm1, rv1, w2, g2, be2, rm2, rv2 = params
    eps = 1e-5
    inv1 = g1 * lax.rsqrt(rv1 + eps)
    inv2 = g2 * lax.rsqrt(rv2 + eps)
    b1 = be1 - rm1 * inv1
    b2 = be2 - rm2 * inv2
    w1f = (w1 * inv1).astype(jnp.bfloat16)
    w2f = (w2 * inv2).astype(jnp.bfloat16)
    x = jnp.transpose(x_nchw, (0, 2, 3, 1))
    dn = lax.conv_dimension_numbers(x.shape, w1f.shape, ("NHWC", "HWIO", "NHWC"))

    def block(h, wf, bias):
        y = lax.conv_general_dilated(h.astype(jnp.bfloat16), wf, (1, 1), "SAME",
                                     dimension_numbers=dn,
                                     preferred_element_type=jnp.float32)
        return jnp.maximum(y + bias, 0.0)

    h = block(x, w1f, b1)
    h = block(h, w2f, b2)
    return jnp.transpose(h, (0, 3, 1, 2))


def make_params(key, in_channels, mid_channels, out_channels):
    ks = jax.random.split(key, 10)
    fan1 = in_channels * 9
    fan2 = mid_channels * 9
    w1 = jax.random.normal(ks[0], (3, 3, in_channels, mid_channels),
                           jnp.float32) / jnp.sqrt(fan1)
    w2 = jax.random.normal(ks[1], (3, 3, mid_channels, out_channels),
                           jnp.float32) / jnp.sqrt(fan2)
    g1 = 1.0 + 0.1 * jax.random.normal(ks[2], (mid_channels,), jnp.float32)
    be1 = 0.1 * jax.random.normal(ks[3], (mid_channels,), jnp.float32)
    rm1 = 0.05 * jax.random.normal(ks[4], (mid_channels,), jnp.float32)
    rv1 = 1.0 + 0.1 * jax.random.uniform(ks[5], (mid_channels,), jnp.float32)
    g2 = 1.0 + 0.1 * jax.random.normal(ks[6], (out_channels,), jnp.float32)
    be2 = 0.1 * jax.random.normal(ks[7], (out_channels,), jnp.float32)
    rm2 = 0.05 * jax.random.normal(ks[8], (out_channels,), jnp.float32)
    rv2 = 1.0 + 0.1 * jax.random.uniform(ks[9], (out_channels,), jnp.float32)
    return (w1, g1, be1, rm1, rv1, w2, g2, be2, rm2, rv2)


if __name__ == "__main__":
    key = jax.random.PRNGKey(0)
    k_x, k_p = jax.random.split(key)

    N, Cin, Cout, H, W = 2, 4, 8, 16, 16      # mid_channels = out_channels = 8
    x = jax.random.normal(k_x, (N, Cin, H, W), jnp.float32)
    params = make_params(k_p, Cin, Cout, Cout)

    out = jax.block_until_ready(double_conv_pallas(x, params))
    assert out.shape == (N, Cout, H, W), out.shape

    ref_m = jax.block_until_ready(_reference_matched(x, params))
    ref_f = jax.block_until_ready(_reference_f32(x, params))
    # Tight check against the precision-matched reference (isolates structure
    # from bf16 rounding); loose sanity check against the pure-f32 reference.
    assert jnp.allclose(out, ref_m, atol=5e-3, rtol=5e-3), float(
        jnp.max(jnp.abs(out - ref_m)))
    assert jnp.allclose(out, ref_f, atol=1e-1, rtol=1e-1), float(
        jnp.max(jnp.abs(out - ref_f)))

    print("KERNEL_OK")
</pallas_src>

<mosaic_0001>
module attributes {stable_mosaic.version = 11 : i64} {
  func.func @_double_conv_kernel(%arg0: i32, %arg1: memref<1x384x4xbf16, #tpu.memory_space<vmem>>, %arg2: memref<9x8x4xbf16, #tpu.memory_space<vmem>>, %arg3: memref<8x1xf32, #tpu.memory_space<vmem>>, %arg4: memref<9x8x8xbf16, #tpu.memory_space<vmem>>, %arg5: memref<8x1xf32, #tpu.memory_space<vmem>>, %arg6: memref<1x8x384xf32, #tpu.memory_space<vmem>>, %arg7: memref<464x4xbf16, #tpu.memory_space<vmem>>, %arg8: memref<464x8xbf16, #tpu.memory_space<vmem>>) attributes {dimension_semantics = [#tpu.dimension_semantics<parallel>], iteration_bounds = array<i64: 2>, scalar_prefetch = 0 : i64, scratch_operands = 2 : i64, tpu.core_type = #tpu.core_type<tc>, window_params = [{transform_indices = @transform_0, window_bounds = array<i64: 1, 384, 4>}, {pipeline_mode = #tpu.pipeline_mode<synchronous>, transform_indices = @transform_1, window_bounds = array<i64: 9, 8, 4>}, {pipeline_mode = #tpu.pipeline_mode<synchronous>, transform_indices = @transform_2, window_bounds = array<i64: 8, 1>}, {pipeline_mode = #tpu.pipeline_mode<synchronous>, transform_indices = @transform_3, window_bounds = array<i64: 9, 8, 8>}, {pipeline_mode = #tpu.pipeline_mode<synchronous>, transform_indices = @transform_4, window_bounds = array<i64: 8, 1>}, {transform_indices = @transform_5, window_bounds = array<i64: 1, 8, 384>}]} {
    %cst = arith.constant 0.000000e+00 : bf16
    %0 = vector.broadcast %cst : bf16 to vector<32x4xbf16>
    %c0 = arith.constant 0 : index
    %c0_0 = arith.constant 0 : index
    %1 = vector.load %arg7[%c0, %c0_0] : memref<464x4xbf16, #tpu.memory_space<vmem>>, vector<32x4xbf16>
    tpu.vector_store %arg7[%c0, %c0_0], %0 {strides = array<i32>} : memref<464x4xbf16, #tpu.memory_space<vmem>>, vector<32x4xbf16>,
    %cst_1 = arith.constant 0.000000e+00 : bf16
    %2 = vector.broadcast %cst_1 : bf16 to vector<48x4xbf16>
    %c416 = arith.constant 416 : index
    %c0_2 = arith.constant 0 : index
    %3 = vector.load %arg7[%c416, %c0_2] : memref<464x4xbf16, #tpu.memory_space<vmem>>, vector<48x4xbf16>
    tpu.vector_store %arg7[%c416, %c0_2], %2 {strides = array<i32>} : memref<464x4xbf16, #tpu.memory_space<vmem>>, vector<48x4xbf16>,
    %cst_3 = arith.constant 0.000000e+00 : bf16
    %4 = vector.broadcast %cst_3 : bf16 to vector<32x8xbf16>
    %c0_4 = arith.constant 0 : index
    %c0_5 = arith.constant 0 : index
    %5 = vector.load %arg8[%c0_4, %c0_5] : memref<464x8xbf16, #tpu.memory_space<vmem>>, vector<32x8xbf16>
    tpu.vector_store %arg8[%c0_4, %c0_5], %4 {strides = array<i32>} : memref<464x8xbf16, #tpu.memory_space<vmem>>, vector<32x8xbf16>,
    %cst_6 = arith.constant 0.000000e+00 : bf16
    %6 = vector.broadcast %cst_6 : bf16 to vector<48x8xbf16>
    %c416_7 = arith.constant 416 : index
    %c0_8 = arith.constant 0 : index
    %7 = vector.load %arg8[%c416_7, %c0_8] : memref<464x8xbf16, #tpu.memory_space<vmem>>, vector<48x8xbf16>
    tpu.vector_store %arg8[%c416_7, %c0_8], %6 {strides = array<i32>} : memref<464x8xbf16, #tpu.memory_space<vmem>>, vector<48x8xbf16>,
    %8 = tpu.iota {dimensions = array<i32: 1>} : vector<8x384xi32>
    %c24_i32 = arith.constant 24 : i32
    %c0_i32 = arith.constant 0 : i32
    %9 = arith.cmpi eq, %c24_i32, %c0_i32 : i32
    %c1_i32 = arith.constant 1 : i32
    %10 = arith.select %9, %c1_i32, %c24_i32 : i32
    %11 = vector.broadcast %10 : i32 to vector<8x384xi32>
    %12 = arith.remsi %8, %11 : vector<8x384xi32>
    %c0_i32_9 = arith.constant 0 : i32
    %13 = vector.broadcast %c0_i32_9 : i32 to vector<8x384xi32>
    %14 = arith.cmpi ne, %12, %13 : vector<8x384xi32>
    %c0_i32_10 = arith.constant 0 : i32
    %15 = vector.broadcast %c0_i32_10 : i32 to vector<8x384xi32>
    %16 = arith.cmpi slt, %12, %15 : vector<8x384xi32>
    %c0_i32_11 = arith.constant 0 : i32
    %17 = arith.cmpi slt, %10, %c0_i32_11 : i32
    %18 = vector.broadcast %17 : i1 to vector<8x384xi1>
    %19 = vector.broadcast %18 : vector<8x384xi1> to vector<8x384xi1>
    %20 = arith.xori %16, %19 : vector<8x384xi1>
    %21 = arith.andi %20, %14 : vector<8x384xi1>
    %22 = vector.broadcast %10 : i32 to vector<8x384xi32>
    %23 = arith.addi %12, %22 : vector<8x384xi32>
    %24 = arith.select %21, %23, %12 : vector<8x384xi1>, vector<8x384xi32>
    %c16_i32 = arith.constant 16 : i32
    %25 = vector.broadcast %c16_i32 : i32 to vector<8x384xi32>
    %26 = arith.cmpi slt, %24, %25 : vector<8x384xi32>
    %c0_12 = arith.constant 0 : index
    %c0_13 = arith.constant 0 : index
    %c0_14 = arith.constant 0 : index
    %27 = vector.load %arg1[%c0_12, %c0_13, %c0_14] : memref<1x384x4xbf16, #tpu.memory_space<vmem>>, vector<1x384x4xbf16>
    %28 = vector.shape_cast %27 : vector<1x384x4xbf16> to vector<384x4xbf16>
    %c32 = arith.constant 32 : index
    %c0_15 = arith.constant 0 : index
    %29 = vector.load %arg7[%c32, %c0_15] : memref<464x4xbf16, #tpu.memory_space<vmem>>, vector<384x4xbf16>
    tpu.vector_store %arg7[%c32, %c0_15], %28 {strides = array<i32>} : memref<464x4xbf16, #tpu.memory_space<vmem>>, vector<384x4xbf16>,
    %cst_16 = arith.constant 0.000000e+00 : f32
    %30 = vector.broadcast %cst_16 : f32 to vector<8x384xf32>
    %c8 = arith.constant 8 : index
    %c0_17 = arith.constant 0 : index
    %31 = vector.load %arg7[%c8, %c0_17] : memref<464x4xbf16, #tpu.memory_space<vmem>>, vector<384x4xbf16>
    %c0_18 = arith.constant 0 : index
    %c0_19 = arith.constant 0 : index
    %c0_20 = arith.constant 0 : index
    %32 = vector.load %arg2[%c0_18, %c0_19, %c0_20] : memref<9x8x4xbf16, #tpu.memory_space<vmem>>, vector<1x8x4xbf16>
    %33 = vector.shape_cast %32 : vector<1x8x4xbf16> to vector<8x4xbf16>
    %cst_21 = arith.constant dense<0.000000e+00> : vector<8x384xf32>
    %34 = tpu.matmul %33, %31, %cst_21 {dimension_numbers = #tpu.dot_dimension_numbers<[1], [1], [0], [0], [0, 0, 1, 0], [], []>} : vector<8x4xbf16>, vector<384x4xbf16>, vector<8x384xf32> -> vector<8x384xf32>
    %35 = arith.addf %30, %34 : vector<8x384xf32>
    %c9 = arith.constant 9 : index
    %c0_22 = arith.constant 0 : index
    %36 = vector.load %arg7[%c9, %c0_22] : memref<464x4xbf16, #tpu.memory_space<vmem>>, vector<384x4xbf16>
    %c1 = arith.constant 1 : index
    %c0_23 = arith.constant 0 : index
    %c0_24 = arith.constant 0 : index
    %37 = vector.load %arg2[%c1, %c0_23, %c0_24] : memref<9x8x4xbf16, #tpu.memory_space<vmem>>, vector<1x8x4xbf16>
    %38 = vector.shape_cast %37 : vector<1x8x4xbf16> to vector<8x4xbf16>
    %cst_25 = arith.constant dense<0.000000e+00> : vector<8x384xf32>
    %39 = tpu.matmul %38, %36, %cst_25 {dimension_numbers = #tpu.dot_dimension_numbers<[1], [1], [0], [0], [0, 0, 1, 0], [], []>} : vector<8x4xbf16>, vector<384x4xbf16>, vector<8x384xf32> -> vector<8x384xf32>
    %40 = arith.addf %35, %39 : vector<8x384xf32>
    %c10 = arith.constant 10 : index
    %c0_26 = arith.constant 0 : index
    %41 = vector.load %arg7[%c10, %c0_26] : memref<464x4xbf16, #tpu.memory_space<vmem>>, vector<384x4xbf16>
    %c2 = arith.constant 2 : index
    %c0_27 = arith.constant 0 : index
    %c0_28 = arith.constant 0 : index
    %42 = vector.load %arg2[%c2, %c0_27, %c0_28] : memref<9x8x4xbf16, #tpu.memory_space<vmem>>, vector<1x8x4xbf16>
    %43 = vector.shape_cast %42 : vector<1x8x4xbf16> to vector<8x4xbf16>
    %cst_29 = arith.constant dense<0.000000e+00> : vector<8x384xf32>
    %44 = tpu.matmul %43, %41, %cst_29 {dimension_numbers = #tpu.dot_dimension_numbers<[1], [1], [0], [0], [0, 0, 1, 0], [], []>} : vector<8x4xbf16>, vector<384x4xbf16>, vector<8x384xf32> -> vector<8x384xf32>
    %45 = arith.addf %40, %44 : vector<8x384xf32>
    %c32_30 = arith.constant 32 : index
    %c0_31 = arith.constant 0 : index
    %46 = vector.load %arg7[%c32_30, %c0_31] : memref<464x4xbf16, #tpu.memory_space<vmem>>, vector<384x4xbf16>
    %c3 = arith.constant 3 : index
    %c0_32 = arith.constant 0 : index
    %c0_33 = arith.constant 0 : index
    %47 = vector.load %arg2[%c3, %c0_32, %c0_33] : memref<9x8x4xbf16, #tpu.memory_space<vmem>>, vector<1x8x4xbf16>
    %48 = vector.shape_cast %47 : vector<1x8x4xbf16> to vector<8x4xbf16>
    %cst_34 = arith.constant dense<0.000000e+00> : vector<8x384xf32>
    %49 = tpu.matmul %48, %46, %cst_34 {dimension_numbers = #tpu.dot_dimension_numbers<[1], [1], [0], [0], [0, 0, 1, 0], [], []>} : vector<8x4xbf16>, vector<384x4xbf16>, vector<8x384xf32> -> vector<8x384xf32>
    %50 = arith.addf %45, %49 : vector<8x384xf32>
    %c33 = arith.constant 33 : index
    %c0_35 = arith.constant 0 : index
    %51 = vector.load %arg7[%c33, %c0_35] : memref<464x4xbf16, #tpu.memory_space<vmem>>, vector<384x4xbf16>
    %c4 = arith.constant 4 : index
    %c0_36 = arith.constant 0 : index
    %c0_37 = arith.constant 0 : index
    %52 = vector.load %arg2[%c4, %c0_36, %c0_37] : memref<9x8x4xbf16, #tpu.memory_space<vmem>>, vector<1x8x4xbf16>
    %53 = vector.shape_cast %52 : vector<1x8x4xbf16> to vector<8x4xbf16>
    %cst_38 = arith.constant dense<0.000000e+00> : vector<8x384xf32>
    %54 = tpu.matmul %53, %51, %cst_38 {dimension_numbers = #tpu.dot_dimension_numbers<[1], [1], [0], [0], [0, 0, 1, 0], [], []>} : vector<8x4xbf16>, vector<384x4xbf16>, vector<8x384xf32> -> vector<8x384xf32>
    %55 = arith.addf %50, %54 : vector<8x384xf32>
    %c34 = arith.constant 34 : index
    %c0_39 = arith.constant 0 : index
    %56 = vector.load %arg7[%c34, %c0_39] : memref<464x4xbf16, #tpu.memory_space<vmem>>, vector<384x4xbf16>
    %c5 = arith.constant 5 : index
    %c0_40 = arith.constant 0 : index
    %c0_41 = arith.constant 0 : index
    %57 = vector.load %arg2[%c5, %c0_40, %c0_41] : memref<9x8x4xbf16, #tpu.memory_space<vmem>>, vector<1x8x4xbf16>
    %58 = vector.shape_cast %57 : vector<1x8x4xbf16> to vector<8x4xbf16>
    %cst_42 = arith.constant dense<0.000000e+00> : vector<8x384xf32>
    %59 = tpu.matmul %58, %56, %cst_42 {dimension_numbers = #tpu.dot_dimension_numbers<[1], [1], [0], [0], [0, 0, 1, 0], [], []>} : vector<8x4xbf16>, vector<384x4xbf16>, vector<8x384xf32> -> vector<8x384xf32>
    %60 = arith.addf %55, %59 : vector<8x384xf32>
    %c56 = arith.constant 56 : index
    %c0_43 = arith.constant 0 : index
    %61 = vector.load %arg7[%c56, %c0_43] : memref<464x4xbf16, #tpu.memory_space<vmem>>, vector<384x4xbf16>
    %c6 = arith.constant 6 : index
    %c0_44 = arith.constant 0 : index
    %c0_45 = arith.constant 0 : index
    %62 = vector.load %arg2[%c6, %c0_44, %c0_45] : memref<9x8x4xbf16, #tpu.memory_space<vmem>>, vector<1x8x4xbf16>
    %63 = vector.shape_cast %62 : vector<1x8x4xbf16> to vector<8x4xbf16>
    %cst_46 = arith.constant dense<0.000000e+00> : vector<8x384xf32>
    %64 = tpu.matmul %63, %61, %cst_46 {dimension_numbers = #tpu.dot_dimension_numbers<[1], [1], [0], [0], [0, 0, 1, 0], [], []>} : vector<8x4xbf16>, vector<384x4xbf16>, vector<8x384xf32> -> vector<8x384xf32>
    %65 = arith.addf %60, %64 : vector<8x384xf32>
    %c57 = arith.constant 57 : index
    %c0_47 = arith.constant 0 : index
    %66 = vector.load %arg7[%c57, %c0_47] : memref<464x4xbf16, #tpu.memory_space<vmem>>, vector<384x4xbf16>
    %c7 = arith.constant 7 : index
    %c0_48 = arith.constant 0 : index
    %c0_49 = arith.constant 0 : index
    %67 = vector.load %arg2[%c7, %c0_48, %c0_49] : memref<9x8x4xbf16, #tpu.memory_space<vmem>>, vector<1x8x4xbf16>
    %68 = vector.shape_cast %67 : vector<1x8x4xbf16> to vector<8x4xbf16>
    %cst_50 = arith.constant dense<0.000000e+00> : vector<8x384xf32>
    %69 = tpu.matmul %68, %66, %cst_50 {dimension_numbers = #tpu.dot_dimension_numbers<[1], [1], [0], [0], [0, 0, 1, 0], [], []>} : vector<8x4xbf16>, vector<384x4xbf16>, vector<8x384xf32> -> vector<8x384xf32>
    %70 = arith.addf %65, %69 : vector<8x384xf32>
    %c58 = arith.constant 58 : index
    %c0_51 = arith.constant 0 : index
    %71 = vector.load %arg7[%c58, %c0_51] : memref<464x4xbf16, #tpu.memory_space<vmem>>, vector<384x4xbf16>
    %c8_52 = arith.constant 8 : index
    %c0_53 = arith.constant 0 : index
    %c0_54 = arith.constant 0 : index
    %72 = vector.load %arg2[%c8_52, %c0_53, %c0_54] : memref<9x8x4xbf16, #tpu.memory_space<vmem>>, vector<1x8x4xbf16>
    %73 = vector.shape_cast %72 : vector<1x8x4xbf16> to vector<8x4xbf16>
    %cst_55 = arith.constant dense<0.000000e+00> : vector<8x384xf32>
    %74 = tpu.matmul %73, %71, %cst_55 {dimension_numbers = #tpu.dot_dimension_numbers<[1], [1], [0], [0], [0, 0, 1, 0], [], []>} : vector<8x4xbf16>, vector<384x4xbf16>, vector<8x384xf32> -> vector<8x384xf32>
    %75 = arith.addf %70, %74 : vector<8x384xf32>
    %c0_56 = arith.constant 0 : index
    %c0_57 = arith.constant 0 : index
    %76 = vector.load %arg3[%c0_56, %c0_57] : memref<8x1xf32, #tpu.memory_space<vmem>>, vector<8x1xf32>
    %77 = vector.broadcast %76 : vector<8x1xf32> to vector<8x384xf32>
    %78 = arith.addf %75, %77 : vector<8x384xf32>
    %cst_58 = arith.constant 0.000000e+00 : f32
    %79 = vector.broadcast %cst_58 : f32 to vector<8x384xf32>
    %80 = arith.maximumf %78, %79 : vector<8x384xf32>
    %cst_59 = arith.constant 0.000000e+00 : f32
    %81 = vector.broadcast %cst_59 : f32 to vector<8x384xf32>
    %82 = arith.select %26, %80, %81 : vector<8x384xi1>, vector<8x384xf32>
    %83 = tpu.transpose %82, [1, 0] : vector<8x384xf32> -> vector<384x8xf32>
    %84 = arith.truncf %83 : vector<384x8xf32> to vector<384x8xbf16>
    %c32_60 = arith.constant 32 : index
    %c0_61 = arith.constant 0 : index
    %85 = vector.load %arg8[%c32_60, %c0_61] : memref<464x8xbf16, #tpu.memory_space<vmem>>, vector<384x8xbf16>
    tpu.vector_store %arg8[%c32_60, %c0_61], %84 {strides = array<i32>} : memref<464x8xbf16, #tpu.memory_space<vmem>>, vector<384x8xbf16>,
    %cst_62 = arith.constant 0.000000e+00 : f32
    %86 = vector.broadcast %cst_62 : f32 to vector<8x384xf32>
    %c7_63 = arith.constant 7 : index
    %c0_64 = arith.constant 0 : index
    %87 = vector.load %arg8[%c7_63, %c0_64] : memref<464x8xbf16, #tpu.memory_space<vmem>>, vector<384x8xbf16>
    %c0_65 = arith.constant 0 : index
    %c0_66 = arith.constant 0 : index
    %c0_67 = arith.constant 0 : index
    %88 = vector.load %arg4[%c0_65, %c0_66, %c0_67] : memref<9x8x8xbf16, #tpu.memory_space<vmem>>, vector<1x8x8xbf16>
    %89 = vector.shape_cast %88 : vector<1x8x8xbf16> to vector<8x8xbf16>
    %cst_68 = arith.constant dense<0.000000e+00> : vector<8x384xf32>
    %90 = tpu.matmul %89, %87, %cst_68 {dimension_numbers = #tpu.dot_dimension_numbers<[1], [1], [0], [0], [0, 0, 1, 0], [], []>} : vector<8x8xbf16>, vector<384x8xbf16>, vector<8x384xf32> -> vector<8x384xf32>
    %91 = arith.addf %86, %90 : vector<8x384xf32>
    %c8_69 = arith.constant 8 : index
    %c0_70 = arith.constant 0 : index
    %92 = vector.load %arg8[%c8_69, %c0_70] : memref<464x8xbf16, #tpu.memory_space<vmem>>, vector<384x8xbf16>
    %c1_71 = arith.constant 1 : index
    %c0_72 = arith.constant 0 : index
    %c0_73 = arith.constant 0 : index
    %93 = vector.load %arg4[%c1_71, %c0_72, %c0_73] : memref<9x8x8xbf16, #tpu.memory_space<vmem>>, vector<1x8x8xbf16>
    %94 = vector.shape_cast %93 : vector<1x8x8xbf16> to vector<8x8xbf16>
    %cst_74 = arith.constant dense<0.000000e+00> : vector<8x384xf32>
    %95 = tpu.matmul %94, %92, %cst_74 {dimension_numbers = #tpu.dot_dimension_numbers<[1], [1], [0], [0], [0, 0, 1, 0], [], []>} : vector<8x8xbf16>, vector<384x8xbf16>, vector<8x384xf32> -> vector<8x384xf32>
    %96 = arith.addf %91, %95 : vector<8x384xf32>
    %c9_75 = arith.constant 9 : index
    %c0_76 = arith.constant 0 : index
    %97 = vector.load %arg8[%c9_75, %c0_76] : memref<464x8xbf16, #tpu.memory_space<vmem>>, vector<384x8xbf16>
    %c2_77 = arith.constant 2 : index
    %c0_78 = arith.constant 0 : index
    %c0_79 = arith.constant 0 : index
    %98 = vector.load %arg4[%c2_77, %c0_78, %c0_79] : memref<9x8x8xbf16, #tpu.memory_space<vmem>>, vector<1x8x8xbf16>
    %99 = vector.shape_cast %98 : vector<1x8x8xbf16> to vector<8x8xbf16>
    %cst_80 = arith.constant dense<0.000000e+00> : vector<8x384xf32>
    %100 = tpu.matmul %99, %97, %cst_80 {dimension_numbers = #tpu.dot_dimension_numbers<[1], [1], [0], [0], [0, 0, 1, 0], [], []>} : vector<8x8xbf16>, vector<384x8xbf16>, vector<8x384xf32> -> vector<8x384xf32>
    %101 = arith.addf %96, %100 : vector<8x384xf32>
    %c31 = arith.constant 31 : index
    %c0_81 = arith.constant 0 : index
    %102 = vector.load %arg8[%c31, %c0_81] : memref<464x8xbf16, #tpu.memory_space<vmem>>, vector<384x8xbf16>
    %c3_82 = arith.constant 3 : index
    %c0_83 = arith.constant 0 : index
    %c0_84 = arith.constant 0 : index
    %103 = vector.load %arg4[%c3_82, %c0_83, %c0_84] : memref<9x8x8xbf16, #tpu.memory_space<vmem>>, vector<1x8x8xbf16>
    %104 = vector.shape_cast %103 : vector<1x8x8xbf16> to vector<8x8xbf16>
    %cst_85 = arith.constant dense<0.000000e+00> : vector<8x384xf32>
    %105 = tpu.matmul %104, %102, %cst_85 {dimension_numbers = #tpu.dot_dimension_numbers<[1], [1], [0], [0], [0, 0, 1, 0], [], []>} : vector<8x8xbf16>, vector<384x8xbf16>, vector<8x384xf32> -> vector<8x384xf32>
    %106 = arith.addf %101, %105 : vector<8x384xf32>
    %c32_86 = arith.constant 32 : index
    %c0_87 = arith.constant 0 : index
    %107 = vector.load %arg8[%c32_86, %c0_87] : memref<464x8xbf16, #tpu.memory_space<vmem>>, vector<384x8xbf16>
    %c4_88 = arith.constant 4 : index
    %c0_89 = arith.constant 0 : index
    %c0_90 = arith.constant 0 : index
    %108 = vector.load %arg4[%c4_88, %c0_89, %c0_90] : memref<9x8x8xbf16, #tpu.memory_space<vmem>>, vector<1x8x8xbf16>
    %109 = vector.shape_cast %108 : vector<1x8x8xbf16> to vector<8x8xbf16>
    %cst_91 = arith.constant dense<0.000000e+00> : vector<8x384xf32>
    %110 = tpu.matmul %109, %107, %cst_91 {dimension_numbers = #tpu.dot_dimension_numbers<[1], [1], [0], [0], [0, 0, 1, 0], [], []>} : vector<8x8xbf16>, vector<384x8xbf16>, vector<8x384xf32> -> vector<8x384xf32>
    %111 = arith.addf %106, %110 : vector<8x384xf32>
    %c33_92 = arith.constant 33 : index
    %c0_93 = arith.constant 0 : index
    %112 = vector.load %arg8[%c33_92, %c0_93] : memref<464x8xbf16, #tpu.memory_space<vmem>>, vector<384x8xbf16>
    %c5_94 = arith.constant 5 : index
    %c0_95 = arith.constant 0 : index
    %c0_96 = arith.constant 0 : index
    %113 = vector.load %arg4[%c5_94, %c0_95, %c0_96] : memref<9x8x8xbf16, #tpu.memory_space<vmem>>, vector<1x8x8xbf16>
    %114 = vector.shape_cast %113 : vector<1x8x8xbf16> to vector<8x8xbf16>
    %cst_97 = arith.constant dense<0.000000e+00> : vector<8x384xf32>
    %115 = tpu.matmul %114, %112, %cst_97 {dimension_numbers = #tpu.dot_dimension_numbers<[1], [1], [0], [0], [0, 0, 1, 0], [], []>} : vector<8x8xbf16>, vector<384x8xbf16>, vector<8x384xf32> -> vector<8x384xf32>
    %116 = arith.addf %111, %115 : vector<8x384xf32>
    %c55 = arith.constant 55 : index
    %c0_98 = arith.constant 0 : index
    %117 = vector.load %arg8[%c55, %c0_98] : memref<464x8xbf16, #tpu.memory_space<vmem>>, vector<384x8xbf16>
    %c6_99 = arith.constant 6 : index
    %c0_100 = arith.constant 0 : index
    %c0_101 = arith.constant 0 : index
    %118 = vector.load %arg4[%c6_99, %c0_100, %c0_101] : memref<9x8x8xbf16, #tpu.memory_space<vmem>>, vector<1x8x8xbf16>
    %119 = vector.shape_cast %118 : vector<1x8x8xbf16> to vector<8x8xbf16>
    %cst_102 = arith.constant dense<0.000000e+00> : vector<8x384xf32>
    %120 = tpu.matmul %119, %117, %cst_102 {dimension_numbers = #tpu.dot_dimension_numbers<[1], [1], [0], [0], [0, 0, 1, 0], [], []>} : vector<8x8xbf16>, vector<384x8xbf16>, vector<8x384xf32> -> vector<8x384xf32>
    %121 = arith.addf %116, %120 : vector<8x384xf32>
    %c56_103 = arith.constant 56 : index
    %c0_104 = arith.constant 0 : index
    %122 = vector.load %arg8[%c56_103, %c0_104] : memref<464x8xbf16, #tpu.memory_space<vmem>>, vector<384x8xbf16>
    %c7_105 = arith.constant 7 : index
    %c0_106 = arith.constant 0 : index
    %c0_107 = arith.constant 0 : index
    %123 = vector.load %arg4[%c7_105, %c0_106, %c0_107] : memref<9x8x8xbf16, #tpu.memory_space<vmem>>, vector<1x8x8xbf16>
    %124 = vector.shape_cast %123 : vector<1x8x8xbf16> to vector<8x8xbf16>
    %cst_108 = arith.constant dense<0.000000e+00> : vector<8x384xf32>
    %125 = tpu.matmul %124, %122, %cst_108 {dimension_numbers = #tpu.dot_dimension_numbers<[1], [1], [0], [0], [0, 0, 1, 0], [], []>} : vector<8x8xbf16>, vector<384x8xbf16>, vector<8x384xf32> -> vector<8x384xf32>
    %126 = arith.addf %121, %125 : vector<8x384xf32>
    %c57_109 = arith.constant 57 : index
    %c0_110 = arith.constant 0 : index
    %127 = vector.load %arg8[%c57_109, %c0_110] : memref<464x8xbf16, #tpu.memory_space<vmem>>, vector<384x8xbf16>
    %c8_111 = arith.constant 8 : index
    %c0_112 = arith.constant 0 : index
    %c0_113 = arith.constant 0 : index
    %128 = vector.load %arg4[%c8_111, %c0_112, %c0_113] : memref<9x8x8xbf16, #tpu.memory_space<vmem>>, vector<1x8x8xbf16>
    %129 = vector.shape_cast %128 : vector<1x8x8xbf16> to vector<8x8xbf16>
    %cst_114 = arith.constant dense<0.000000e+00> : vector<8x384xf32>
    %130 = tpu.matmul %129, %127, %cst_114 {dimension_numbers = #tpu.dot_dimension_numbers<[1], [1], [0], [0], [0, 0, 1, 0], [], []>} : vector<8x8xbf16>, vector<384x8xbf16>, vector<8x384xf32> -> vector<8x384xf32>
    %131 = arith.addf %126, %130 : vector<8x384xf32>
    %c0_115 = arith.constant 0 : index
    %c0_116 = arith.constant 0 : index
    %132 = vector.load %arg5[%c0_115, %c0_116] : memref<8x1xf32, #tpu.memory_space<vmem>>, vector<8x1xf32>
    %133 = vector.broadcast %132 : vector<8x1xf32> to vector<8x384xf32>
    %134 = arith.addf %131, %133 : vector<8x384xf32>
    %cst_117 = arith.constant 0.000000e+00 : f32
    %135 = vector.broadcast %cst_117 : f32 to vector<8x384xf32>
    %136 = arith.maximumf %134, %135 : vector<8x384xf32>
    %c0_118 = arith.constant 0 : index
    %c0_119 = arith.constant 0 : index
    %c0_120 = arith.constant 0 : index
    %137 = vector.load %arg6[%c0_118, %c0_119, %c0_120] : memref<1x8x384xf32, #tpu.memory_space<vmem>>, vector<1x8x384xf32>
    %138 = vector.shape_cast %137 : vector<1x8x384xf32> to vector<8x384xf32>
    %139 = vector.shape_cast %136 : vector<8x384xf32> to vector<1x8x384xf32>
    tpu.vector_store %arg6[%c0_118, %c0_119, %c0_120], %139 {strides = array<i32>} : memref<1x8x384xf32, #tpu.memory_space<vmem>>, vector<1x8x384xf32>,
    return
  }
  func.func @transform_0(%arg0: i32) -> (i32, i32, i32) {
    %c0_i32 = arith.constant 0 : i32
    %c0_i32_0 = arith.constant 0 : i32
    %c0_i32_1 = arith.constant 0 : i32
    return %arg0, %c0_i32, %c0_i32_0 : i32, i32, i32
  }
  func.func @transform_1(%arg0: i32) -> (i32, i32, i32) {
    %c0_i32 = arith.constant 0 : i32
    %c0_i32_0 = arith.constant 0 : i32
    %c0_i32_1 = arith.constant 0 : i32
    %c0_i32_2 = arith.constant 0 : i32
    return %c0_i32, %c0_i32_0, %c0_i32_1 : i32, i32, i32
  }
  func.func @transform_2(%arg0: i32) -> (i32, i32) {
    %c0_i32 = arith.constant 0 : i32
    %c0_i32_0 = arith.constant 0 : i32
    %c0_i32_1 = arith.constant 0 : i32
    return %c0_i32, %c0_i32_0 : i32, i32
  }
  func.func @transform_3(%arg0: i32) -> (i32, i32, i32) {
    %c0_i32 = arith.constant 0 : i32
    %c0_i32_0 = arith.constant 0 : i32
    %c0_i32_1 = arith.constant 0 : i32
    %c0_i32_2 = arith.constant 0 : i32
    return %c0_i32, %c0_i32_0, %c0_i32_1 : i32, i32, i32
  }
  func.func @transform_4(%arg0: i32) -> (i32, i32) {
    %c0_i32 = arith.constant 0 : i32
    %c0_i32_0 = arith.constant 0 : i32
    %c0_i32_1 = arith.constant 0 : i32
    return %c0_i32, %c0_i32_0 : i32, i32
  }
  func.func @transform_5(%arg0: i32) -> (i32, i32, i32) {
    %c0_i32 = arith.constant 0 : i32
    %c0_i32_0 = arith.constant 0 : i32
    %c0_i32_1 = arith.constant 0 : i32
    return %arg0, %c0_i32, %c0_i32_0 : i32, i32, i32
  }
}

</mosaic_0001>

<llo_original>
// kernel: tpu_custom_call.1
$region0: #{tpu_custom_call.1}
  #allocation0 [shape = 'u32[]', space=smem, size = 0x4, offset = 0x4, fixed_abs, tag = 'smem constant byte address 0x4 - core index']
  #allocation1 [shape = 'u32[72,128]{1,0:T(1,128)}', space=vmem, size = 0x9000, scoped, tag = 'internal scratch']
  #allocation2 [shape = 'bf16[464,4]{1,0:T(8,128)(2,1)}', space=vmem, size = 0x1d000, scoped, tag = 'scratch operand']
  #allocation3 [shape = 'bf16[464,8]{1,0:T(8,128)(2,1)}', space=vmem, size = 0x1d000, scoped, tag = 'scratch operand']
  %s0 = inlined_call_operand.vmem [shape: bf16[2,384,4], index: 0, kind: input, shape index: {}]
  %s1 = inlined_call_operand.vmem [shape: bf16[9,8,4], index: 1, kind: input, shape index: {}]
  %s2 = inlined_call_operand.vmem [shape: f32[8,1], index: 2, kind: input, shape index: {}]
  %s3 = inlined_call_operand.vmem [shape: bf16[9,8,8], index: 3, kind: input, shape index: {}]
  %s4 = inlined_call_operand.vmem [shape: f32[8,1], index: 4, kind: input, shape index: {}]
  %s5 = inlined_call_operand.hbm [shape: f32[2,8,384], index: 5, kind: output, shape index: {}]
  %s6 = sld [smem:[#allocation0]]
  $region53: #{tpu_custom_call.1} parent=0
    _
  %s8 = ssub.s32 1, %s6
  %s9 = scalar_select 0, %s8, %s6
  $region1: #{tpu_custom_call.1} parent=0
    #allocation4 [shape = 'u8[24576]{0}', space=vmem, size = 0x6000, scoped, tag = 'output window, operand 0']
    #allocation5 [shape = 's32[2]{0}', space=sflag, size = 0x8, scoped, tag = 'scoped memory for tpu_custom_call.1']
    %10 = vsyncpa [#allocation5], 0
    %s11 = scalar_lea.sflag [#allocation5], 1
    %12 = vsyncpa %s11, 0
    loop: start=0, step=1, limit=4
    $region2: #{tpu_custom_call.1} parent=1 // loop_pre_header
      _
    $region3: #{tpu_custom_call.1} parent=1 // loop_header
      %s14 = sphi 0, %s18
      %p15 = scmp.ge.s32.totalorder %s14, 4
      %s24 = sphi 0, %s26
      %s27 = sphi 0, %s24
      %s28 = sphi 0, %s27
      %s44 = sphi 0, %s28
      %s48 = sphi 0, %s48
      %s50 = sphi 0, %s48
      %s51 = sphi 0, %s50
      %s65 = sphi 0, %s51
      %s69 = sphi 0, %s69
      %s71 = sphi 0, %s69
      %s72 = sphi 0, %s71
      %s86 = sphi 0, %s72
      %s90 = sphi 0, %s90
      %s92 = sphi 0, %s90
      %s93 = sphi 0, %s92
      %s107 = sphi 0, %s93
      %s111 = sphi 0, %s111
      %s113 = sphi 0, %s111
      %s114 = sphi 0, %s113
      %s128 = sphi 0, %s114
      %s134 = sphi 0, %s136
      %s137 = sphi 0, %s134
      %s138 = sphi 0, %s137
      %s154 = sphi 0, %s138
    $region4: #{tpu_custom_call.1} parent=1 // loop_header_branch
      %17 = sbr.rel (%p15) target = $region8
    $region5: #{tpu_custom_call.1} parent=1 // loop_body
      %s19 = ssub.s32 %s14, 1
      %s20 = ssub.s32 %s14, 2
      %s21 = sadd.s32 %s14, 1
      %s22 = ssub.s32 %s14, %s21
      %p23 = scmp.eq.s32.totalorder %s22, 0
      %s25 = sadd.s32 %s24, 1
      %s26 = scalar_select %p23, %s24, %s25
      %p29 = pneg %p23
      %p30 = scmp.eq.s32.totalorder %s14, 1
      %p31 = por %p29, %p30
      %p32 = scmp.ne.s32.totalorder %s24, %s27
      %p33 = scmp.eq.s32.totalorder %s14, 0
      %p34 = por %p32, %p33
      %p35 = scmp.ne.s32.totalorder %s24, %s27
      %p36 = scmp.eq.s32.totalorder %s19, 1
      %p37 = por %p35, %p36
      %p38 = scmp.ne.s32.totalorder %s27, %s28
      %p39 = scmp.eq.s32.totalorder %s19, 0
      %p40 = por %p38, %p39
      %p41 = scmp.ne.s32.totalorder %s27, %s28
      %p42 = scmp.eq.s32.totalorder %s20, 1
      %p43 = por %p41, %p42
      %p45 = scmp.ne.s32.totalorder %s28, %s44
      %p46 = scmp.eq.s32.totalorder %s20, 0
      %p47 = por %p45, %p46
      %s49 = sadd.s32 %s48, 1
      %p52 = scmp.eq.s32.totalorder %s14, 1
      %p53 = scmp.ne.s32.totalorder %s48, %s50
      %p54 = scmp.eq.s32.totalorder %s14, 0
      %p55 = por %p53, %p54
      %p56 = scmp.ne.s32.totalorder %s48, %s50
      %p57 = scmp.eq.s32.totalorder %s19, 1
      %p58 = por %p56, %p57
      %p59 = scmp.ne.s32.totalorder %s50, %s51
      %p60 = scmp.eq.s32.totalorder %s19, 0
      %p61 = por %p59, %p60
      %p62 = scmp.ne.s32.totalorder %s50, %s51
      %p63 = scmp.eq.s32.totalorder %s20, 1
      %p64 = por %p62, %p63
      %p66 = scmp.ne.s32.totalorder %s51, %s65
      %p67 = scmp.eq.s32.totalorder %s20, 0
      %p68 = por %p66, %p67
      %s70 = sadd.s32 %s69, 1
      %p73 = scmp.eq.s32.totalorder %s14, 1
      %p74 = scmp.ne.s32.totalorder %s69, %s71
      %p75 = scmp.eq.s32.totalorder %s14, 0
      %p76 = por %p74, %p75
      %p77 = scmp.ne.s32.totalorder %s69, %s71
      %p78 = scmp.eq.s32.totalorder %s19, 1
      %p79 = por %p77, %p78
      %p80 = scmp.ne.s32.totalorder %s71, %s72
      %p81 = scmp.eq.s32.totalorder %s19, 0
      %p82 = por %p80, %p81
      %p83 = scmp.ne.s32.totalorder %s71, %s72
      %p84 = scmp.eq.s32.totalorder %s20, 1
      %p85 = por %p83, %p84
      %p87 = scmp.ne.s32.totalorder %s72, %s86
      %p88 = scmp.eq.s32.totalorder %s20, 0
      %p89 = por %p87, %p88
      %s91 = sadd.s32 %s90, 1
      %p94 = scmp.eq.s32.totalorder %s14, 1
      %p95 = scmp.ne.s32.totalorder %s90, %s92
      %p96 = scmp.eq.s32.totalorder %s14, 0
      %p97 = por %p95, %p96
      %p98 = scmp.ne.s32.totalorder %s90, %s92
      %p99 = scmp.eq.s32.totalorder %s19, 1
      %p100 = por %p98, %p99
      %p101 = scmp.ne.s32.totalorder %s92, %s93
      %p102 = scmp.eq.s32.totalorder %s19, 0
      %p103 = por %p101, %p102
      %p104 = scmp.ne.s32.totalorder %s92, %s93
      %p105 = scmp.eq.s32.totalorder %s20, 1
      %p106 = por %p104, %p105
      %p108 = scmp.ne.s32.totalorder %s93, %s107
      %p109 = scmp.eq.s32.totalorder %s20, 0
      %p110 = por %p108, %p109
      %s112 = sadd.s32 %s111, 1
      %p115 = scmp.eq.s32.totalorder %s14, 1
      %p116 = scmp.ne.s32.totalorder %s111, %s113
      %p117 = scmp.eq.s32.totalorder %s14, 0
      %p118 = por %p116, %p117
      %p119 = scmp.ne.s32.totalorder %s111, %s113
      %p120 = scmp.eq.s32.totalorder %s19, 1
      %p121 = por %p119, %p120
      %p122 = scmp.ne.s32.totalorder %s113, %s114
      %p123 = scmp.eq.s32.totalorder %s19, 0
      %p124 = por %p122, %p123
      %p125 = scmp.ne.s32.totalorder %s113, %s114
      %p126 = scmp.eq.s32.totalorder %s20, 1
      %p127 = por %p125, %p126
      %p129 = scmp.ne.s32.totalorder %s114, %s128
      %p130 = scmp.eq.s32.totalorder %s20, 0
      %p131 = por %p129, %p130
      %s132 = ssub.s32 %s14, %s21
      %p133 = scmp.eq.s32.totalorder %s132, 0
      %s135 = sadd.s32 %s134, 1
      %s136 = scalar_select %p133, %s134, %s135
      %p139 = pneg %p133
      %p140 = scmp.eq.s32.totalorder %s14, 1
      %p141 = por %p139, %p140
      %p142 = scmp.ne.s32.totalorder %s134, %s137
      %p143 = scmp.eq.s32.totalorder %s14, 0
      %p144 = por %p142, %p143
      %p145 = scmp.ne.s32.totalorder %s134, %s137
      %p146 = scmp.eq.s32.totalorder %s19, 1
      %p147 = por %p145, %p146
      %p148 = scmp.ne.s32.totalorder %s137, %s138
      %p149 = scmp.eq.s32.totalorder %s19, 0
      %p150 = por %p148, %p149
      %p151 = scmp.ne.s32.totalorder %s137, %s138
      %p152 = scmp.eq.s32.totalorder %s20, 1
      %p153 = por %p151, %p152
      %p155 = scmp.ne.s32.totalorder %s138, %s154
      %p156 = scmp.eq.s32.totalorder %s20, 0
      %p157 = por %p155, %p156
      %p158 = scmp.le.s32.totalorder 1, %s14
      %p159 = scmp.lt.s32.totalorder %s14, 3
      %p160 = pnand %p158, %p159
      %p161 = pneg %p160
      // Predicated region
      $region9: #{tpu_custom_call.1} parent=5 // pred_check
        _
      $region10: #{tpu_custom_call.1} parent=5 // pred_check_branch
        %163 = sbr.rel (%p160) target = $region12
      $region11: #{tpu_custom_call.1} parent=5 // pred_region
        %s164 = ssub.s32 %s14, 1
        // Predicated region
        $region13: #{tpu_custom_call.1} parent=11 // pred_check
          %p165 = pneg %p61
        $region14: #{tpu_custom_call.1} parent=11 // pred_check_branch
          %167 = sbr.rel (%p165) target = $region16
        $region15: #{tpu_custom_call.1} parent=11 // pred_region
          _
        $region16: #{tpu_custom_call.1} parent=11 // pred_fallthru
          _
        // Predicated region
        $region17: #{tpu_custom_call.1} parent=11 // pred_check
          %p168 = pneg %p82
        $region18: #{tpu_custom_call.1} parent=11 // pred_check_branch
          %170 = sbr.rel (%p168) target = $region20
        $region19: #{tpu_custom_call.1} parent=11 // pred_region
          _
        $region20: #{tpu_custom_call.1} parent=11 // pred_fallthru
          _
        // Predicated region
        $region21: #{tpu_custom_call.1} parent=11 // pred_check
          %p171 = pneg %p103
        $region22: #{tpu_custom_call.1} parent=11 // pred_check_branch
          %173 = sbr.rel (%p171) target = $region24
        $region23: #{tpu_custom_call.1} parent=11 // pred_region
          _
        $region24: #{tpu_custom_call.1} parent=11 // pred_fallthru
          _
        // Predicated region
        $region25: #{tpu_custom_call.1} parent=11 // pred_check
          %p174 = pneg %p124
        $region26: #{tpu_custom_call.1} parent=11 // pred_check_branch
          %176 = sbr.rel (%p174) target = $region28
        $region27: #{tpu_custom_call.1} parent=11 // pred_region
          _
        $region28: #{tpu_custom_call.1} parent=11 // pred_fallthru
          _
      $region12: #{tpu_custom_call.1} parent=5 // pred_fallthru
        _
      %p177 = scmp.lt.s32.totalorder %s14, 2
      // Predicated region
      $region29: #{tpu_custom_call.1} parent=5 // pred_check
        %p178 = pneg %p177
      $region30: #{tpu_custom_call.1} parent=5 // pred_check_branch
        %180 = sbr.rel (%p178) target = $region32
      $region31: #{tpu_custom_call.1} parent=5 // pred_region
        // Predicated region
        $region33: #{tpu_custom_call.1} parent=31 // pred_check
          %p181 = pneg %p34
        $region34: #{tpu_custom_call.1} parent=31 // pred_check_branch
          %183 = sbr.rel (%p181) target = $region36
        $region35: #{tpu_custom_call.1} parent=31 // pred_region
          %p184 = scmp.lt.s32.totalorder %s14, 1
          %s185 = scalar_select %p184, %s14, 1
          %s186 = smul.addr %s185, 48
          %s187 = smul.addr %s186, 4
          %s188 = scalar_lea.vmem %s0, %s187
        $region36: #{tpu_custom_call.1} parent=31 // pred_fallthru
          _
      $region32: #{tpu_custom_call.1} parent=5 // pred_fallthru
        _
      %p189 = scmp.le.s32.totalorder 1, %s14
      %p190 = scmp.lt.s32.totalorder %s14, 3
      %p191 = pnand %p189, %p190
      %p192 = pneg %p191
      // Predicated region
      $region37: #{tpu_custom_call.1} parent=5 // pred_check
        _
      $region38: #{tpu_custom_call.1} parent=5 // pred_check_branch
        %194 = sbr.rel (%p191) target = $region40
      $region39: #{tpu_custom_call.1} parent=5 // pred_region
        %s195 = ssub.s32 %s14, 1
        %p196 = scmp.lt.s32.totalorder %s19, 1
        %s197 = scalar_select %p196, %s19, 1
        %s198 = smul.addr %s197, 48
        %s199 = smul.addr %s198, 4
        %s200 = scalar_lea.vmem %s0, %s199
        %p201 = pneg %p40
        %p202 = pneg %p37
        %p203 = pneg %p61
        %p204 = pneg %p58
        %p205 = pneg %p82
        %p206 = pneg %p79
        %p207 = pneg %p103
        %p208 = pneg %p100
        %p209 = pneg %p124
        %p210 = pneg %p121
        %p211 = pneg %p150
        %p212 = pneg %p147
        %s213 = sand.u32 %s137, 1
        %s214 = scalar_lea.sflag [#allocation5], %s213
        %s215 = sand.u32 %s137, 1
        %s216 = smul.addr %s215, 24
        %s217 = scalar_lea.vmem [#allocation4], %s216
        %p218 = scmp.lt.s32.totalorder %s19, 1
        %s219 = scalar_select %p218, %s19, 1
        %s220 = smul.addr %s219, 48
        %s221 = smul.addr %s220, 4
        %s222 = scalar_lea.vmem %s0, %s221
        %vm224 = vcmask 27648
        %225 = vst.msk [vmem:[#allocation2] sm:$0xf] %vm224, 0
        %226 = vst.msk [vmem:[#allocation2 + $0x4] sm:$0xf] %vm224, 0
        %227 = vst.msk [vmem:[#allocation2 + $0x8] sm:$0xf] %vm224, 0
        %228 = vst.msk [vmem:[#allocation2 + $0xc] sm:$0xf] %vm224, 0
        %229 = vst.msk [vmem:[#allocation2 + $0xd0] sm:$0xf] %vm224, 0
        %230 = vst.msk [vmem:[#allocation2 + $0xd4] sm:$0xf] %vm224, 0
        %231 = vst.msk [vmem:[#allocation2 + $0xd8] sm:$0xf] %vm224, 0
        %232 = vst.msk [vmem:[#allocation2 + $0xdc] sm:$0xf] %vm224, 0
        %233 = vst.msk [vmem:[#allocation2 + $0xe0] sm:$0xf] %vm224, 0
        %234 = vst.msk [vmem:[#allocation2 + $0xe4] sm:$0xf] %vm224, 0
        %vm235 = vcmask 60416
        %236 = vst.msk [vmem:[#allocation3] sm:$0xf] %vm235, 0
        %237 = vst.msk [vmem:[#allocation3 + $0x4] sm:$0xf] %vm235, 0
        %238 = vst.msk [vmem:[#allocation3 + $0x8] sm:$0xf] %vm235, 0
        %239 = vst.msk [vmem:[#allocation3 + $0xc] sm:$0xf] %vm235, 0
        %240 = vst.msk [vmem:[#allocation3 + $0xd0] sm:$0xf] %vm235, 0
        %241 = vst.msk [vmem:[#allocation3 + $0xd4] sm:$0xf] %vm235, 0
        %242 = vst.msk [vmem:[#allocation3 + $0xd8] sm:$0xf] %vm235, 0
        %243 = vst.msk [vmem:[#allocation3 + $0xdc] sm:$0xf] %vm235, 0
        %244 = vst.msk [vmem:[#allocation3 + $0xe0] sm:$0xf] %vm235, 0
        %245 = vst.msk [vmem:[#allocation3 + $0xe4] sm:$0xf] %vm235, 0
        %v246 = vlaneseq
        %v247 = vand.u32 %v246, 127
        %v248 = vadd.s32 %v247, 128
        %v249 = vadd.s32 %v247, 256
        %vm250 = vcmp.lt.s32.totalorder %v247, 0
        %v251 = vsub.s32 0, %v247
        %v252 = vsel %vm250, %v251, %v247
        %v253 = vand.u32 %v252, 65535
        %v254 = vshrl.u32 %v252, 16
        %v256 = vmul.u32 %v253, 43691
        %v257 = vmul.u32 %v253, 43690
        %v258 = vmul.u32 %v254, 43691
        %v259 = vmul.u32 %v254, 43690
        %v260 = vshll.u32 %v257, 16
        %v261 = vshrl.u32 %v257, 16
        %v262 = vshll.u32 %v258, 16
        %v263 = vshrl.u32 %v258, 16
        %vm264 = vc.u32 %v256, %v260
        %v265 = vsel %vm264, 1, 0
        %v266 = vadd.s32 %v256, %v260
        %v267 = vadd.s32 %v259, %v265
        %vm268 = vc.u32 %v266, %v262
        %v269 = vsel %vm268, 1, 0
        %v270 = vadd.s32 %v266, %v262
        %v271 = vadd.s32 %v267, %v269
        %v272 = vadd.s32 %v271, %v261
        %v273 = vadd.s32 %v272, %v263
        %v274 = vshrl.u32 %v273, 4
        %v275 = vmul.u32 %v274, 24
        %v276 = vsub.s32 %v252, %v275
        %v277 = vsub.s32 0, %v276
        %v278 = vsel %vm250, %v277, %v276
        %vm279 = vcmp.lt.s32.totalorder %v248, 0
        %v280 = vsub.s32 0, %v248
        %v281 = vsel %vm279, %v280, %v248
        %v282 = vand.u32 %v281, 65535
        %v283 = vshrl.u32 %v281, 16
        %v285 = vmul.u32 %v282, 43691
        %v286 = vmul.u32 %v282, 43690
        %v287 = vmul.u32 %v283, 43691
        %v288 = vmul.u32 %v283, 43690
        %v289 = vshll.u32 %v286, 16
        %v290 = vshrl.u32 %v286, 16
        %v291 = vshll.u32 %v287, 16
        %v292 = vshrl.u32 %v287, 16
        %vm293 = vc.u32 %v285, %v289
        %v294 = vsel %vm293, 1, 0
        %v295 = vadd.s32 %v285, %v289
        %v296 = vadd.s32 %v288, %v294
        %vm297 = vc.u32 %v295, %v291
        %v298 = vsel %vm297, 1, 0
        %v299 = vadd.s32 %v295, %v291
        %v300 = vadd.s32 %v296, %v298
        %v301 = vadd.s32 %v300, %v290
        %v302 = vadd.s32 %v301, %v292
        %v303 = vshrl.u32 %v302, 4
        %v304 = vmul.u32 %v303, 24
        %v305 = vsub.s32 %v281, %v304
        %v306 = vsub.s32 0, %v305
        %v307 = vsel %vm279, %v306, %v305
        %vm308 = vcmp.lt.s32.totalorder %v249, 0
        %v309 = vsub.s32 0, %v249
        %v310 = vsel %vm308, %v309, %v249
        %v311 = vand.u32 %v310, 65535
        %v312 = vshrl.u32 %v310, 16
        %v314 = vmul.u32 %v311, 43691
        %v315 = vmul.u32 %v311, 43690
        %v316 = vmul.u32 %v312, 43691
        %v317 = vmul.u32 %v312, 43690
        %v318 = vshll.u32 %v315, 16
        %v319 = vshrl.u32 %v315, 16
        %v320 = vshll.u32 %v316, 16
        %v321 = vshrl.u32 %v316, 16
        %vm322 = vc.u32 %v314, %v318
        %v323 = vsel %vm322, 1, 0
        %v324 = vadd.s32 %v314, %v318
        %v325 = vadd.s32 %v317, %v323
        %vm326 = vc.u32 %v324, %v320
        %v327 = vsel %vm326, 1, 0
        %v328 = vadd.s32 %v324, %v320
        %v329 = vadd.s32 %v325, %v327
        %v330 = vadd.s32 %v329, %v319
        %v331 = vadd.s32 %v330, %v321
        %v332 = vshrl.u32 %v331, 4
        %v333 = vmul.u32 %v332, 24
        %v334 = vsub.s32 %v310, %v333
        %v335 = vsub.s32 0, %v334
        %v336 = vsel %vm308, %v335, %v334
        %vm337 = vcmp.ne.s32.totalorder %v278, 0
        %vm338 = vcmp.ne.s32.totalorder %v307, 0
        %vm339 = vcmp.ne.s32.totalorder %v336, 0
        %vm340 = vcmp.lt.s32.totalorder %v278, 0
        %vm341 = vcmp.lt.s32.totalorder %v307, 0
        %vm342 = vcmp.lt.s32.totalorder %v336, 0
        %vm343 = vmand %vm340, %vm337
        %vm344 = vmand %vm341, %vm338
        %vm345 = vmand %vm342, %vm339
        %v346 = vadd.s32 %v278, 24
        %v347 = vadd.s32 %v307, 24
        %v348 = vadd.s32 %v336, 24
        %v349 = vsel %vm343, %v346, %v278
        %v350 = vsel %vm344, %v347, %v307
        %v351 = vsel %vm345, %v348, %v336
        %vm352 = vcmp.lt.s32.totalorder %v349, 16
        %vm353 = vcmp.lt.s32.totalorder %v350, 16
        %vm354 = vcmp.lt.s32.totalorder %v351, 16
        %v355 = vld [vmem:[%s222] sm:$0xf]
        %v356 = vld [vmem:[%s222 + $0x4] sm:$0xf]
        %v357 = vld [vmem:[%s222 + $0x8] sm:$0xf]
        %v358 = vld [vmem:[%s222 + $0xc] sm:$0xf]
        %v359 = vld [vmem:[%s222 + $0x10] sm:$0xf]
        %v360 = vld [vmem:[%s222 + $0x14] sm:$0xf]
        %v361 = vld [vmem:[%s222 + $0x18] sm:$0xf]
        %v362 = vld [vmem:[%s222 + $0x1c] sm:$0xf]
        %v363 = vld [vmem:[%s222 + $0x20] sm:$0xf]
        %v364 = vld [vmem:[%s222 + $0x24] sm:$0xf]
        %v365 = vld [vmem:[%s222 + $0x28] sm:$0xf]
        %v366 = vld [vmem:[%s222 + $0x2c] sm:$0xf]
        %v367 = vld [vmem:[%s222 + $0x30] sm:$0xf]
        %v368 = vld [vmem:[%s222 + $0x34] sm:$0xf]
        %v369 = vld [vmem:[%s222 + $0x38] sm:$0xf]
        %v370 = vld [vmem:[%s222 + $0x3c] sm:$0xf]
        %v371 = vld [vmem:[%s222 + $0x40] sm:$0xf]
        %v372 = vld [vmem:[%s222 + $0x44] sm:$0xf]
        %v373 = vld [vmem:[%s222 + $0x48] sm:$0xf]
        %v374 = vld [vmem:[%s222 + $0x4c] sm:$0xf]
        %v375 = vld [vmem:[%s222 + $0x50] sm:$0xf]
        %v376 = vld [vmem:[%s222 + $0x54] sm:$0xf]
        %v377 = vld [vmem:[%s222 + $0x58] sm:$0xf]
        %v378 = vld [vmem:[%s222 + $0x5c] sm:$0xf]
        %v379 = vld [vmem:[%s222 + $0x60] sm:$0xf]
        %v380 = vld [vmem:[%s222 + $0x64] sm:$0xf]
        %v381 = vld [vmem:[%s222 + $0x68] sm:$0xf]
        %v382 = vld [vmem:[%s222 + $0x6c] sm:$0xf]
        %v383 = vld [vmem:[%s222 + $0x70] sm:$0xf]
        %v384 = vld [vmem:[%s222 + $0x74] sm:$0xf]
        %v385 = vld [vmem:[%s222 + $0x78] sm:$0xf]
        %v386 = vld [vmem:[%s222 + $0x7c] sm:$0xf]
        %v387 = vld [vmem:[%s222 + $0x80] sm:$0xf]
        %v388 = vld [vmem:[%s222 + $0x84] sm:$0xf]
        %v389 = vld [vmem:[%s222 + $0x88] sm:$0xf]
        %v390 = vld [vmem:[%s222 + $0x8c] sm:$0xf]
        %v391 = vld [vmem:[%s222 + $0x90] sm:$0xf]
        %v392 = vld [vmem:[%s222 + $0x94] sm:$0xf]
        %v393 = vld [vmem:[%s222 + $0x98] sm:$0xf]
        %v394 = vld [vmem:[%s222 + $0x9c] sm:$0xf]
        %v395 = vld [vmem:[%s222 + $0xa0] sm:$0xf]
        %v396 = vld [vmem:[%s222 + $0xa4] sm:$0xf]
        %v397 = vld [vmem:[%s222 + $0xa8] sm:$0xf]
        %v398 = vld [vmem:[%s222 + $0xac] sm:$0xf]
        %v399 = vld [vmem:[%s222 + $0xb0] sm:$0xf]
        %v400 = vld [vmem:[%s222 + $0xb4] sm:$0xf]
        %v401 = vld [vmem:[%s222 + $0xb8] sm:$0xf]
        %v402 = vld [vmem:[%s222 + $0xbc] sm:$0xf]
        %403 = vst.msk [vmem:[#allocation2 + $0x10] sm:$0xf] %vm224, %v355
        %404 = vst.msk [vmem:[#allocation2 + $0x14] sm:$0xf] %vm224, %v356
        %405 = vst.msk [vmem:[#allocation2 + $0x18] sm:$0xf] %vm224, %v357
        %406 = vst.msk [vmem:[#allocation2 + $0x1c] sm:$0xf] %vm224, %v358
        %407 = vst.msk [vmem:[#allocation2 + $0x20] sm:$0xf] %vm224, %v359
        %408 = vst.msk [vmem:[#allocation2 + $0x24] sm:$0xf] %vm224, %v360
        %409 = vst.msk [vmem:[#allocation2 + $0x28] sm:$0xf] %vm224, %v361
        %410 = vst.msk [vmem:[#allocation2 + $0x2c] sm:$0xf] %vm224, %v362
        %411 = vst.msk [vmem:[#allocation2 + $0x30] sm:$0xf] %vm224, %v363
        %412 = vst.msk [vmem:[#allocation2 + $0x34] sm:$0xf] %vm224, %v364
        %413 = vst.msk [vmem:[#allocation2 + $0x38] sm:$0xf] %vm224, %v365
        %414 = vst.msk [vmem:[#allocation2 + $0x3c] sm:$0xf] %vm224, %v366
        %415 = vst.msk [vmem:[#allocation2 + $0x40] sm:$0xf] %vm224, %v367
        %416 = vst.msk [vmem:[#allocation2 + $0x44] sm:$0xf] %vm224, %v368
        %417 = vst.msk [vmem:[#allocation2 + $0x48] sm:$0xf] %vm224, %v369
        %418 = vst.msk [vmem:[#allocation2 + $0x4c] sm:$0xf] %vm224, %v370
        %419 = vst.msk [vmem:[#allocation2 + $0x50] sm:$0xf] %vm224, %v371
        %420 = vst.msk [vmem:[#allocation2 + $0x54] sm:$0xf] %vm224, %v372
        %421 = vst.msk [vmem:[#allocation2 + $0x58] sm:$0xf] %vm224, %v373
        %422 = vst.msk [vmem:[#allocation2 + $0x5c] sm:$0xf] %vm224, %v374
        %423 = vst.msk [vmem:[#allocation2 + $0x60] sm:$0xf] %vm224, %v375
        %424 = vst.msk [vmem:[#allocation2 + $0x64] sm:$0xf] %vm224, %v376
        %425 = vst.msk [vmem:[#allocation2 + $0x68] sm:$0xf] %vm224, %v377
        %426 = vst.msk [vmem:[#allocation2 + $0x6c] sm:$0xf] %vm224, %v378
        %427 = vst.msk [vmem:[#allocation2 + $0x70] sm:$0xf] %vm224, %v379
        %428 = vst.msk [vmem:[#allocation2 + $0x74] sm:$0xf] %vm224, %v380
        %429 = vst.msk [vmem:[#allocation2 + $0x78] sm:$0xf] %vm224, %v381
        %430 = vst.msk [vmem:[#allocation2 + $0x7c] sm:$0xf] %vm224, %v382
        %431 = vst.msk [vmem:[#allocation2 + $0x80] sm:$0xf] %vm224, %v383
        %432 = vst.msk [vmem:[#allocation2 + $0x84] sm:$0xf] %vm224, %v384
        %433 = vst.msk [vmem:[#allocation2 + $0x88] sm:$0xf] %vm224, %v385
        %434 = vst.msk [vmem:[#allocation2 + $0x8c] sm:$0xf] %vm224, %v386
        %435 = vst.msk [vmem:[#allocation2 + $0x90] sm:$0xf] %vm224, %v387
        %436 = vst.msk [vmem:[#allocation2 + $0x94] sm:$0xf] %vm224, %v388
        %437 = vst.msk [vmem:[#allocation2 + $0x98] sm:$0xf] %vm224, %v389
        %438 = vst.msk [vmem:[#allocation2 + $0x9c] sm:$0xf] %vm224, %v390
        %439 = vst.msk [vmem:[#allocation2 + $0xa0] sm:$0xf] %vm224, %v391
        %440 = vst.msk [vmem:[#allocation2 + $0xa4] sm:$0xf] %vm224, %v392
        %441 = vst.msk [vmem:[#allocation2 + $0xa8] sm:$0xf] %vm224, %v393
        %442 = vst.msk [vmem:[#allocation2 + $0xac] sm:$0xf] %vm224, %v394
        %443 = vst.msk [vmem:[#allocation2 + $0xb0] sm:$0xf] %vm224, %v395
        %444 = vst.msk [vmem:[#allocation2 + $0xb4] sm:$0xf] %vm224, %v396
        %445 = vst.msk [vmem:[#allocation2 + $0xb8] sm:$0xf] %vm224, %v397
        %446 = vst.msk [vmem:[#allocation2 + $0xbc] sm:$0xf] %vm224, %v398
        %447 = vst.msk [vmem:[#allocation2 + $0xc0] sm:$0xf] %vm224, %v399
        %448 = vst.msk [vmem:[#allocation2 + $0xc4] sm:$0xf] %vm224, %v400
        %449 = vst.msk [vmem:[#allocation2 + $0xc8] sm:$0xf] %vm224, %v401
        %450 = vst.msk [vmem:[#allocation2 + $0xcc] sm:$0xf] %vm224, %v402
        %v451 = vld [vmem:[#allocation2 + $0x4] sm:$0xf]
        %v452 = vld [vmem:[#allocation2 + $0x8] sm:$0xf]
        %v453 = vld [vmem:[#allocation2 + $0xc] sm:$0xf]
        %v454 = vld [vmem:[#allocation2 + $0x10] sm:$0xf]
        %v455 = vld [vmem:[#allocation2 + $0x14] sm:$0xf]
        %v456 = vld [vmem:[#allocation2 + $0x18] sm:$0xf]
        %v457 = vld [vmem:[#allocation2 + $0x1c] sm:$0xf]
        %v458 = vld [vmem:[#allocation2 + $0x20] sm:$0xf]
        %v459 = vld [vmem:[#allocation2 + $0x24] sm:$0xf]
        %v460 = vld [vmem:[#allocation2 + $0x28] sm:$0xf]
        %v461 = vld [vmem:[#allocation2 + $0x2c] sm:$0xf]
        %v462 = vld [vmem:[#allocation2 + $0x30] sm:$0xf]
        %v463 = vld [vmem:[#allocation2 + $0x34] sm:$0xf]
        %v464 = vld [vmem:[#allocation2 + $0x38] sm:$0xf]
        %v465 = vld [vmem:[#allocation2 + $0x3c] sm:$0xf]
        %v466 = vld [vmem:[#allocation2 + $0x40] sm:$0xf]
        %v467 = vld [vmem:[#allocation2 + $0x44] sm:$0xf]
        %v468 = vld [vmem:[#allocation2 + $0x48] sm:$0xf]
        %v469 = vld [vmem:[#allocation2 + $0x4c] sm:$0xf]
        %v470 = vld [vmem:[#allocation2 + $0x50] sm:$0xf]
        %v471 = vld [vmem:[#allocation2 + $0x54] sm:$0xf]
        %v472 = vld [vmem:[#allocation2 + $0x58] sm:$0xf]
        %v473 = vld [vmem:[#allocation2 + $0x5c] sm:$0xf]
        %v474 = vld [vmem:[#allocation2 + $0x60] sm:$0xf]
        %v475 = vld [vmem:[#allocation2 + $0x64] sm:$0xf]
        %v476 = vld [vmem:[#allocation2 + $0x68] sm:$0xf]
        %v477 = vld [vmem:[#allocation2 + $0x6c] sm:$0xf]
        %v478 = vld [vmem:[#allocation2 + $0x70] sm:$0xf]
        %v479 = vld [vmem:[#allocation2 + $0x74] sm:$0xf]
        %v480 = vld [vmem:[#allocation2 + $0x78] sm:$0xf]
        %v481 = vld [vmem:[#allocation2 + $0x7c] sm:$0xf]
        %v482 = vld [vmem:[#allocation2 + $0x80] sm:$0xf]
        %v483 = vld [vmem:[#allocation2 + $0x84] sm:$0xf]
        %v484 = vld [vmem:[#allocation2 + $0x88] sm:$0xf]
        %v485 = vld [vmem:[#allocation2 + $0x8c] sm:$0xf]
        %v486 = vld [vmem:[#allocation2 + $0x90] sm:$0xf]
        %v487 = vld [vmem:[#allocation2 + $0x94] sm:$0xf]
        %v488 = vld [vmem:[#allocation2 + $0x98] sm:$0xf]
        %v489 = vld [vmem:[#allocation2 + $0x9c] sm:$0xf]
        %v490 = vld [vmem:[#allocation2 + $0xa0] sm:$0xf]
        %v491 = vld [vmem:[#allocation2 + $0xa4] sm:$0xf]
        %v492 = vld [vmem:[#allocation2 + $0xa8] sm:$0xf]
        %v493 = vld [vmem:[#allocation2 + $0xac] sm:$0xf]
        %v494 = vld [vmem:[#allocation2 + $0xb0] sm:$0xf]
        %v495 = vld [vmem:[#allocation2 + $0xb4] sm:$0xf]
        %v496 = vld [vmem:[#allocation2 + $0xb8] sm:$0xf]
        %v497 = vld [vmem:[#allocation2 + $0xbc] sm:$0xf]
        %v498 = vld [vmem:[#allocation2 + $0xc0] sm:$0xf]
        %v499 = vld [vmem:[%s1] sm:$0xf]
        %v500 = vld [vmem:[#allocation2 + $0xc4] sm:$0x1]
        %s501 = scalar_lea.vmem %s1, 4
        %v502 = vld [vmem:[%s501] sm:$0xf]
        %v552 = vunpack.c.l.b16 %v451
        %v553 = vunpack.c.l.b16 %v452
        %v554 = vunpack.c.l.b16 %v453
        %v555 = vunpack.c.l.b16 %v454
        %v556 = vunpack.c.l.b16 %v455
        %v557 = vunpack.c.l.b16 %v456
        %v558 = vunpack.c.l.b16 %v457
        %v559 = vunpack.c.l.b16 %v458
        %v560 = vunpack.c.l.b16 %v459
        %v561 = vunpack.c.l.b16 %v460
        %v562 = vunpack.c.l.b16 %v461
        %v563 = vunpack.c.l.b16 %v462
        %v564 = vunpack.c.l.b16 %v463
        %v565 = vunpack.c.l.b16 %v464
        %v566 = vunpack.c.l.b16 %v465
        %v567 = vunpack.c.l.b16 %v466
        %v568 = vunpack.c.l.b16 %v467
        %v569 = vunpack.c.l.b16 %v468
        %v570 = vunpack.c.l.b16 %v469
        %v571 = vunpack.c.l.b16 %v470
        %v572 = vunpack.c.l.b16 %v471
        %v573 = vunpack.c.l.b16 %v472
        %v574 = vunpack.c.l.b16 %v473
        %v575 = vunpack.c.l.b16 %v474
        %v576 = vunpack.c.l.b16 %v475
        %v577 = vunpack.c.l.b16 %v476
        %v578 = vunpack.c.l.b16 %v477
        %v579 = vunpack.c.l.b16 %v478
        %v580 = vunpack.c.l.b16 %v479
        %v581 = vunpack.c.l.b16 %v480
        %v582 = vunpack.c.l.b16 %v481
        %v583 = vunpack.c.l.b16 %v482
        %v584 = vunpack.c.l.b16 %v483
        %v585 = vunpack.c.l.b16 %v484
        %v586 = vunpack.c.l.b16 %v485
        %v587 = vunpack.c.l.b16 %v486
        %v588 = vunpack.c.l.b16 %v487
        %v589 = vunpack.c.l.b16 %v488
        %v590 = vunpack.c.l.b16 %v489
        %v591 = vunpack.c.l.b16 %v490
        %v592 = vunpack.c.l.b16 %v491
        %v593 = vunpack.c.l.b16 %v492
        %v594 = vunpack.c.l.b16 %v493
        %v595 = vunpack.c.l.b16 %v494
        %v596 = vunpack.c.l.b16 %v495
        %v597 = vunpack.c.l.b16 %v496
        %v598 = vunpack.c.l.b16 %v497
        %v599 = vunpack.c.l.b16 %v498
        %v600 = vunpack.c.l.b16 %v500
        %v601 = vpack.c.b16 %v553, %v552
        %v602 = vpack.c.b16 %v555, %v554
        %v603 = vpack.c.b16 %v557, %v556
        %v604 = vpack.c.b16 %v559, %v558
        %v605 = vpack.c.b16 %v561, %v560
        %v606 = vpack.c.b16 %v563, %v562
        %v607 = vpack.c.b16 %v565, %v564
        %v608 = vpack.c.b16 %v567, %v566
        %v609 = vpack.c.b16 %v569, %v568
        %v610 = vpack.c.b16 %v571, %v570
        %v611 = vpack.c.b16 %v573, %v572
        %v612 = vpack.c.b16 %v575, %v574
        %v613 = vpack.c.b16 %v577, %v576
        %v614 = vpack.c.b16 %v579, %v578
        %v615 = vpack.c.b16 %v581, %v580
        %v616 = vpack.c.b16 %v583, %v582
        %v617 = vpack.c.b16 %v585, %v584
        %v618 = vpack.c.b16 %v587, %v586
        %v619 = vpack.c.b16 %v589, %v588
        %v620 = vpack.c.b16 %v591, %v590
        %v621 = vpack.c.b16 %v593, %v592
        %v622 = vpack.c.b16 %v595, %v594
        %v623 = vpack.c.b16 %v597, %v596
        %v624 = vpack.c.b16 %v599, %v598
        %v625 = vpack.c.b16 %v600, %v600
        %vm626 = vsmask.f32 7424
        %v628 = vshrl.u32 %v601, 16
        %v630 = vshll.u32 %v601, 16
        %v632 = vrot.slane %v630, 1
        %v633 = vor.u32 %v628, %v632
        %v635 = vshll.u32 %v602, 16
        %v637 = vrot.slane %v635, 1
        %v638 = vsel %vm626, %v633, %v637
        %v639 = vshrl.u32 %v602, 16
        %v641 = vor.u32 %v639, %v637
        %v643 = vshll.u32 %v603, 16
        %v645 = vrot.slane %v643, 1
        %v646 = vsel %vm626, %v641, %v645
        %v647 = vshrl.u32 %v603, 16
        %v649 = vor.u32 %v647, %v645
        %v651 = vshll.u32 %v604, 16
        %v653 = vrot.slane %v651, 1
        %v654 = vsel %vm626, %v649, %v653
        %v655 = vshrl.u32 %v604, 16
        %v657 = vor.u32 %v655, %v653
        %v659 = vshll.u32 %v605, 16
        %v661 = vrot.slane %v659, 1
        %v662 = vsel %vm626, %v657, %v661
        %v663 = vshrl.u32 %v605, 16
        %v665 = vor.u32 %v663, %v661
        %v667 = vshll.u32 %v606, 16
        %v669 = vrot.slane %v667, 1
        %v670 = vsel %vm626, %v665, %v669
        %v671 = vshrl.u32 %v606, 16
        %v673 = vor.u32 %v671, %v669
        %v675 = vshll.u32 %v607, 16
        %v677 = vrot.slane %v675, 1
        %v678 = vsel %vm626, %v673, %v677
        %v679 = vshrl.u32 %v607, 16
        %v681 = vor.u32 %v679, %v677
        %v683 = vshll.u32 %v608, 16
        %v685 = vrot.slane %v683, 1
        %v686 = vsel %vm626, %v681, %v685
        %v687 = vshrl.u32 %v608, 16
        %v689 = vor.u32 %v687, %v685
        %v691 = vshll.u32 %v609, 16
        %v693 = vrot.slane %v691, 1
        %v694 = vsel %vm626, %v689, %v693
        %v695 = vshrl.u32 %v609, 16
        %v697 = vor.u32 %v695, %v693
        %v699 = vshll.u32 %v610, 16
        %v701 = vrot.slane %v699, 1
        %v702 = vsel %vm626, %v697, %v701
        %v703 = vshrl.u32 %v610, 16
        %v705 = vor.u32 %v703, %v701
        %v707 = vshll.u32 %v611, 16
        %v709 = vrot.slane %v707, 1
        %v710 = vsel %vm626, %v705, %v709
        %v711 = vshrl.u32 %v611, 16
        %v713 = vor.u32 %v711, %v709
        %v715 = vshll.u32 %v612, 16
        %v717 = vrot.slane %v715, 1
        %v718 = vsel %vm626, %v713, %v717
        %v719 = vshrl.u32 %v612, 16
        %v721 = vor.u32 %v719, %v717
        %v723 = vshll.u32 %v613, 16
        %v725 = vrot.slane %v723, 1
        %v726 = vsel %vm626, %v721, %v725
        %v727 = vshrl.u32 %v613, 16
        %v729 = vor.u32 %v727, %v725
        %v731 = vshll.u32 %v614, 16
        %v733 = vrot.slane %v731, 1
        %v734 = vsel %vm626, %v729, %v733
        %v735 = vshrl.u32 %v614, 16
        %v737 = vor.u32 %v735, %v733
        %v739 = vshll.u32 %v615, 16
        %v741 = vrot.slane %v739, 1
        %v742 = vsel %vm626, %v737, %v741
        %v743 = vshrl.u32 %v615, 16
        %v745 = vor.u32 %v743, %v741
        %v747 = vshll.u32 %v616, 16
        %v749 = vrot.slane %v747, 1
        %v750 = vsel %vm626, %v745, %v749
        %v751 = vshrl.u32 %v616, 16
        %v753 = vor.u32 %v751, %v749
        %v755 = vshll.u32 %v617, 16
        %v757 = vrot.slane %v755, 1
        %v758 = vsel %vm626, %v753, %v757
        %v759 = vshrl.u32 %v617, 16
        %v761 = vor.u32 %v759, %v757
        %v763 = vshll.u32 %v618, 16
        %v765 = vrot.slane %v763, 1
        %v766 = vsel %vm626, %v761, %v765
        %v767 = vshrl.u32 %v618, 16
        %v769 = vor.u32 %v767, %v765
        %v771 = vshll.u32 %v619, 16
        %v773 = vrot.slane %v771, 1
        %v774 = vsel %vm626, %v769, %v773
        %v775 = vshrl.u32 %v619, 16
        %v777 = vor.u32 %v775, %v773
        %v779 = vshll.u32 %v620, 16
        %v781 = vrot.slane %v779, 1
        %v782 = vsel %vm626, %v777, %v781
        %v783 = vshrl.u32 %v620, 16
        %v785 = vor.u32 %v783, %v781
        %v787 = vshll.u32 %v621, 16
        %v789 = vrot.slane %v787, 1
        %v790 = vsel %vm626, %v785, %v789
        %v791 = vshrl.u32 %v621, 16
        %v793 = vor.u32 %v791, %v789
        %v795 = vshll.u32 %v622, 16
        %v797 = vrot.slane %v795, 1
        %v798 = vsel %vm626, %v793, %v797
        %v799 = vshrl.u32 %v622, 16
        %v801 = vor.u32 %v799, %v797
        %v803 = vshll.u32 %v623, 16
        %v805 = vrot.slane %v803, 1
        %v806 = vsel %vm626, %v801, %v805
        %v807 = vshrl.u32 %v623, 16
        %v809 = vor.u32 %v807, %v805
        %v811 = vshll.u32 %v624, 16
        %v813 = vrot.slane %v811, 1
        %v814 = vsel %vm626, %v809, %v813
        %v815 = vshrl.u32 %v624, 16
        %v817 = vor.u32 %v815, %v813
        %v819 = vshll.u32 %v625, 16
        %v821 = vrot.slane %v819, 1
        %v822 = vsel %vm626, %v817, %v821
        %vm823 = vcmask 31744
        %v825 = vsel %vm823, %v502, 0
        %v828 = vsel %vm823, %v638, 0
        %v831 = vsel %vm823, %v646, 0
        %v834 = vsel %vm823, %v654, 0
        %v837 = vsel %vm823, %v662, 0
        %v840 = vsel %vm823, %v670, 0
        %v843 = vsel %vm823, %v678, 0
        %v846 = vsel %vm823, %v686, 0
        %v849 = vsel %vm823, %v694, 0
        %v852 = vsel %vm823, %v702, 0
        %v855 = vsel %vm823, %v710, 0
        %v858 = vsel %vm823, %v718, 0
        %v861 = vsel %vm823, %v726, 0
        %v864 = vsel %vm823, %v734, 0
        %v867 = vsel %vm823, %v742, 0
        %v870 = vsel %vm823, %v750, 0
        %v873 = vsel %vm823, %v758, 0
        %v876 = vsel %vm823, %v766, 0
        %v879 = vsel %vm823, %v774, 0
        %v882 = vsel %vm823, %v782, 0
        %v885 = vsel %vm823, %v790, 0
        %v888 = vsel %vm823, %v798, 0
        %v891 = vsel %vm823, %v806, 0
        %v894 = vsel %vm823, %v814, 0
        %v897 = vsel %vm823, %v822, 0
        %899 = vmatpush.bf16.xpose.msra.mxu0 %v849
        %900 = vmatpush.bf16.xpose.msra.mxu0 %v846
        %901 = vmatpush.bf16.xpose.msra.mxu0 %v843
        %902 = vmatpush.bf16.xpose.msra.mxu0 %v840
        %903 = vmatpush.bf16.xpose.msra.mxu0 %v837
        %904 = vmatpush.bf16.xpose.msra.mxu0 %v834
        %905 = vmatpush.bf16.xpose.msra.mxu0 %v831
        %906 = vmatpush.bf16.xpose.msra.mxu0 %v828
        %907 = vmatmul.bf16.gmra.mxu0 %v825
        %v908 = vpop.f32.mrf.mxu0
        %v909 = vadd.f32 0.0, %v908
        %v910 = vpop.f32.mrf.mxu0
        %911 = vdwg.mxu0
        %912 = vmatpush.bf16.xpose.msra.mxu0 %v873
        %913 = vmatpush.bf16.xpose.msra.mxu0 %v870
        %914 = vmatpush.bf16.xpose.msra.mxu0 %v867
        %915 = vmatpush.bf16.xpose.msra.mxu0 %v864
        %916 = vmatpush.bf16.xpose.msra.mxu0 %v861
        %917 = vmatpush.bf16.xpose.msra.mxu0 %v858
        %918 = vmatpush.bf16.xpose.msra.mxu0 %v855
        %919 = vmatpush.bf16.xpose.msra.mxu0 %v852
        %920 = vmatmul.bf16.gmra.mxu0 %v825
        %v921 = vpop.f32.mrf.mxu0
        %v922 = vadd.f32 0.0, %v921
        %v923 = vpop.f32.mrf.mxu0
        %924 = vdwg.mxu0
        %925 = vmatpush.bf16.xpose.msra.mxu0 %v897
        %926 = vmatpush.bf16.xpose.msra.mxu0 %v894
        %927 = vmatpush.bf16.xpose.msra.mxu0 %v891
        %928 = vmatpush.bf16.xpose.msra.mxu0 %v888
        %929 = vmatpush.bf16.xpose.msra.mxu0 %v885
        %930 = vmatpush.bf16.xpose.msra.mxu0 %v882
        %931 = vmatpush.bf16.xpose.msra.mxu0 %v879
        %932 = vmatpush.bf16.xpose.msra.mxu0 %v876
        %933 = vmatmul.bf16.gmra.mxu0 %v825
        %v934 = vpop.f32.mrf.mxu0
        %v935 = vadd.f32 0.0, %v934
        %v936 = vpop.f32.mrf.mxu0
        %937 = vdwg.mxu0
        %v939 = vsel %vm823, %v499, 0
        %v941 = vsel %vm823, %v601, 0
        %v943 = vsel %vm823, %v602, 0
        %v945 = vsel %vm823, %v603, 0
        %v947 = vsel %vm823, %v604, 0
        %v949 = vsel %vm823, %v605, 0
        %v951 = vsel %vm823, %v606, 0
        %v953 = vsel %vm823, %v607, 0
        %v955 = vsel %vm823, %v608, 0
        %v957 = vsel %vm823, %v609, 0
        %v959 = vsel %vm823, %v610, 0
        %v961 = vsel %vm823, %v611, 0
        %v963 = vsel %vm823, %v612, 0
        %v965 = vsel %vm823, %v613, 0
        %v967 = vsel %vm823, %v614, 0
        %v969 = vsel %vm823, %v615, 0
        %v971 = vsel %vm823, %v616, 0
        %v973 = vsel %vm823, %v617, 0
        %v975 = vsel %vm823, %v618, 0
        %v977 = vsel %vm823, %v619, 0
        %v979 = vsel %vm823, %v620, 0
        %v981 = vsel %vm823, %v621, 0
        %v983 = vsel %vm823, %v622, 0
        %v985 = vsel %vm823, %v623, 0
        %v987 = vsel %vm823, %v624, 0
        %989 = vmatpush.bf16.xpose.msra.mxu0 %v955
        %990 = vmatpush.bf16.xpose.msra.mxu0 %v953
        %991 = vmatpush.bf16.xpose.msra.mxu0 %v951
        %992 = vmatpush.bf16.xpose.msra.mxu0 %v949
        %993 = vmatpush.bf16.xpose.msra.mxu0 %v947
        %994 = vmatpush.bf16.xpose.msra.mxu0 %v945
        %995 = vmatpush.bf16.xpose.msra.mxu0 %v943
        %996 = vmatpush.bf16.xpose.msra.mxu0 %v941
        %997 = vmatmul.bf16.gmra.mxu0 %v939
        %v998 = vpop.f32.mrf.mxu0
        %v999 = vadd.f32 %v909, %v998
        %v1000 = vpop.f32.mrf.mxu0
        %1001 = vdwg.mxu0
        %1002 = vmatpush.bf16.xpose.msra.mxu0 %v971
        %1003 = vmatpush.bf16.xpose.msra.mxu0 %v969
        %1004 = vmatpush.bf16.xpose.msra.mxu0 %v967
        %1005 = vmatpush.bf16.xpose.msra.mxu0 %v965
        %1006 = vmatpush.bf16.xpose.msra.mxu0 %v963
        %1007 = vmatpush.bf16.xpose.msra.mxu0 %v961
        %1008 = vmatpush.bf16.xpose.msra.mxu0 %v959
        %1009 = vmatpush.bf16.xpose.msra.mxu0 %v957
        %1010 = vmatmul.bf16.gmra.mxu0 %v939
        %v1011 = vpop.f32.mrf.mxu0
        %v1012 = vadd.f32 %v922, %v1011
        %v1013 = vpop.f32.mrf.mxu0
        %1014 = vdwg.mxu0
        %1015 = vmatpush.bf16.xpose.msra.mxu0 %v987
        %1016 = vmatpush.bf16.xpose.msra.mxu0 %v985
        %1017 = vmatpush.bf16.xpose.msra.mxu0 %v983
        %1018 = vmatpush.bf16.xpose.msra.mxu0 %v981
        %1019 = vmatpush.bf16.xpose.msra.mxu0 %v979
        %1020 = vmatpush.bf16.xpose.msra.mxu0 %v977
        %1021 = vmatpush.bf16.xpose.msra.mxu0 %v975
        %1022 = vmatpush.bf16.xpose.msra.mxu0 %v973
        %1023 = vmatmul.bf16.gmra.mxu0 %v939
        %v1024 = vpop.f32.mrf.mxu0
        %v1025 = vadd.f32 %v935, %v1024
        %v1026 = vpop.f32.mrf.mxu0
        %1027 = vdwg.mxu0
        %v1028 = vld [vmem:[#allocation2 + $0x4] sm:$0xe]
        %s1029 = scalar_lea.vmem %s1, 8
        %v1030 = vld [vmem:[%s1029] sm:$0xf]
        %v1032 = vunpack.c.l.b16 %v1028
        %v1033 = vpack.c.b16 %v553, %v1032
        %vm1034 = vcmask 1046528
        %v1035 = vrot.slane %v1033, 1
        %v1036 = vrot.slane %v602, 1
        %v1037 = vsel %vm1034, %v1035, %v1036
        %v1038 = vrot.slane %v603, 1
        %v1039 = vsel %vm1034, %v1036, %v1038
        %v1040 = vrot.slane %v604, 1
        %v1041 = vsel %vm1034, %v1038, %v1040
        %v1042 = vrot.slane %v605, 1
        %v1043 = vsel %vm1034, %v1040, %v1042
        %v1044 = vrot.slane %v606, 1
        %v1045 = vsel %vm1034, %v1042, %v1044
        %v1046 = vrot.slane %v607, 1
        %v1047 = vsel %vm1034, %v1044, %v1046
        %v1048 = vrot.slane %v608, 1
        %v1049 = vsel %vm1034, %v1046, %v1048
        %v1050 = vrot.slane %v609, 1
        %v1051 = vsel %vm1034, %v1048, %v1050
        %v1052 = vrot.slane %v610, 1
        %v1053 = vsel %vm1034, %v1050, %v1052
        %v1054 = vrot.slane %v611, 1
        %v1055 = vsel %vm1034, %v1052, %v1054
        %v1056 = vrot.slane %v612, 1
        %v1057 = vsel %vm1034, %v1054, %v1056
        %v1058 = vrot.slane %v613, 1
        %v1059 = vsel %vm1034, %v1056, %v1058
        %v1060 = vrot.slane %v614, 1
        %v1061 = vsel %vm1034, %v1058, %v1060
        %v1062 = vrot.slane %v615, 1
        %v1063 = vsel %vm1034, %v1060, %v1062
        %v1064 = vrot.slane %v616, 1
        %v1065 = vsel %vm1034, %v1062, %v1064
        %v1066 = vrot.slane %v617, 1
        %v1067 = vsel %vm1034, %v1064, %v1066
        %v1068 = vrot.slane %v618, 1
        %v1069 = vsel %vm1034, %v1066, %v1068
        %v1070 = vrot.slane %v619, 1
        %v1071 = vsel %vm1034, %v1068, %v1070
        %v1072 = vrot.slane %v620, 1
        %v1073 = vsel %vm1034, %v1070, %v1072
        %v1074 = vrot.slane %v621, 1
        %v1075 = vsel %vm1034, %v1072, %v1074
        %v1076 = vrot.slane %v622, 1
        %v1077 = vsel %vm1034, %v1074, %v1076
        %v1078 = vrot.slane %v623, 1
        %v1079 = vsel %vm1034, %v1076, %v1078
        %v1080 = vrot.slane %v624, 1
        %v1081 = vsel %vm1034, %v1078, %v1080
        %v1082 = vrot.slane %v625, 1
        %v1083 = vsel %vm1034, %v1080, %v1082
        %v1085 = vsel %vm823, %v1030, 0
        %v1088 = vsel %vm823, %v1037, 0
        %v1091 = vsel %vm823, %v1039, 0
        %v1094 = vsel %vm823, %v1041, 0
        %v1097 = vsel %vm823, %v1043, 0
        %v1100 = vsel %vm823, %v1045, 0
        %v1103 = vsel %vm823, %v1047, 0
        %v1106 = vsel %vm823, %v1049, 0
        %v1109 = vsel %vm823, %v1051, 0
        %v1112 = vsel %vm823, %v1053, 0
        %v1115 = vsel %vm823, %v1055, 0
        %v1118 = vsel %vm823, %v1057, 0
        %v1121 = vsel %vm823, %v1059, 0
        %v1124 = vsel %vm823, %v1061, 0
        %v1127 = vsel %vm823, %v1063, 0
        %v1130 = vsel %vm823, %v1065, 0
        %v1133 = vsel %vm823, %v1067, 0
        %v1136 = vsel %vm823, %v1069, 0
        %v1139 = vsel %vm823, %v1071, 0
        %v1142 = vsel %vm823, %v1073, 0
        %v1145 = vsel %vm823, %v1075, 0
        %v1148 = vsel %vm823, %v1077, 0
        %v1151 = vsel %vm823, %v1079, 0
        %v1154 = vsel %vm823, %v1081, 0
        %v1157 = vsel %vm823, %v1083, 0
        %1159 = vmatpush.bf16.xpose.msra.mxu0 %v1109
        %1160 = vmatpush.bf16.xpose.msra.mxu0 %v1106
        %1161 = vmatpush.bf16.xpose.msra.mxu0 %v1103
        %1162 = vmatpush.bf16.xpose.msra.mxu0 %v1100
        %1163 = vmatpush.bf16.xpose.msra.mxu0 %v1097
        %1164 = vmatpush.bf16.xpose.msra.mxu0 %v1094
        %1165 = vmatpush.bf16.xpose.msra.mxu0 %v1091
        %1166 = vmatpush.bf16.xpose.msra.mxu0 %v1088
        %1167 = vmatmul.bf16.gmra.mxu0 %v1085
        %v1168 = vpop.f32.mrf.mxu0
        %v1169 = vadd.f32 0.0, %v1168
        %v1170 = vpop.f32.mrf.mxu0
        %1171 = vdwg.mxu0
        %1172 = vmatpush.bf16.xpose.msra.mxu0 %v1133
        %1173 = vmatpush.bf16.xpose.msra.mxu0 %v1130
        %1174 = vmatpush.bf16.xpose.msra.mxu0 %v1127
        %1175 = vmatpush.bf16.xpose.msra.mxu0 %v1124
        %1176 = vmatpush.bf16.xpose.msra.mxu0 %v1121
        %1177 = vmatpush.bf16.xpose.msra.mxu0 %v1118
        %1178 = vmatpush.bf16.xpose.msra.mxu0 %v1115
        %1179 = vmatpush.bf16.xpose.msra.mxu0 %v1112
        %1180 = vmatmul.bf16.gmra.mxu0 %v1085
        %v1181 = vpop.f32.mrf.mxu0
        %v1182 = vadd.f32 0.0, %v1181
        %v1183 = vpop.f32.mrf.mxu0
        %1184 = vdwg.mxu0
        %1185 = vmatpush.bf16.xpose.msra.mxu0 %v1157
        %1186 = vmatpush.bf16.xpose.msra.mxu0 %v1154
        %1187 = vmatpush.bf16.xpose.msra.mxu0 %v1151
        %1188 = vmatpush.bf16.xpose.msra.mxu0 %v1148
        %1189 = vmatpush.bf16.xpose.msra.mxu0 %v1145
        %1190 = vmatpush.bf16.xpose.msra.mxu0 %v1142
        %1191 = vmatpush.bf16.xpose.msra.mxu0 %v1139
        %1192 = vmatpush.bf16.xpose.msra.mxu0 %v1136
        %1193 = vmatmul.bf16.gmra.mxu0 %v1085
        %v1194 = vpop.f32.mrf.mxu0
        %v1195 = vadd.f32 0.0, %v1194
        %v1196 = vpop.f32.mrf.mxu0
        %1197 = vdwg.mxu0
        %v1198 = vadd.f32 %v999, %v1169
        %v1199 = vadd.f32 %v1012, %v1182
        %v1200 = vadd.f32 %v1025, %v1195
        %v1201 = vld [vmem:[#allocation2 + $0x10] sm:$0xf]
        %v1202 = vld [vmem:[#allocation2 + $0x14] sm:$0xf]
        %v1203 = vld [vmem:[#allocation2 + $0x18] sm:$0xf]
        %v1204 = vld [vmem:[#allocation2 + $0x1c] sm:$0xf]
        %v1205 = vld [vmem:[#allocation2 + $0x20] sm:$0xf]
        %v1206 = vld [vmem:[#allocation2 + $0x24] sm:$0xf]
        %v1207 = vld [vmem:[#allocation2 + $0x28] sm:$0xf]
        %v1208 = vld [vmem:[#allocation2 + $0x2c] sm:$0xf]
        %v1209 = vld [vmem:[#allocation2 + $0x30] sm:$0xf]
        %v1210 = vld [vmem:[#allocation2 + $0x34] sm:$0xf]
        %v1211 = vld [vmem:[#allocation2 + $0x38] sm:$0xf]
        %v1212 = vld [vmem:[#allocation2 + $0x3c] sm:$0xf]
        %v1213 = vld [vmem:[#allocation2 + $0x40] sm:$0xf]
        %v1214 = vld [vmem:[#allocation2 + $0x44] sm:$0xf]
        %v1215 = vld [vmem:[#allocation2 + $0x48] sm:$0xf]
        %v1216 = vld [vmem:[#allocation2 + $0x4c] sm:$0xf]
        %v1217 = vld [vmem:[#allocation2 + $0x50] sm:$0xf]
        %v1218 = vld [vmem:[#allocation2 + $0x54] sm:$0xf]
        %v1219 = vld [vmem:[#allocation2 + $0x58] sm:$0xf]
        %v1220 = vld [vmem:[#allocation2 + $0x5c] sm:$0xf]
        %v1221 = vld [vmem:[#allocation2 + $0x60] sm:$0xf]
        %v1222 = vld [vmem:[#allocation2 + $0x64] sm:$0xf]
        %v1223 = vld [vmem:[#allocation2 + $0x68] sm:$0xf]
        %v1224 = vld [vmem:[#allocation2 + $0x6c] sm:$0xf]
        %v1225 = vld [vmem:[#allocation2 + $0x70] sm:$0xf]
        %v1226 = vld [vmem:[#allocation2 + $0x74] sm:$0xf]
        %v1227 = vld [vmem:[#allocation2 + $0x78] sm:$0xf]
        %v1228 = vld [vmem:[#allocation2 + $0x7c] sm:$0xf]
        %v1229 = vld [vmem:[#allocation2 + $0x80] sm:$0xf]
        %v1230 = vld [vmem:[#allocation2 + $0x84] sm:$0xf]
        %v1231 = vld [vmem:[#allocation2 + $0x88] sm:$0xf]
        %v1232 = vld [vmem:[#allocation2 + $0x8c] sm:$0xf]
        %v1233 = vld [vmem:[#allocation2 + $0x90] sm:$0xf]
        %v1234 = vld [vmem:[#allocation2 + $0x94] sm:$0xf]
        %v1235 = vld [vmem:[#allocation2 + $0x98] sm:$0xf]
        %v1236 = vld [vmem:[#allocation2 + $0x9c] sm:$0xf]
        %v1237 = vld [vmem:[#allocation2 + $0xa0] sm:$0xf]
        %v1238 = vld [vmem:[#allocation2 + $0xa4] sm:$0xf]
        %v1239 = vld [vmem:[#allocation2 + $0xa8] sm:$0xf]
        %v1240 = vld [vmem:[#allocation2 + $0xac] sm:$0xf]
        %v1241 = vld [vmem:[#allocation2 + $0xb0] sm:$0xf]
        %v1242 = vld [vmem:[#allocation2 + $0xb4] sm:$0xf]
        %v1243 = vld [vmem:[#allocation2 + $0xb8] sm:$0xf]
        %v1244 = vld [vmem:[#allocation2 + $0xbc] sm:$0xf]
        %v1245 = vld [vmem:[#allocation2 + $0xc0] sm:$0xf]
        %v1246 = vld [vmem:[#allocation2 + $0xc4] sm:$0xf]
        %v1247 = vld [vmem:[#allocation2 + $0xc8] sm:$0xf]
        %v1248 = vld [vmem:[#allocation2 + $0xcc] sm:$0xf]
        %s1249 = scalar_lea.vmem %s1, 12
        %v1250 = vld [vmem:[%s1249] sm:$0xf]
        %v1299 = vunpack.c.l.b16 %v1201
        %v1300 = vunpack.c.l.b16 %v1202
        %v1301 = vunpack.c.l.b16 %v1203
        %v1302 = vunpack.c.l.b16 %v1204
        %v1303 = vunpack.c.l.b16 %v1205
        %v1304 = vunpack.c.l.b16 %v1206
        %v1305 = vunpack.c.l.b16 %v1207
        %v1306 = vunpack.c.l.b16 %v1208
        %v1307 = vunpack.c.l.b16 %v1209
        %v1308 = vunpack.c.l.b16 %v1210
        %v1309 = vunpack.c.l.b16 %v1211
        %v1310 = vunpack.c.l.b16 %v1212
        %v1311 = vunpack.c.l.b16 %v1213
        %v1312 = vunpack.c.l.b16 %v1214
        %v1313 = vunpack.c.l.b16 %v1215
        %v1314 = vunpack.c.l.b16 %v1216
        %v1315 = vunpack.c.l.b16 %v1217
        %v1316 = vunpack.c.l.b16 %v1218
        %v1317 = vunpack.c.l.b16 %v1219
        %v1318 = vunpack.c.l.b16 %v1220
        %v1319 = vunpack.c.l.b16 %v1221
        %v1320 = vunpack.c.l.b16 %v1222
        %v1321 = vunpack.c.l.b16 %v1223
        %v1322 = vunpack.c.l.b16 %v1224
        %v1323 = vunpack.c.l.b16 %v1225
        %v1324 = vunpack.c.l.b16 %v1226
        %v1325 = vunpack.c.l.b16 %v1227
        %v1326 = vunpack.c.l.b16 %v1228
        %v1327 = vunpack.c.l.b16 %v1229
        %v1328 = vunpack.c.l.b16 %v1230
        %v1329 = vunpack.c.l.b16 %v1231
        %v1330 = vunpack.c.l.b16 %v1232
        %v1331 = vunpack.c.l.b16 %v1233
        %v1332 = vunpack.c.l.b16 %v1234
        %v1333 = vunpack.c.l.b16 %v1235
        %v1334 = vunpack.c.l.b16 %v1236
        %v1335 = vunpack.c.l.b16 %v1237
        %v1336 = vunpack.c.l.b16 %v1238
        %v1337 = vunpack.c.l.b16 %v1239
        %v1338 = vunpack.c.l.b16 %v1240
        %v1339 = vunpack.c.l.b16 %v1241
        %v1340 = vunpack.c.l.b16 %v1242
        %v1341 = vunpack.c.l.b16 %v1243
        %v1342 = vunpack.c.l.b16 %v1244
        %v1343 = vunpack.c.l.b16 %v1245
        %v1344 = vunpack.c.l.b16 %v1246
        %v1345 = vunpack.c.l.b16 %v1247
        %v1346 = vunpack.c.l.b16 %v1248
        %v1347 = vpack.c.b16 %v1300, %v1299
        %v1348 = vpack.c.b16 %v1302, %v1301
        %v1349 = vpack.c.b16 %v1304, %v1303
        %v1350 = vpack.c.b16 %v1306, %v1305
        %v1351 = vpack.c.b16 %v1308, %v1307
        %v1352 = vpack.c.b16 %v1310, %v1309
        %v1353 = vpack.c.b16 %v1312, %v1311
        %v1354 = vpack.c.b16 %v1314, %v1313
        %v1355 = vpack.c.b16 %v1316, %v1315
        %v1356 = vpack.c.b16 %v1318, %v1317
        %v1357 = vpack.c.b16 %v1320, %v1319
        %v1358 = vpack.c.b16 %v1322, %v1321
        %v1359 = vpack.c.b16 %v1324, %v1323
        %v1360 = vpack.c.b16 %v1326, %v1325
        %v1361 = vpack.c.b16 %v1328, %v1327
        %v1362 = vpack.c.b16 %v1330, %v1329
        %v1363 = vpack.c.b16 %v1332, %v1331
        %v1364 = vpack.c.b16 %v1334, %v1333
        %v1365 = vpack.c.b16 %v1336, %v1335
        %v1366 = vpack.c.b16 %v1338, %v1337
        %v1367 = vpack.c.b16 %v1340, %v1339
        %v1368 = vpack.c.b16 %v1342, %v1341
        %v1369 = vpack.c.b16 %v1344, %v1343
        %v1370 = vpack.c.b16 %v1346, %v1345
        %v1372 = vsel %vm823, %v1250, 0
        %v1375 = vsel %vm823, %v1347, 0
        %v1378 = vsel %vm823, %v1348, 0
        %v1381 = vsel %vm823, %v1349, 0
        %v1384 = vsel %vm823, %v1350, 0
        %v1387 = vsel %vm823, %v1351, 0
        %v1390 = vsel %vm823, %v1352, 0
        %v1393 = vsel %vm823, %v1353, 0
        %v1396 = vsel %vm823, %v1354, 0
        %v1399 = vsel %vm823, %v1355, 0
        %v1402 = vsel %vm823, %v1356, 0
        %v1405 = vsel %vm823, %v1357, 0
        %v1408 = vsel %vm823, %v1358, 0
        %v1411 = vsel %vm823, %v1359, 0
        %v1414 = vsel %vm823, %v1360, 0
        %v1417 = vsel %vm823, %v1361, 0
        %v1420 = vsel %vm823, %v1362, 0
        %v1423 = vsel %vm823, %v1363, 0
        %v1426 = vsel %vm823, %v1364, 0
        %v1429 = vsel %vm823, %v1365, 0
        %v1432 = vsel %vm823, %v1366, 0
        %v1435 = vsel %vm823, %v1367, 0
        %v1438 = vsel %vm823, %v1368, 0
        %v1441 = vsel %vm823, %v1369, 0
        %v1444 = vsel %vm823, %v1370, 0
        %1446 = vmatpush.bf16.xpose.msra.mxu0 %v1396
        %1447 = vmatpush.bf16.xpose.msra.mxu0 %v1393
        %1448 = vmatpush.bf16.xpose.msra.mxu0 %v1390
        %1449 = vmatpush.bf16.xpose.msra.mxu0 %v1387
        %1450 = vmatpush.bf16.xpose.msra.mxu0 %v1384
        %1451 = vmatpush.bf16.xpose.msra.mxu0 %v1381
        %1452 = vmatpush.bf16.xpose.msra.mxu0 %v1378
        %1453 = vmatpush.bf16.xpose.msra.mxu0 %v1375
        %1454 = vmatmul.bf16.gmra.mxu0 %v1372
        %v1455 = vpop.f32.mrf.mxu0
        %v1456 = vadd.f32 0.0, %v1455
        %v1457 = vpop.f32.mrf.mxu0
        %1458 = vdwg.mxu0
        %1459 = vmatpush.bf16.xpose.msra.mxu0 %v1420
        %1460 = vmatpush.bf16.xpose.msra.mxu0 %v1417
        %1461 = vmatpush.bf16.xpose.msra.mxu0 %v1414
        %1462 = vmatpush.bf16.xpose.msra.mxu0 %v1411
        %1463 = vmatpush.bf16.xpose.msra.mxu0 %v1408
        %1464 = vmatpush.bf16.xpose.msra.mxu0 %v1405
        %1465 = vmatpush.bf16.xpose.msra.mxu0 %v1402
        %1466 = vmatpush.bf16.xpose.msra.mxu0 %v1399
        %1467 = vmatmul.bf16.gmra.mxu0 %v1372
        %v1468 = vpop.f32.mrf.mxu0
        %v1469 = vadd.f32 0.0, %v1468
        %v1470 = vpop.f32.mrf.mxu0
        %1471 = vdwg.mxu0
        %1472 = vmatpush.bf16.xpose.msra.mxu0 %v1444
        %1473 = vmatpush.bf16.xpose.msra.mxu0 %v1441
        %1474 = vmatpush.bf16.xpose.msra.mxu0 %v1438
        %1475 = vmatpush.bf16.xpose.msra.mxu0 %v1435
        %1476 = vmatpush.bf16.xpose.msra.mxu0 %v1432
        %1477 = vmatpush.bf16.xpose.msra.mxu0 %v1429
        %1478 = vmatpush.bf16.xpose.msra.mxu0 %v1426
        %1479 = vmatpush.bf16.xpose.msra.mxu0 %v1423
        %1480 = vmatmul.bf16.gmra.mxu0 %v1372
        %v1481 = vpop.f32.mrf.mxu0
        %v1482 = vadd.f32 0.0, %v1481
        %v1483 = vpop.f32.mrf.mxu0
        %1484 = vdwg.mxu0
        %v1485 = vadd.f32 %v1198, %v1456
        %v1486 = vadd.f32 %v1199, %v1469
        %v1487 = vadd.f32 %v1200, %v1482
        %v1488 = vld [vmem:[#allocation2 + $0x10] sm:$0xf]
        %v1489 = vld [vmem:[#allocation2 + $0x14] sm:$0xf]
        %v1490 = vld [vmem:[#allocation2 + $0x18] sm:$0xf]
        %v1491 = vld [vmem:[#allocation2 + $0x1c] sm:$0xf]
        %v1492 = vld [vmem:[#allocation2 + $0x20] sm:$0xf]
        %v1493 = vld [vmem:[#allocation2 + $0x24] sm:$0xf]
        %v1494 = vld [vmem:[#allocation2 + $0x28] sm:$0xf]
        %v1495 = vld [vmem:[#allocation2 + $0x2c] sm:$0xf]
        %v1496 = vld [vmem:[#allocation2 + $0x30] sm:$0xf]
        %v1497 = vld [vmem:[#allocation2 + $0x34] sm:$0xf]
        %v1498 = vld [vmem:[#allocation2 + $0x38] sm:$0xf]
        %v1499 = vld [vmem:[#allocation2 + $0x3c] sm:$0xf]
        %v1500 = vld [vmem:[#allocation2 + $0x40] sm:$0xf]
        %v1501 = vld [vmem:[#allocation2 + $0x44] sm:$0xf]
        %v1502 = vld [vmem:[#allocation2 + $0x48] sm:$0xf]
        %v1503 = vld [vmem:[#allocation2 + $0x4c] sm:$0xf]
        %v1504 = vld [vmem:[#allocation2 + $0x50] sm:$0xf]
        %v1505 = vld [vmem:[#allocation2 + $0x54] sm:$0xf]
        %v1506 = vld [vmem:[#allocation2 + $0x58] sm:$0xf]
        %v1507 = vld [vmem:[#allocation2 + $0x5c] sm:$0xf]
        %v1508 = vld [vmem:[#allocation2 + $0x60] sm:$0xf]
        %v1509 = vld [vmem:[#allocation2 + $0x64] sm:$0xf]
        %v1510 = vld [vmem:[#allocation2 + $0x68] sm:$0xf]
        %v1511 = vld [vmem:[#allocation2 + $0x6c] sm:$0xf]
        %v1512 = vld [vmem:[#allocation2 + $0x70] sm:$0xf]
        %v1513 = vld [vmem:[#allocation2 + $0x74] sm:$0xf]
        %v1514 = vld [vmem:[#allocation2 + $0x78] sm:$0xf]
        %v1515 = vld [vmem:[#allocation2 + $0x7c] sm:$0xf]
        %v1516 = vld [vmem:[#allocation2 + $0x80] sm:$0xf]
        %v1517 = vld [vmem:[#allocation2 + $0x84] sm:$0xf]
        %v1518 = vld [vmem:[#allocation2 + $0x88] sm:$0xf]
        %v1519 = vld [vmem:[#allocation2 + $0x8c] sm:$0xf]
        %v1520 = vld [vmem:[#allocation2 + $0x90] sm:$0xf]
        %v1521 = vld [vmem:[#allocation2 + $0x94] sm:$0xf]
        %v1522 = vld [vmem:[#allocation2 + $0x98] sm:$0xf]
        %v1523 = vld [vmem:[#allocation2 + $0x9c] sm:$0xf]
        %v1524 = vld [vmem:[#allocation2 + $0xa0] sm:$0xf]
        %v1525 = vld [vmem:[#allocation2 + $0xa4] sm:$0xf]
        %v1526 = vld [vmem:[#allocation2 + $0xa8] sm:$0xf]
        %v1527 = vld [vmem:[#allocation2 + $0xac] sm:$0xf]
        %v1528 = vld [vmem:[#allocation2 + $0xb0] sm:$0xf]
        %v1529 = vld [vmem:[#allocation2 + $0xb4] sm:$0xf]
        %v1530 = vld [vmem:[#allocation2 + $0xb8] sm:$0xf]
        %v1531 = vld [vmem:[#allocation2 + $0xbc] sm:$0xf]
        %v1532 = vld [vmem:[#allocation2 + $0xc0] sm:$0xf]
        %v1533 = vld [vmem:[#allocation2 + $0xc4] sm:$0xf]
        %v1534 = vld [vmem:[#allocation2 + $0xc8] sm:$0xf]
        %v1535 = vld [vmem:[#allocation2 + $0xcc] sm:$0xf]
        %v1536 = vld [vmem:[#allocation2 + $0xd0] sm:$0x1]
        %s1537 = scalar_lea.vmem %s1, 16
        %v1538 = vld [vmem:[%s1537] sm:$0xf]
        %v1588 = vunpack.c.l.b16 %v1488
        %v1589 = vunpack.c.l.b16 %v1489
        %v1590 = vunpack.c.l.b16 %v1490
        %v1591 = vunpack.c.l.b16 %v1491
        %v1592 = vunpack.c.l.b16 %v1492
        %v1593 = vunpack.c.l.b16 %v1493
        %v1594 = vunpack.c.l.b16 %v1494
        %v1595 = vunpack.c.l.b16 %v1495
        %v1596 = vunpack.c.l.b16 %v1496
        %v1597 = vunpack.c.l.b16 %v1497
        %v1598 = vunpack.c.l.b16 %v1498
        %v1599 = vunpack.c.l.b16 %v1499
        %v1600 = vunpack.c.l.b16 %v1500
        %v1601 = vunpack.c.l.b16 %v1501
        %v1602 = vunpack.c.l.b16 %v1502
        %v1603 = vunpack.c.l.b16 %v1503
        %v1604 = vunpack.c.l.b16 %v1504
        %v1605 = vunpack.c.l.b16 %v1505
        %v1606 = vunpack.c.l.b16 %v1506
        %v1607 = vunpack.c.l.b16 %v1507
        %v1608 = vunpack.c.l.b16 %v1508
        %v1609 = vunpack.c.l.b16 %v1509
        %v1610 = vunpack.c.l.b16 %v1510
        %v1611 = vunpack.c.l.b16 %v1511
        %v1612 = vunpack.c.l.b16 %v1512
        %v1613 = vunpack.c.l.b16 %v1513
        %v1614 = vunpack.c.l.b16 %v1514
        %v1615 = vunpack.c.l.b16 %v1515
        %v1616 = vunpack.c.l.b16 %v1516
        %v1617 = vunpack.c.l.b16 %v1517
        %v1618 = vunpack.c.l.b16 %v1518
        %v1619 = vunpack.c.l.b16 %v1519
        %v1620 = vunpack.c.l.b16 %v1520
        %v1621 = vunpack.c.l.b16 %v1521
        %v1622 = vunpack.c.l.b16 %v1522
        %v1623 = vunpack.c.l.b16 %v1523
        %v1624 = vunpack.c.l.b16 %v1524
        %v1625 = vunpack.c.l.b16 %v1525
        %v1626 = vunpack.c.l.b16 %v1526
        %v1627 = vunpack.c.l.b16 %v1527
        %v1628 = vunpack.c.l.b16 %v1528
        %v1629 = vunpack.c.l.b16 %v1529
        %v1630 = vunpack.c.l.b16 %v1530
        %v1631 = vunpack.c.l.b16 %v1531
        %v1632 = vunpack.c.l.b16 %v1532
        %v1633 = vunpack.c.l.b16 %v1533
        %v1634 = vunpack.c.l.b16 %v1534
        %v1635 = vunpack.c.l.b16 %v1535
        %v1636 = vunpack.c.l.b16 %v1536
        %v1637 = vpack.c.b16 %v1589, %v1588
        %v1638 = vpack.c.b16 %v1591, %v1590
        %v1639 = vpack.c.b16 %v1593, %v1592
        %v1640 = vpack.c.b16 %v1595, %v1594
        %v1641 = vpack.c.b16 %v1597, %v1596
        %v1642 = vpack.c.b16 %v1599, %v1598
        %v1643 = vpack.c.b16 %v1601, %v1600
        %v1644 = vpack.c.b16 %v1603, %v1602
        %v1645 = vpack.c.b16 %v1605, %v1604
        %v1646 = vpack.c.b16 %v1607, %v1606
        %v1647 = vpack.c.b16 %v1609, %v1608
        %v1648 = vpack.c.b16 %v1611, %v1610
        %v1649 = vpack.c.b16 %v1613, %v1612
        %v1650 = vpack.c.b16 %v1615, %v1614
        %v1651 = vpack.c.b16 %v1617, %v1616
        %v1652 = vpack.c.b16 %v1619, %v1618
        %v1653 = vpack.c.b16 %v1621, %v1620
        %v1654 = vpack.c.b16 %v1623, %v1622
        %v1655 = vpack.c.b16 %v1625, %v1624
        %v1656 = vpack.c.b16 %v1627, %v1626
        %v1657 = vpack.c.b16 %v1629, %v1628
        %v1658 = vpack.c.b16 %v1631, %v1630
        %v1659 = vpack.c.b16 %v1633, %v1632
        %v1660 = vpack.c.b16 %v1635, %v1634
        %v1661 = vpack.c.b16 %v1636, %v1636
        %v1663 = vshrl.u32 %v1637, 16
        %v1665 = vshll.u32 %v1637, 16
        %v1667 = vrot.slane %v1665, 1
        %v1668 = vor.u32 %v1663, %v1667
        %v1670 = vshll.u32 %v1638, 16
        %v1672 = vrot.slane %v1670, 1
        %v1673 = vsel %vm626, %v1668, %v1672
        %v1674 = vshrl.u32 %v1638, 16
        %v1676 = vor.u32 %v1674, %v1672
        %v1678 = vshll.u32 %v1639, 16
        %v1680 = vrot.slane %v1678, 1
        %v1681 = vsel %vm626, %v1676, %v1680
        %v1682 = vshrl.u32 %v1639, 16
        %v1684 = vor.u32 %v1682, %v1680
        %v1686 = vshll.u32 %v1640, 16
        %v1688 = vrot.slane %v1686, 1
        %v1689 = vsel %vm626, %v1684, %v1688
        %v1690 = vshrl.u32 %v1640, 16
        %v1692 = vor.u32 %v1690, %v1688
        %v1694 = vshll.u32 %v1641, 16
        %v1696 = vrot.slane %v1694, 1
        %v1697 = vsel %vm626, %v1692, %v1696
        %v1698 = vshrl.u32 %v1641, 16
        %v1700 = vor.u32 %v1698, %v1696
        %v1702 = vshll.u32 %v1642, 16
        %v1704 = vrot.slane %v1702, 1
        %v1705 = vsel %vm626, %v1700, %v1704
        %v1706 = vshrl.u32 %v1642, 16
        %v1708 = vor.u32 %v1706, %v1704
        %v1710 = vshll.u32 %v1643, 16
        %v1712 = vrot.slane %v1710, 1
        %v1713 = vsel %vm626, %v1708, %v1712
        %v1714 = vshrl.u32 %v1643, 16
        %v1716 = vor.u32 %v1714, %v1712
        %v1718 = vshll.u32 %v1644, 16
        %v1720 = vrot.slane %v1718, 1
        %v1721 = vsel %vm626, %v1716, %v1720
        %v1722 = vshrl.u32 %v1644, 16
        %v1724 = vor.u32 %v1722, %v1720
        %v1726 = vshll.u32 %v1645, 16
        %v1728 = vrot.slane %v1726, 1
        %v1729 = vsel %vm626, %v1724, %v1728
        %v1730 = vshrl.u32 %v1645, 16
        %v1732 = vor.u32 %v1730, %v1728
        %v1734 = vshll.u32 %v1646, 16
        %v1736 = vrot.slane %v1734, 1
        %v1737 = vsel %vm626, %v1732, %v1736
        %v1738 = vshrl.u32 %v1646, 16
        %v1740 = vor.u32 %v1738, %v1736
        %v1742 = vshll.u32 %v1647, 16
        %v1744 = vrot.slane %v1742, 1
        %v1745 = vsel %vm626, %v1740, %v1744
        %v1746 = vshrl.u32 %v1647, 16
        %v1748 = vor.u32 %v1746, %v1744
        %v1750 = vshll.u32 %v1648, 16
        %v1752 = vrot.slane %v1750, 1
        %v1753 = vsel %vm626, %v1748, %v1752
        %v1754 = vshrl.u32 %v1648, 16
        %v1756 = vor.u32 %v1754, %v1752
        %v1758 = vshll.u32 %v1649, 16
        %v1760 = vrot.slane %v1758, 1
        %v1761 = vsel %vm626, %v1756, %v1760
        %v1762 = vshrl.u32 %v1649, 16
        %v1764 = vor.u32 %v1762, %v1760
        %v1766 = vshll.u32 %v1650, 16
        %v1768 = vrot.slane %v1766, 1
        %v1769 = vsel %vm626, %v1764, %v1768
        %v1770 = vshrl.u32 %v1650, 16
        %v1772 = vor.u32 %v1770, %v1768
        %v1774 = vshll.u32 %v1651, 16
        %v1776 = vrot.slane %v1774, 1
        %v1777 = vsel %vm626, %v1772, %v1776
        %v1778 = vshrl.u32 %v1651, 16
        %v1780 = vor.u32 %v1778, %v1776
        %v1782 = vshll.u32 %v1652, 16
        %v1784 = vrot.slane %v1782, 1
        %v1785 = vsel %vm626, %v1780, %v1784
        %v1786 = vshrl.u32 %v1652, 16
        %v1788 = vor.u32 %v1786, %v1784
        %v1790 = vshll.u32 %v1653, 16
        %v1792 = vrot.slane %v1790, 1
        %v1793 = vsel %vm626, %v1788, %v1792
        %v1794 = vshrl.u32 %v1653, 16
        %v1796 = vor.u32 %v1794, %v1792
        %v1798 = vshll.u32 %v1654, 16
        %v1800 = vrot.slane %v1798, 1
        %v1801 = vsel %vm626, %v1796, %v1800
        %v1802 = vshrl.u32 %v1654, 16
        %v1804 = vor.u32 %v1802, %v1800
        %v1806 = vshll.u32 %v1655, 16
        %v1808 = vrot.slane %v1806, 1
        %v1809 = vsel %vm626, %v1804, %v1808
        %v1810 = vshrl.u32 %v1655, 16
        %v1812 = vor.u32 %v1810, %v1808
        %v1814 = vshll.u32 %v1656, 16
        %v1816 = vrot.slane %v1814, 1
        %v1817 = vsel %vm626, %v1812, %v1816
        %v1818 = vshrl.u32 %v1656, 16
        %v1820 = vor.u32 %v1818, %v1816
        %v1822 = vshll.u32 %v1657, 16
        %v1824 = vrot.slane %v1822, 1
        %v1825 = vsel %vm626, %v1820, %v1824
        %v1826 = vshrl.u32 %v1657, 16
        %v1828 = vor.u32 %v1826, %v1824
        %v1830 = vshll.u32 %v1658, 16
        %v1832 = vrot.slane %v1830, 1
        %v1833 = vsel %vm626, %v1828, %v1832
        %v1834 = vshrl.u32 %v1658, 16
        %v1836 = vor.u32 %v1834, %v1832
        %v1838 = vshll.u32 %v1659, 16
        %v1840 = vrot.slane %v1838, 1
        %v1841 = vsel %vm626, %v1836, %v1840
        %v1842 = vshrl.u32 %v1659, 16
        %v1844 = vor.u32 %v1842, %v1840
        %v1846 = vshll.u32 %v1660, 16
        %v1848 = vrot.slane %v1846, 1
        %v1849 = vsel %vm626, %v1844, %v1848
        %v1850 = vshrl.u32 %v1660, 16
        %v1852 = vor.u32 %v1850, %v1848
        %v1854 = vshll.u32 %v1661, 16
        %v1856 = vrot.slane %v1854, 1
        %v1857 = vsel %vm626, %v1852, %v1856
        %v1859 = vsel %vm823, %v1538, 0
        %v1862 = vsel %vm823, %v1673, 0
        %v1865 = vsel %vm823, %v1681, 0
        %v1868 = vsel %vm823, %v1689, 0
        %v1871 = vsel %vm823, %v1697, 0
        %v1874 = vsel %vm823, %v1705, 0
        %v1877 = vsel %vm823, %v1713, 0
        %v1880 = vsel %vm823, %v1721, 0
        %v1883 = vsel %vm823, %v1729, 0
        %v1886 = vsel %vm823, %v1737, 0
        %v1889 = vsel %vm823, %v1745, 0
        %v1892 = vsel %vm823, %v1753, 0
        %v1895 = vsel %vm823, %v1761, 0
        %v1898 = vsel %vm823, %v1769, 0
        %v1901 = vsel %vm823, %v1777, 0
        %v1904 = vsel %vm823, %v1785, 0
        %v1907 = vsel %vm823, %v1793, 0
        %v1910 = vsel %vm823, %v1801, 0
        %v1913 = vsel %vm823, %v1809, 0
        %v1916 = vsel %vm823, %v1817, 0
        %v1919 = vsel %vm823, %v1825, 0
        %v1922 = vsel %vm823, %v1833, 0
        %v1925 = vsel %vm823, %v1841, 0
        %v1928 = vsel %vm823, %v1849, 0
        %v1931 = vsel %vm823, %v1857, 0
        %1933 = vmatpush.bf16.xpose.msra.mxu0 %v1883
        %1934 = vmatpush.bf16.xpose.msra.mxu0 %v1880
        %1935 = vmatpush.bf16.xpose.msra.mxu0 %v1877
        %1936 = vmatpush.bf16.xpose.msra.mxu0 %v1874
        %1937 = vmatpush.bf16.xpose.msra.mxu0 %v1871
        %1938 = vmatpush.bf16.xpose.msra.mxu0 %v1868
        %1939 = vmatpush.bf16.xpose.msra.mxu0 %v1865
        %1940 = vmatpush.bf16.xpose.msra.mxu0 %v1862
        %1941 = vmatmul.bf16.gmra.mxu0 %v1859
        %v1942 = vpop.f32.mrf.mxu0
        %v1943 = vadd.f32 0.0, %v1942
        %v1944 = vpop.f32.mrf.mxu0
        %1945 = vdwg.mxu0
        %1946 = vmatpush.bf16.xpose.msra.mxu0 %v1907
        %1947 = vmatpush.bf16.xpose.msra.mxu0 %v1904
        %1948 = vmatpush.bf16.xpose.msra.mxu0 %v1901
        %1949 = vmatpush.bf16.xpose.msra.mxu0 %v1898
        %1950 = vmatpush.bf16.xpose.msra.mxu0 %v1895
        %1951 = vmatpush.bf16.xpose.msra.mxu0 %v1892
        %1952 = vmatpush.bf16.xpose.msra.mxu0 %v1889
        %1953 = vmatpush.bf16.xpose.msra.mxu0 %v1886
        %1954 = vmatmul.bf16.gmra.mxu0 %v1859
        %v1955 = vpop.f32.mrf.mxu0
        %v1956 = vadd.f32 0.0, %v1955
        %v1957 = vpop.f32.mrf.mxu0
        %1958 = vdwg.mxu0
        %1959 = vmatpush.bf16.xpose.msra.mxu0 %v1931
        %1960 = vmatpush.bf16.xpose.msra.mxu0 %v1928
        %1961 = vmatpush.bf16.xpose.msra.mxu0 %v1925
        %1962 = vmatpush.bf16.xpose.msra.mxu0 %v1922
        %1963 = vmatpush.bf16.xpose.msra.mxu0 %v1919
        %1964 = vmatpush.bf16.xpose.msra.mxu0 %v1916
        %1965 = vmatpush.bf16.xpose.msra.mxu0 %v1913
        %1966 = vmatpush.bf16.xpose.msra.mxu0 %v1910
        %1967 = vmatmul.bf16.gmra.mxu0 %v1859
        %v1968 = vpop.f32.mrf.mxu0
        %v1969 = vadd.f32 0.0, %v1968
        %v1970 = vpop.f32.mrf.mxu0
        %1971 = vdwg.mxu0
        %v1972 = vadd.f32 %v1485, %v1943
        %v1973 = vadd.f32 %v1486, %v1956
        %v1974 = vadd.f32 %v1487, %v1969
        %v1975 = vld [vmem:[#allocation2 + $0x10] sm:$0xe]
        %s1976 = scalar_lea.vmem %s1, 20
        %v1977 = vld [vmem:[%s1976] sm:$0xf]
        %v1979 = vunpack.c.l.b16 %v1975
        %v1980 = vpack.c.b16 %v1589, %v1979
        %v1981 = vrot.slane %v1980, 1
        %v1982 = vrot.slane %v1638, 1
        %v1983 = vsel %vm1034, %v1981, %v1982
        %v1984 = vrot.slane %v1639, 1
        %v1985 = vsel %vm1034, %v1982, %v1984
        %v1986 = vrot.slane %v1640, 1
        %v1987 = vsel %vm1034, %v1984, %v1986
        %v1988 = vrot.slane %v1641, 1
        %v1989 = vsel %vm1034, %v1986, %v1988
        %v1990 = vrot.slane %v1642, 1
        %v1991 = vsel %vm1034, %v1988, %v1990
        %v1992 = vrot.slane %v1643, 1
        %v1993 = vsel %vm1034, %v1990, %v1992
        %v1994 = vrot.slane %v1644, 1
        %v1995 = vsel %vm1034, %v1992, %v1994
        %v1996 = vrot.slane %v1645, 1
        %v1997 = vsel %vm1034, %v1994, %v1996
        %v1998 = vrot.slane %v1646, 1
        %v1999 = vsel %vm1034, %v1996, %v1998
        %v2000 = vrot.slane %v1647, 1
        %v2001 = vsel %vm1034, %v1998, %v2000
        %v2002 = vrot.slane %v1648, 1
        %v2003 = vsel %vm1034, %v2000, %v2002
        %v2004 = vrot.slane %v1649, 1
        %v2005 = vsel %vm1034, %v2002, %v2004
        %v2006 = vrot.slane %v1650, 1
        %v2007 = vsel %vm1034, %v2004, %v2006
        %v2008 = vrot.slane %v1651, 1
        %v2009 = vsel %vm1034, %v2006, %v2008
        %v2010 = vrot.slane %v1652, 1
        %v2011 = vsel %vm1034, %v2008, %v2010
        %v2012 = vrot.slane %v1653, 1
        %v2013 = vsel %vm1034, %v2010, %v2012
        %v2014 = vrot.slane %v1654, 1
        %v2015 = vsel %vm1034, %v2012, %v2014
        %v2016 = vrot.slane %v1655, 1
        %v2017 = vsel %vm1034, %v2014, %v2016
        %v2018 = vrot.slane %v1656, 1
        %v2019 = vsel %vm1034, %v2016, %v2018
        %v2020 = vrot.slane %v1657, 1
        %v2021 = vsel %vm1034, %v2018, %v2020
        %v2022 = vrot.slane %v1658, 1
        %v2023 = vsel %vm1034, %v2020, %v2022
        %v2024 = vrot.slane %v1659, 1
        %v2025 = vsel %vm1034, %v2022, %v2024
        %v2026 = vrot.slane %v1660, 1
        %v2027 = vsel %vm1034, %v2024, %v2026
        %v2028 = vrot.slane %v1661, 1
        %v2029 = vsel %vm1034, %v2026, %v2028
        %v2031 = vsel %vm823, %v1977, 0
        %v2034 = vsel %vm823, %v1983, 0
        %v2037 = vsel %vm823, %v1985, 0
        %v2040 = vsel %vm823, %v1987, 0
        %v2043 = vsel %vm823, %v1989, 0
        %v2046 = vsel %vm823, %v1991, 0
        %v2049 = vsel %vm823, %v1993, 0
        %v2052 = vsel %vm823, %v1995, 0
        %v2055 = vsel %vm823, %v1997, 0
        %v2058 = vsel %vm823, %v1999, 0
        %v2061 = vsel %vm823, %v2001, 0
        %v2064 = vsel %vm823, %v2003, 0
        %v2067 = vsel %vm823, %v2005, 0
        %v2070 = vsel %vm823, %v2007, 0
        %v2073 = vsel %vm823, %v2009, 0
        %v2076 = vsel %vm823, %v2011, 0
        %v2079 = vsel %vm823, %v2013, 0
        %v2082 = vsel %vm823, %v2015, 0
        %v2085 = vsel %vm823, %v2017, 0
        %v2088 = vsel %vm823, %v2019, 0
        %v2091 = vsel %vm823, %v2021, 0
        %v2094 = vsel %vm823, %v2023, 0
        %v2097 = vsel %vm823, %v2025, 0
        %v2100 = vsel %vm823, %v2027, 0
        %v2103 = vsel %vm823, %v2029, 0
        %2105 = vmatpush.bf16.xpose.msra.mxu0 %v2055
        %2106 = vmatpush.bf16.xpose.msra.mxu0 %v2052
        %2107 = vmatpush.bf16.xpose.msra.mxu0 %v2049
        %2108 = vmatpush.bf16.xpose.msra.mxu0 %v2046
        %2109 = vmatpush.bf16.xpose.msra.mxu0 %v2043
        %2110 = vmatpush.bf16.xpose.msra.mxu0 %v2040
        %2111 = vmatpush.bf16.xpose.msra.mxu0 %v2037
        %2112 = vmatpush.bf16.xpose.msra.mxu0 %v2034
        %2113 = vmatmul.bf16.gmra.mxu0 %v2031
        %v2114 = vpop.f32.mrf.mxu0
        %v2115 = vadd.f32 0.0, %v2114
        %v2116 = vpop.f32.mrf.mxu0
        %2117 = vdwg.mxu0
        %2118 = vmatpush.bf16.xpose.msra.mxu0 %v2079
        %2119 = vmatpush.bf16.xpose.msra.mxu0 %v2076
        %2120 = vmatpush.bf16.xpose.msra.mxu0 %v2073
        %2121 = vmatpush.bf16.xpose.msra.mxu0 %v2070
        %2122 = vmatpush.bf16.xpose.msra.mxu0 %v2067
        %2123 = vmatpush.bf16.xpose.msra.mxu0 %v2064
        %2124 = vmatpush.bf16.xpose.msra.mxu0 %v2061
        %2125 = vmatpush.bf16.xpose.msra.mxu0 %v2058
        %2126 = vmatmul.bf16.gmra.mxu0 %v2031
        %v2127 = vpop.f32.mrf.mxu0
        %v2128 = vadd.f32 0.0, %v2127
        %v2129 = vpop.f32.mrf.mxu0
        %2130 = vdwg.mxu0
        %2131 = vmatpush.bf16.xpose.msra.mxu0 %v2103
        %2132 = vmatpush.bf16.xpose.msra.mxu0 %v2100
        %2133 = vmatpush.bf16.xpose.msra.mxu0 %v2097
        %2134 = vmatpush.bf16.xpose.msra.mxu0 %v2094
        %2135 = vmatpush.bf16.xpose.msra.mxu0 %v2091
        %2136 = vmatpush.bf16.xpose.msra.mxu0 %v2088
        %2137 = vmatpush.bf16.xpose.msra.mxu0 %v2085
        %2138 = vmatpush.bf16.xpose.msra.mxu0 %v2082
        %2139 = vmatmul.bf16.gmra.mxu0 %v2031
        %v2140 = vpop.f32.mrf.mxu0
        %v2141 = vadd.f32 0.0, %v2140
        %v2142 = vpop.f32.mrf.mxu0
        %2143 = vdwg.mxu0
        %v2144 = vadd.f32 %v1972, %v2115
        %v2145 = vadd.f32 %v1973, %v2128
        %v2146 = vadd.f32 %v1974, %v2141
        %v2147 = vld [vmem:[#allocation2 + $0x1c] sm:$0xf]
        %v2148 = vld [vmem:[#allocation2 + $0x20] sm:$0xf]
        %v2149 = vld [vmem:[#allocation2 + $0x24] sm:$0xf]
        %v2150 = vld [vmem:[#allocation2 + $0x28] sm:$0xf]
        %v2151 = vld [vmem:[#allocation2 + $0x2c] sm:$0xf]
        %v2152 = vld [vmem:[#allocation2 + $0x30] sm:$0xf]
        %v2153 = vld [vmem:[#allocation2 + $0x34] sm:$0xf]
        %v2154 = vld [vmem:[#allocation2 + $0x38] sm:$0xf]
        %v2155 = vld [vmem:[#allocation2 + $0x3c] sm:$0xf]
        %v2156 = vld [vmem:[#allocation2 + $0x40] sm:$0xf]
        %v2157 = vld [vmem:[#allocation2 + $0x44] sm:$0xf]
        %v2158 = vld [vmem:[#allocation2 + $0x48] sm:$0xf]
        %v2159 = vld [vmem:[#allocation2 + $0x4c] sm:$0xf]
        %v2160 = vld [vmem:[#allocation2 + $0x50] sm:$0xf]
        %v2161 = vld [vmem:[#allocation2 + $0x54] sm:$0xf]
        %v2162 = vld [vmem:[#allocation2 + $0x58] sm:$0xf]
        %v2163 = vld [vmem:[#allocation2 + $0x5c] sm:$0xf]
        %v2164 = vld [vmem:[#allocation2 + $0x60] sm:$0xf]
        %v2165 = vld [vmem:[#allocation2 + $0x64] sm:$0xf]
        %v2166 = vld [vmem:[#allocation2 + $0x68] sm:$0xf]
        %v2167 = vld [vmem:[#allocation2 + $0x6c] sm:$0xf]
        %v2168 = vld [vmem:[#allocation2 + $0x70] sm:$0xf]
        %v2169 = vld [vmem:[#allocation2 + $0x74] sm:$0xf]
        %v2170 = vld [vmem:[#allocation2 + $0x78] sm:$0xf]
        %v2171 = vld [vmem:[#allocation2 + $0x7c] sm:$0xf]
        %v2172 = vld [vmem:[#allocation2 + $0x80] sm:$0xf]
        %v2173 = vld [vmem:[#allocation2 + $0x84] sm:$0xf]
        %v2174 = vld [vmem:[#allocation2 + $0x88] sm:$0xf]
        %v2175 = vld [vmem:[#allocation2 + $0x8c] sm:$0xf]
        %v2176 = vld [vmem:[#allocation2 + $0x90] sm:$0xf]
        %v2177 = vld [vmem:[#allocation2 + $0x94] sm:$0xf]
        %v2178 = vld [vmem:[#allocation2 + $0x98] sm:$0xf]
        %v2179 = vld [vmem:[#allocation2 + $0x9c] sm:$0xf]
        %v2180 = vld [vmem:[#allocation2 + $0xa0] sm:$0xf]
        %v2181 = vld [vmem:[#allocation2 + $0xa4] sm:$0xf]
        %v2182 = vld [vmem:[#allocation2 + $0xa8] sm:$0xf]
        %v2183 = vld [vmem:[#allocation2 + $0xac] sm:$0xf]
        %v2184 = vld [vmem:[#allocation2 + $0xb0] sm:$0xf]
        %v2185 = vld [vmem:[#allocation2 + $0xb4] sm:$0xf]
        %v2186 = vld [vmem:[#allocation2 + $0xb8] sm:$0xf]
        %v2187 = vld [vmem:[#allocation2 + $0xbc] sm:$0xf]
        %v2188 = vld [vmem:[#allocation2 + $0xc0] sm:$0xf]
        %v2189 = vld [vmem:[#allocation2 + $0xc4] sm:$0xf]
        %v2190 = vld [vmem:[#allocation2 + $0xc8] sm:$0xf]
        %v2191 = vld [vmem:[#allocation2 + $0xcc] sm:$0xf]
        %v2192 = vld [vmem:[#allocation2 + $0xd0] sm:$0xf]
        %v2193 = vld [vmem:[#allocation2 + $0xd4] sm:$0xf]
        %v2194 = vld [vmem:[#allocation2 + $0xd8] sm:$0xf]
        %s2195 = scalar_lea.vmem %s1, 24
        %v2196 = vld [vmem:[%s2195] sm:$0xf]
        %v2245 = vunpack.c.l.b16 %v2147
        %v2246 = vunpack.c.l.b16 %v2148
        %v2247 = vunpack.c.l.b16 %v2149
        %v2248 = vunpack.c.l.b16 %v2150
        %v2249 = vunpack.c.l.b16 %v2151
        %v2250 = vunpack.c.l.b16 %v2152
        %v2251 = vunpack.c.l.b16 %v2153
        %v2252 = vunpack.c.l.b16 %v2154
        %v2253 = vunpack.c.l.b16 %v2155
        %v2254 = vunpack.c.l.b16 %v2156
        %v2255 = vunpack.c.l.b16 %v2157
        %v2256 = vunpack.c.l.b16 %v2158
        %v2257 = vunpack.c.l.b16 %v2159
        %v2258 = vunpack.c.l.b16 %v2160
        %v2259 = vunpack.c.l.b16 %v2161
        %v2260 = vunpack.c.l.b16 %v2162
        %v2261 = vunpack.c.l.b16 %v2163
        %v2262 = vunpack.c.l.b16 %v2164
        %v2263 = vunpack.c.l.b16 %v2165
        %v2264 = vunpack.c.l.b16 %v2166
        %v2265 = vunpack.c.l.b16 %v2167
        %v2266 = vunpack.c.l.b16 %v2168
        %v2267 = vunpack.c.l.b16 %v2169
        %v2268 = vunpack.c.l.b16 %v2170
        %v2269 = vunpack.c.l.b16 %v2171
        %v2270 = vunpack.c.l.b16 %v2172
        %v2271 = vunpack.c.l.b16 %v2173
        %v2272 = vunpack.c.l.b16 %v2174
        %v2273 = vunpack.c.l.b16 %v2175
        %v2274 = vunpack.c.l.b16 %v2176
        %v2275 = vunpack.c.l.b16 %v2177
        %v2276 = vunpack.c.l.b16 %v2178
        %v2277 = vunpack.c.l.b16 %v2179
        %v2278 = vunpack.c.l.b16 %v2180
        %v2279 = vunpack.c.l.b16 %v2181
        %v2280 = vunpack.c.l.b16 %v2182
        %v2281 = vunpack.c.l.b16 %v2183
        %v2282 = vunpack.c.l.b16 %v2184
        %v2283 = vunpack.c.l.b16 %v2185
        %v2284 = vunpack.c.l.b16 %v2186
        %v2285 = vunpack.c.l.b16 %v2187
        %v2286 = vunpack.c.l.b16 %v2188
        %v2287 = vunpack.c.l.b16 %v2189
        %v2288 = vunpack.c.l.b16 %v2190
        %v2289 = vunpack.c.l.b16 %v2191
        %v2290 = vunpack.c.l.b16 %v2192
        %v2291 = vunpack.c.l.b16 %v2193
        %v2292 = vunpack.c.l.b16 %v2194
        %v2293 = vpack.c.b16 %v2246, %v2245
        %v2294 = vpack.c.b16 %v2248, %v2247
        %v2295 = vpack.c.b16 %v2250, %v2249
        %v2296 = vpack.c.b16 %v2252, %v2251
        %v2297 = vpack.c.b16 %v2254, %v2253
        %v2298 = vpack.c.b16 %v2256, %v2255
        %v2299 = vpack.c.b16 %v2258, %v2257
        %v2300 = vpack.c.b16 %v2260, %v2259
        %v2301 = vpack.c.b16 %v2262, %v2261
        %v2302 = vpack.c.b16 %v2264, %v2263
        %v2303 = vpack.c.b16 %v2266, %v2265
        %v2304 = vpack.c.b16 %v2268, %v2267
        %v2305 = vpack.c.b16 %v2270, %v2269
        %v2306 = vpack.c.b16 %v2272, %v2271
        %v2307 = vpack.c.b16 %v2274, %v2273
        %v2308 = vpack.c.b16 %v2276, %v2275
        %v2309 = vpack.c.b16 %v2278, %v2277
        %v2310 = vpack.c.b16 %v2280, %v2279
        %v2311 = vpack.c.b16 %v2282, %v2281
        %v2312 = vpack.c.b16 %v2284, %v2283
        %v2313 = vpack.c.b16 %v2286, %v2285
        %v2314 = vpack.c.b16 %v2288, %v2287
        %v2315 = vpack.c.b16 %v2290, %v2289
        %v2316 = vpack.c.b16 %v2292, %v2291
        %v2318 = vsel %vm823, %v2196, 0
        %v2321 = vsel %vm823, %v2293, 0
        %v2324 = vsel %vm823, %v2294, 0
        %v2327 = vsel %vm823, %v2295, 0
        %v2330 = vsel %vm823, %v2296, 0
        %v2333 = vsel %vm823, %v2297, 0
        %v2336 = vsel %vm823, %v2298, 0
        %v2339 = vsel %vm823, %v2299, 0
        %v2342 = vsel %vm823, %v2300, 0
        %v2345 = vsel %vm823, %v2301, 0
        %v2348 = vsel %vm823, %v2302, 0
        %v2351 = vsel %vm823, %v2303, 0
        %v2354 = vsel %vm823, %v2304, 0
        %v2357 = vsel %vm823, %v2305, 0
        %v2360 = vsel %vm823, %v2306, 0
        %v2363 = vsel %vm823, %v2307, 0
        %v2366 = vsel %vm823, %v2308, 0
        %v2369 = vsel %vm823, %v2309, 0
        %v2372 = vsel %vm823, %v2310, 0
        %v2375 = vsel %vm823, %v2311, 0
        %v2378 = vsel %vm823, %v2312, 0
        %v2381 = vsel %vm823, %v2313, 0
        %v2384 = vsel %vm823, %v2314, 0
        %v2387 = vsel %vm823, %v2315, 0
        %v2390 = vsel %vm823, %v2316, 0
        %2392 = vmatpush.bf16.xpose.msra.mxu0 %v2342
        %2393 = vmatpush.bf16.xpose.msra.mxu0 %v2339
        %2394 = vmatpush.bf16.xpose.msra.mxu0 %v2336
        %2395 = vmatpush.bf16.xpose.msra.mxu0 %v2333
        %2396 = vmatpush.bf16.xpose.msra.mxu0 %v2330
        %2397 = vmatpush.bf16.xpose.msra.mxu0 %v2327
        %2398 = vmatpush.bf16.xpose.msra.mxu0 %v2324
        %2399 = vmatpush.bf16.xpose.msra.mxu0 %v2321
        %2400 = vmatmul.bf16.gmra.mxu0 %v2318
        %v2401 = vpop.f32.mrf.mxu0
        %v2402 = vadd.f32 0.0, %v2401
        %v2403 = vpop.f32.mrf.mxu0
        %2404 = vdwg.mxu0
        %2405 = vmatpush.bf16.xpose.msra.mxu0 %v2366
        %2406 = vmatpush.bf16.xpose.msra.mxu0 %v2363
        %2407 = vmatpush.bf16.xpose.msra.mxu0 %v2360
        %2408 = vmatpush.bf16.xpose.msra.mxu0 %v2357
        %2409 = vmatpush.bf16.xpose.msra.mxu0 %v2354
        %2410 = vmatpush.bf16.xpose.msra.mxu0 %v2351
        %2411 = vmatpush.bf16.xpose.msra.mxu0 %v2348
        %2412 = vmatpush.bf16.xpose.msra.mxu0 %v2345
        %2413 = vmatmul.bf16.gmra.mxu0 %v2318
        %v2414 = vpop.f32.mrf.mxu0
        %v2415 = vadd.f32 0.0, %v2414
        %v2416 = vpop.f32.mrf.mxu0
        %2417 = vdwg.mxu0
        %2418 = vmatpush.bf16.xpose.msra.mxu0 %v2390
        %2419 = vmatpush.bf16.xpose.msra.mxu0 %v2387
        %2420 = vmatpush.bf16.xpose.msra.mxu0 %v2384
        %2421 = vmatpush.bf16.xpose.msra.mxu0 %v2381
        %2422 = vmatpush.bf16.xpose.msra.mxu0 %v2378
        %2423 = vmatpush.bf16.xpose.msra.mxu0 %v2375
        %2424 = vmatpush.bf16.xpose.msra.mxu0 %v2372
        %2425 = vmatpush.bf16.xpose.msra.mxu0 %v2369
        %2426 = vmatmul.bf16.gmra.mxu0 %v2318
        %v2427 = vpop.f32.mrf.mxu0
        %v2428 = vadd.f32 0.0, %v2427
        %v2429 = vpop.f32.mrf.mxu0
        %2430 = vdwg.mxu0
        %v2431 = vadd.f32 %v2144, %v2402
        %v2432 = vadd.f32 %v2145, %v2415
        %v2433 = vadd.f32 %v2146, %v2428
        %v2434 = vld [vmem:[#allocation2 + $0x1c] sm:$0xf]
        %v2435 = vld [vmem:[#allocation2 + $0x20] sm:$0xf]
        %v2436 = vld [vmem:[#allocation2 + $0x24] sm:$0xf]
        %v2437 = vld [vmem:[#allocation2 + $0x28] sm:$0xf]
        %v2438 = vld [vmem:[#allocation2 + $0x2c] sm:$0xf]
        %v2439 = vld [vmem:[#allocation2 + $0x30] sm:$0xf]
        %v2440 = vld [vmem:[#allocation2 + $0x34] sm:$0xf]
        %v2441 = vld [vmem:[#allocation2 + $0x38] sm:$0xf]
        %v2442 = vld [vmem:[#allocation2 + $0x3c] sm:$0xf]
        %v2443 = vld [vmem:[#allocation2 + $0x40] sm:$0xf]
        %v2444 = vld [vmem:[#allocation2 + $0x44] sm:$0xf]
        %v2445 = vld [vmem:[#allocation2 + $0x48] sm:$0xf]
        %v2446 = vld [vmem:[#allocation2 + $0x4c] sm:$0xf]
        %v2447 = vld [vmem:[#allocation2 + $0x50] sm:$0xf]
        %v2448 = vld [vmem:[#allocation2 + $0x54] sm:$0xf]
        %v2449 = vld [vmem:[#allocation2 + $0x58] sm:$0xf]
        %v2450 = vld [vmem:[#allocation2 + $0x5c] sm:$0xf]
        %v2451 = vld [vmem:[#allocation2 + $0x60] sm:$0xf]
        %v2452 = vld [vmem:[#allocation2 + $0x64] sm:$0xf]
        %v2453 = vld [vmem:[#allocation2 + $0x68] sm:$0xf]
        %v2454 = vld [vmem:[#allocation2 + $0x6c] sm:$0xf]
        %v2455 = vld [vmem:[#allocation2 + $0x70] sm:$0xf]
        %v2456 = vld [vmem:[#allocation2 + $0x74] sm:$0xf]
        %v2457 = vld [vmem:[#allocation2 + $0x78] sm:$0xf]
        %v2458 = vld [vmem:[#allocation2 + $0x7c] sm:$0xf]
        %v2459 = vld [vmem:[#allocation2 + $0x80] sm:$0xf]
        %v2460 = vld [vmem:[#allocation2 + $0x84] sm:$0xf]
        %v2461 = vld [vmem:[#allocation2 + $0x88] sm:$0xf]
        %v2462 = vld [vmem:[#allocation2 + $0x8c] sm:$0xf]
        %v2463 = vld [vmem:[#allocation2 + $0x90] sm:$0xf]
        %v2464 = vld [vmem:[#allocation2 + $0x94] sm:$0xf]
        %v2465 = vld [vmem:[#allocation2 + $0x98] sm:$0xf]
        %v2466 = vld [vmem:[#allocation2 + $0x9c] sm:$0xf]
        %v2467 = vld [vmem:[#allocation2 + $0xa0] sm:$0xf]
        %v2468 = vld [vmem:[#allocation2 + $0xa4] sm:$0xf]
        %v2469 = vld [vmem:[#allocation2 + $0xa8] sm:$0xf]
        %v2470 = vld [vmem:[#allocation2 + $0xac] sm:$0xf]
        %v2471 = vld [vmem:[#allocation2 + $0xb0] sm:$0xf]
        %v2472 = vld [vmem:[#allocation2 + $0xb4] sm:$0xf]
        %v2473 = vld [vmem:[#allocation2 + $0xb8] sm:$0xf]
        %v2474 = vld [vmem:[#allocation2 + $0xbc] sm:$0xf]
        %v2475 = vld [vmem:[#allocation2 + $0xc0] sm:$0xf]
        %v2476 = vld [vmem:[#allocation2 + $0xc4] sm:$0xf]
        %v2477 = vld [vmem:[#allocation2 + $0xc8] sm:$0xf]
        %v2478 = vld [vmem:[#allocation2 + $0xcc] sm:$0xf]
        %v2479 = vld [vmem:[#allocation2 + $0xd0] sm:$0xf]
        %v2480 = vld [vmem:[#allocation2 + $0xd4] sm:$0xf]
        %v2481 = vld [vmem:[#allocation2 + $0xd8] sm:$0xf]
        %v2482 = vld [vmem:[#allocation2 + $0xdc] sm:$0x1]
        %s2483 = scalar_lea.vmem %s1, 28
        %v2484 = vld [vmem:[%s2483] sm:$0xf]
        %v2534 = vunpack.c.l.b16 %v2434
        %v2535 = vunpack.c.l.b16 %v2435
        %v2536 = vunpack.c.l.b16 %v2436
        %v2537 = vunpack.c.l.b16 %v2437
        %v2538 = vunpack.c.l.b16 %v2438
        %v2539 = vunpack.c.l.b16 %v2439
        %v2540 = vunpack.c.l.b16 %v2440
        %v2541 = vunpack.c.l.b16 %v2441
        %v2542 = vunpack.c.l.b16 %v2442
        %v2543 = vunpack.c.l.b16 %v2443
        %v2544 = vunpack.c.l.b16 %v2444
        %v2545 = vunpack.c.l.b16 %v2445
        %v2546 = vunpack.c.l.b16 %v2446
        %v2547 = vunpack.c.l.b16 %v2447
        %v2548 = vunpack.c.l.b16 %v2448
        %v2549 = vunpack.c.l.b16 %v2449
        %v2550 = vunpack.c.l.b16 %v2450
        %v2551 = vunpack.c.l.b16 %v2451
        %v2552 = vunpack.c.l.b16 %v2452
        %v2553 = vunpack.c.l.b16 %v2453
        %v2554 = vunpack.c.l.b16 %v2454
        %v2555 = vunpack.c.l.b16 %v2455
        %v2556 = vunpack.c.l.b16 %v2456
        %v2557 = vunpack.c.l.b16 %v2457
        %v2558 = vunpack.c.l.b16 %v2458
        %v2559 = vunpack.c.l.b16 %v2459
        %v2560 = vunpack.c.l.b16 %v2460
        %v2561 = vunpack.c.l.b16 %v2461
        %v2562 = vunpack.c.l.b16 %v2462
        %v2563 = vunpack.c.l.b16 %v2463
        %v2564 = vunpack.c.l.b16 %v2464
        %v2565 = vunpack.c.l.b16 %v2465
        %v2566 = vunpack.c.l.b16 %v2466
        %v2567 = vunpack.c.l.b16 %v2467
        %v2568 = vunpack.c.l.b16 %v2468
        %v2569 = vunpack.c.l.b16 %v2469
        %v2570 = vunpack.c.l.b16 %v2470
        %v2571 = vunpack.c.l.b16 %v2471
        %v2572 = vunpack.c.l.b16 %v2472
        %v2573 = vunpack.c.l.b16 %v2473
        %v2574 = vunpack.c.l.b16 %v2474
        %v2575 = vunpack.c.l.b16 %v2475
        %v2576 = vunpack.c.l.b16 %v2476
        %v2577 = vunpack.c.l.b16 %v2477
        %v2578 = vunpack.c.l.b16 %v2478
        %v2579 = vunpack.c.l.b16 %v2479
        %v2580 = vunpack.c.l.b16 %v2480
        %v2581 = vunpack.c.l.b16 %v2481
        %v2582 = vunpack.c.l.b16 %v2482
        %v2583 = vpack.c.b16 %v2535, %v2534
        %v2584 = vpack.c.b16 %v2537, %v2536
        %v2585 = vpack.c.b16 %v2539, %v2538
        %v2586 = vpack.c.b16 %v2541, %v2540
        %v2587 = vpack.c.b16 %v2543, %v2542
        %v2588 = vpack.c.b16 %v2545, %v2544
        %v2589 = vpack.c.b16 %v2547, %v2546
        %v2590 = vpack.c.b16 %v2549, %v2548
        %v2591 = vpack.c.b16 %v2551, %v2550
        %v2592 = vpack.c.b16 %v2553, %v2552
        %v2593 = vpack.c.b16 %v2555, %v2554
        %v2594 = vpack.c.b16 %v2557, %v2556
        %v2595 = vpack.c.b16 %v2559, %v2558
        %v2596 = vpack.c.b16 %v2561, %v2560
        %v2597 = vpack.c.b16 %v2563, %v2562
        %v2598 = vpack.c.b16 %v2565, %v2564
        %v2599 = vpack.c.b16 %v2567, %v2566
        %v2600 = vpack.c.b16 %v2569, %v2568
        %v2601 = vpack.c.b16 %v2571, %v2570
        %v2602 = vpack.c.b16 %v2573, %v2572
        %v2603 = vpack.c.b16 %v2575, %v2574
        %v2604 = vpack.c.b16 %v2577, %v2576
        %v2605 = vpack.c.b16 %v2579, %v2578
        %v2606 = vpack.c.b16 %v2581, %v2580
        %v2607 = vpack.c.b16 %v2582, %v2582
        %v2609 = vshrl.u32 %v2583, 16
        %v2611 = vshll.u32 %v2583, 16
        %v2613 = vrot.slane %v2611, 1
        %v2614 = vor.u32 %v2609, %v2613
        %v2616 = vshll.u32 %v2584, 16
        %v2618 = vrot.slane %v2616, 1
        %v2619 = vsel %vm626, %v2614, %v2618
        %v2620 = vshrl.u32 %v2584, 16
        %v2622 = vor.u32 %v2620, %v2618
        %v2624 = vshll.u32 %v2585, 16
        %v2626 = vrot.slane %v2624, 1
        %v2627 = vsel %vm626, %v2622, %v2626
        %v2628 = vshrl.u32 %v2585, 16
        %v2630 = vor.u32 %v2628, %v2626
        %v2632 = vshll.u32 %v2586, 16
        %v2634 = vrot.slane %v2632, 1
        %v2635 = vsel %vm626, %v2630, %v2634
        %v2636 = vshrl.u32 %v2586, 16
        %v2638 = vor.u32 %v2636, %v2634
        %v2640 = vshll.u32 %v2587, 16
        %v2642 = vrot.slane %v2640, 1
        %v2643 = vsel %vm626, %v2638, %v2642
        %v2644 = vshrl.u32 %v2587, 16
        %v2646 = vor.u32 %v2644, %v2642
        %v2648 = vshll.u32 %v2588, 16
        %v2650 = vrot.slane %v2648, 1
        %v2651 = vsel %vm626, %v2646, %v2650
        %v2652 = vshrl.u32 %v2588, 16
        %v2654 = vor.u32 %v2652, %v2650
        %v2656 = vshll.u32 %v2589, 16
        %v2658 = vrot.slane %v2656, 1
        %v2659 = vsel %vm626, %v2654, %v2658
        %v2660 = vshrl.u32 %v2589, 16
        %v2662 = vor.u32 %v2660, %v2658
        %v2664 = vshll.u32 %v2590, 16
        %v2666 = vrot.slane %v2664, 1
        %v2667 = vsel %vm626, %v2662, %v2666
        %v2668 = vshrl.u32 %v2590, 16
        %v2670 = vor.u32 %v2668, %v2666
        %v2672 = vshll.u32 %v2591, 16
        %v2674 = vrot.slane %v2672, 1
        %v2675 = vsel %vm626, %v2670, %v2674
        %v2676 = vshrl.u32 %v2591, 16
        %v2678 = vor.u32 %v2676, %v2674
        %v2680 = vshll.u32 %v2592, 16
        %v2682 = vrot.slane %v2680, 1
        %v2683 = vsel %vm626, %v2678, %v2682
        %v2684 = vshrl.u32 %v2592, 16
        %v2686 = vor.u32 %v2684, %v2682
        %v2688 = vshll.u32 %v2593, 16
        %v2690 = vrot.slane %v2688, 1
        %v2691 = vsel %vm626, %v2686, %v2690
        %v2692 = vshrl.u32 %v2593, 16
        %v2694 = vor.u32 %v2692, %v2690
        %v2696 = vshll.u32 %v2594, 16
        %v2698 = vrot.slane %v2696, 1
        %v2699 = vsel %vm626, %v2694, %v2698
        %v2700 = vshrl.u32 %v2594, 16
        %v2702 = vor.u32 %v2700, %v2698
        %v2704 = vshll.u32 %v2595, 16
        %v2706 = vrot.slane %v2704, 1
        %v2707 = vsel %vm626, %v2702, %v2706
        %v2708 = vshrl.u32 %v2595, 16
        %v2710 = vor.u32 %v2708, %v2706
        %v2712 = vshll.u32 %v2596, 16
        %v2714 = vrot.slane %v2712, 1
        %v2715 = vsel %vm626, %v2710, %v2714
        %v2716 = vshrl.u32 %v2596, 16
        %v2718 = vor.u32 %v2716, %v2714
        %v2720 = vshll.u32 %v2597, 16
        %v2722 = vrot.slane %v2720, 1
        %v2723 = vsel %vm626, %v2718, %v2722
        %v2724 = vshrl.u32 %v2597, 16
        %v2726 = vor.u32 %v2724, %v2722
        %v2728 = vshll.u32 %v2598, 16
        %v2730 = vrot.slane %v2728, 1
        %v2731 = vsel %vm626, %v2726, %v2730
        %v2732 = vshrl.u32 %v2598, 16
        %v2734 = vor.u32 %v2732, %v2730
        %v2736 = vshll.u32 %v2599, 16
        %v2738 = vrot.slane %v2736, 1
        %v2739 = vsel %vm626, %v2734, %v2738
        %v2740 = vshrl.u32 %v2599, 16
        %v2742 = vor.u32 %v2740, %v2738
        %v2744 = vshll.u32 %v2600, 16
        %v2746 = vrot.slane %v2744, 1
        %v2747 = vsel %vm626, %v2742, %v2746
        %v2748 = vshrl.u32 %v2600, 16
        %v2750 = vor.u32 %v2748, %v2746
        %v2752 = vshll.u32 %v2601, 16
        %v2754 = vrot.slane %v2752, 1
        %v2755 = vsel %vm626, %v2750, %v2754
        %v2756 = vshrl.u32 %v2601, 16
        %v2758 = vor.u32 %v2756, %v2754
        %v2760 = vshll.u32 %v2602, 16
        %v2762 = vrot.slane %v2760, 1
        %v2763 = vsel %vm626, %v2758, %v2762
        %v2764 = vshrl.u32 %v2602, 16
        %v2766 = vor.u32 %v2764, %v2762
        %v2768 = vshll.u32 %v2603, 16
        %v2770 = vrot.slane %v2768, 1
        %v2771 = vsel %vm626, %v2766, %v2770
        %v2772 = vshrl.u32 %v2603, 16
        %v2774 = vor.u32 %v2772, %v2770
        %v2776 = vshll.u32 %v2604, 16
        %v2778 = vrot.slane %v2776, 1
        %v2779 = vsel %vm626, %v2774, %v2778
        %v2780 = vshrl.u32 %v2604, 16
        %v2782 = vor.u32 %v2780, %v2778
        %v2784 = vshll.u32 %v2605, 16
        %v2786 = vrot.slane %v2784, 1
        %v2787 = vsel %vm626, %v2782, %v2786
        %v2788 = vshrl.u32 %v2605, 16
        %v2790 = vor.u32 %v2788, %v2786
        %v2792 = vshll.u32 %v2606, 16
        %v2794 = vrot.slane %v2792, 1
        %v2795 = vsel %vm626, %v2790, %v2794
        %v2796 = vshrl.u32 %v2606, 16
        %v2798 = vor.u32 %v2796, %v2794
        %v2800 = vshll.u32 %v2607, 16
        %v2802 = vrot.slane %v2800, 1
        %v2803 = vsel %vm626, %v2798, %v2802
        %v2805 = vsel %vm823, %v2484, 0
        %v2808 = vsel %vm823, %v2619, 0
        %v2811 = vsel %vm823, %v2627, 0
        %v2814 = vsel %vm823, %v2635, 0
        %v2817 = vsel %vm823, %v2643, 0
        %v2820 = vsel %vm823, %v2651, 0
        %v2823 = vsel %vm823, %v2659, 0
        %v2826 = vsel %vm823, %v2667, 0
        %v2829 = vsel %vm823, %v2675, 0
        %v2832 = vsel %vm823, %v2683, 0
        %v2835 = vsel %vm823, %v2691, 0
        %v2838 = vsel %vm823, %v2699, 0
        %v2841 = vsel %vm823, %v2707, 0
        %v2844 = vsel %vm823, %v2715, 0
        %v2847 = vsel %vm823, %v2723, 0
        %v2850 = vsel %vm823, %v2731, 0
        %v2853 = vsel %vm823, %v2739, 0
        %v2856 = vsel %vm823, %v2747, 0
        %v2859 = vsel %vm823, %v2755, 0
        %v2862 = vsel %vm823, %v2763, 0
        %v2865 = vsel %vm823, %v2771, 0
        %v2868 = vsel %vm823, %v2779, 0
        %v2871 = vsel %vm823, %v2787, 0
        %v2874 = vsel %vm823, %v2795, 0
        %v2877 = vsel %vm823, %v2803, 0
        %2879 = vmatpush.bf16.xpose.msra.mxu0 %v2829
        %2880 = vmatpush.bf16.xpose.msra.mxu0 %v2826
        %2881 = vmatpush.bf16.xpose.msra.mxu0 %v2823
        %2882 = vmatpush.bf16.xpose.msra.mxu0 %v2820
        %2883 = vmatpush.bf16.xpose.msra.mxu0 %v2817
        %2884 = vmatpush.bf16.xpose.msra.mxu0 %v2814
        %2885 = vmatpush.bf16.xpose.msra.mxu0 %v2811
        %2886 = vmatpush.bf16.xpose.msra.mxu0 %v2808
        %2887 = vmatmul.bf16.gmra.mxu0 %v2805
        %v2888 = vpop.f32.mrf.mxu0
        %v2889 = vadd.f32 0.0, %v2888
        %v2890 = vpop.f32.mrf.mxu0
        %2891 = vdwg.mxu0
        %2892 = vmatpush.bf16.xpose.msra.mxu0 %v2853
        %2893 = vmatpush.bf16.xpose.msra.mxu0 %v2850
        %2894 = vmatpush.bf16.xpose.msra.mxu0 %v2847
        %2895 = vmatpush.bf16.xpose.msra.mxu0 %v2844
        %2896 = vmatpush.bf16.xpose.msra.mxu0 %v2841
        %2897 = vmatpush.bf16.xpose.msra.mxu0 %v2838
        %2898 = vmatpush.bf16.xpose.msra.mxu0 %v2835
        %2899 = vmatpush.bf16.xpose.msra.mxu0 %v2832
        %2900 = vmatmul.bf16.gmra.mxu0 %v2805
        %v2901 = vpop.f32.mrf.mxu0
        %v2902 = vadd.f32 0.0, %v2901
        %v2903 = vpop.f32.mrf.mxu0
        %2904 = vdwg.mxu0
        %2905 = vmatpush.bf16.xpose.msra.mxu0 %v2877
        %2906 = vmatpush.bf16.xpose.msra.mxu0 %v2874
        %2907 = vmatpush.bf16.xpose.msra.mxu0 %v2871
        %2908 = vmatpush.bf16.xpose.msra.mxu0 %v2868
        %2909 = vmatpush.bf16.xpose.msra.mxu0 %v2865
        %2910 = vmatpush.bf16.xpose.msra.mxu0 %v2862
        %2911 = vmatpush.bf16.xpose.msra.mxu0 %v2859
        %2912 = vmatpush.bf16.xpose.msra.mxu0 %v2856
        %2913 = vmatmul.bf16.gmra.mxu0 %v2805
        %v2914 = vpop.f32.mrf.mxu0
        %v2915 = vadd.f32 0.0, %v2914
        %v2916 = vpop.f32.mrf.mxu0
        %2917 = vdwg.mxu0
        %v2918 = vadd.f32 %v2431, %v2889
        %v2919 = vadd.f32 %v2432, %v2902
        %v2920 = vadd.f32 %v2433, %v2915
        %v2921 = vld [vmem:[#allocation2 + $0x1c] sm:$0xe]
        %s2922 = scalar_lea.vmem %s1, 32
        %v2923 = vld [vmem:[%s2922] sm:$0xf]
        %v2925 = vunpack.c.l.b16 %v2921
        %v2926 = vpack.c.b16 %v2535, %v2925
        %v2927 = vrot.slane %v2926, 1
        %v2928 = vrot.slane %v2584, 1
        %v2929 = vsel %vm1034, %v2927, %v2928
        %v2930 = vrot.slane %v2585, 1
        %v2931 = vsel %vm1034, %v2928, %v2930
        %v2932 = vrot.slane %v2586, 1
        %v2933 = vsel %vm1034, %v2930, %v2932
        %v2934 = vrot.slane %v2587, 1
        %v2935 = vsel %vm1034, %v2932, %v2934
        %v2936 = vrot.slane %v2588, 1
        %v2937 = vsel %vm1034, %v2934, %v2936
        %v2938 = vrot.slane %v2589, 1
        %v2939 = vsel %vm1034, %v2936, %v2938
        %v2940 = vrot.slane %v2590, 1
        %v2941 = vsel %vm1034, %v2938, %v2940
        %v2942 = vrot.slane %v2591, 1
        %v2943 = vsel %vm1034, %v2940, %v2942
        %v2944 = vrot.slane %v2592, 1
        %v2945 = vsel %vm1034, %v2942, %v2944
        %v2946 = vrot.slane %v2593, 1
        %v2947 = vsel %vm1034, %v2944, %v2946
        %v2948 = vrot.slane %v2594, 1
        %v2949 = vsel %vm1034, %v2946, %v2948
        %v2950 = vrot.slane %v2595, 1
        %v2951 = vsel %vm1034, %v2948, %v2950
        %v2952 = vrot.slane %v2596, 1
        %v2953 = vsel %vm1034, %v2950, %v2952
        %v2954 = vrot.slane %v2597, 1
        %v2955 = vsel %vm1034, %v2952, %v2954
        %v2956 = vrot.slane %v2598, 1
        %v2957 = vsel %vm1034, %v2954, %v2956
        %v2958 = vrot.slane %v2599, 1
        %v2959 = vsel %vm1034, %v2956, %v2958
        %v2960 = vrot.slane %v2600, 1
        %v2961 = vsel %vm1034, %v2958, %v2960
        %v2962 = vrot.slane %v2601, 1
        %v2963 = vsel %vm1034, %v2960, %v2962
        %v2964 = vrot.slane %v2602, 1
        %v2965 = vsel %vm1034, %v2962, %v2964
        %v2966 = vrot.slane %v2603, 1
        %v2967 = vsel %vm1034, %v2964, %v2966
        %v2968 = vrot.slane %v2604, 1
        %v2969 = vsel %vm1034, %v2966, %v2968
        %v2970 = vrot.slane %v2605, 1
        %v2971 = vsel %vm1034, %v2968, %v2970
        %v2972 = vrot.slane %v2606, 1
        %v2973 = vsel %vm1034, %v2970, %v2972
        %v2974 = vrot.slane %v2607, 1
        %v2975 = vsel %vm1034, %v2972, %v2974
        %v2977 = vsel %vm823, %v2923, 0
        %v2980 = vsel %vm823, %v2929, 0
        %v2983 = vsel %vm823, %v2931, 0
        %v2986 = vsel %vm823, %v2933, 0
        %v2989 = vsel %vm823, %v2935, 0
        %v2992 = vsel %vm823, %v2937, 0
        %v2995 = vsel %vm823, %v2939, 0
        %v2998 = vsel %vm823, %v2941, 0
        %v3001 = vsel %vm823, %v2943, 0
        %v3004 = vsel %vm823, %v2945, 0
        %v3007 = vsel %vm823, %v2947, 0
        %v3010 = vsel %vm823, %v2949, 0
        %v3013 = vsel %vm823, %v2951, 0
        %v3016 = vsel %vm823, %v2953, 0
        %v3019 = vsel %vm823, %v2955, 0
        %v3022 = vsel %vm823, %v2957, 0
        %v3025 = vsel %vm823, %v2959, 0
        %v3028 = vsel %vm823, %v2961, 0
        %v3031 = vsel %vm823, %v2963, 0
        %v3034 = vsel %vm823, %v2965, 0
        %v3037 = vsel %vm823, %v2967, 0
        %v3040 = vsel %vm823, %v2969, 0
        %v3043 = vsel %vm823, %v2971, 0
        %v3046 = vsel %vm823, %v2973, 0
        %v3049 = vsel %vm823, %v2975, 0
        %3051 = vmatpush.bf16.xpose.msra.mxu0 %v3001
        %3052 = vmatpush.bf16.xpose.msra.mxu0 %v2998
        %3053 = vmatpush.bf16.xpose.msra.mxu0 %v2995
        %3054 = vmatpush.bf16.xpose.msra.mxu0 %v2992
        %3055 = vmatpush.bf16.xpose.msra.mxu0 %v2989
        %3056 = vmatpush.bf16.xpose.msra.mxu0 %v2986
        %3057 = vmatpush.bf16.xpose.msra.mxu0 %v2983
        %3058 = vmatpush.bf16.xpose.msra.mxu0 %v2980
        %3059 = vmatmul.bf16.gmra.mxu0 %v2977
        %v3060 = vpop.f32.mrf.mxu0
        %v3061 = vadd.f32 0.0, %v3060
        %v3062 = vpop.f32.mrf.mxu0
        %3063 = vdwg.mxu0
        %3064 = vmatpush.bf16.xpose.msra.mxu0 %v3025
        %3065 = vmatpush.bf16.xpose.msra.mxu0 %v3022
        %3066 = vmatpush.bf16.xpose.msra.mxu0 %v3019
        %3067 = vmatpush.bf16.xpose.msra.mxu0 %v3016
        %3068 = vmatpush.bf16.xpose.msra.mxu0 %v3013
        %3069 = vmatpush.bf16.xpose.msra.mxu0 %v3010
        %3070 = vmatpush.bf16.xpose.msra.mxu0 %v3007
        %3071 = vmatpush.bf16.xpose.msra.mxu0 %v3004
        %3072 = vmatmul.bf16.gmra.mxu0 %v2977
        %v3073 = vpop.f32.mrf.mxu0
        %v3074 = vadd.f32 0.0, %v3073
        %v3075 = vpop.f32.mrf.mxu0
        %3076 = vdwg.mxu0
        %3077 = vmatpush.bf16.xpose.msra.mxu0 %v3049
        %3078 = vmatpush.bf16.xpose.msra.mxu0 %v3046
        %3079 = vmatpush.bf16.xpose.msra.mxu0 %v3043
        %3080 = vmatpush.bf16.xpose.msra.mxu0 %v3040
        %3081 = vmatpush.bf16.xpose.msra.mxu0 %v3037
        %3082 = vmatpush.bf16.xpose.msra.mxu0 %v3034
        %3083 = vmatpush.bf16.xpose.msra.mxu0 %v3031
        %3084 = vmatpush.bf16.xpose.msra.mxu0 %v3028
        %3085 = vmatmul.bf16.gmra.mxu0 %v2977
        %v3086 = vpop.f32.mrf.mxu0
        %v3087 = vadd.f32 0.0, %v3086
        %v3088 = vpop.f32.mrf.mxu0
        %3089 = vdwg.mxu0
        %v3090 = vadd.f32 %v2918, %v3061
        %v3091 = vadd.f32 %v2919, %v3074
        %v3092 = vadd.f32 %v2920, %v3087
        %v3093 = vld [vmem:[%s2] sm:$0xff]
        %3095 = vset.pattern.permute.xlu0 0
        %3096 = vperm.xlu0 %3095, %v3093
        %v3097 = vpop.permute.xlu0 %3096
        %v3099 = vadd.f32 %v3090, %v3097
        %v3100 = vadd.f32 %v3091, %v3097
        %v3101 = vadd.f32 %v3092, %v3097
        %v3102 = vmax.f32 %v3099, 0.0
        %v3103 = vmax.f32 %v3100, 0.0
        %v3104 = vmax.f32 %v3101, 0.0
        %v3105 = vsel %vm352, %v3102, 0.0
        %v3106 = vsel %vm353, %v3103, 0.0
        %v3107 = vsel %vm354, %v3104, 0.0
        %3108 = vxpose.xlu0.b32.start [1/16] %v3105, 128
        %3109 = vxpose.xlu0.b32.cont [2/16] 0.0, 128
        %3110 = vxpose.xlu0.b32.cont [3/16] 0.0, 128
        %3111 = vxpose.xlu0.b32.cont [4/16] 0.0, 128
        %3112 = vxpose.xlu0.b32.cont [5/16] 0.0, 128
        %3113 = vxpose.xlu0.b32.cont [6/16] 0.0, 128
        %3114 = vxpose.xlu0.b32.cont [7/16] 0.0, 128
        %3115 = vxpose.xlu0.b32.cont [8/16] 0.0, 128
        %3116 = vxpose.xlu0.b32.cont [9/16] 0.0, 128
        %3117 = vxpose.xlu0.b32.cont [10/16] 0.0, 128
        %3118 = vxpose.xlu0.b32.cont [11/16] 0.0, 128
        %3119 = vxpose.xlu0.b32.cont [12/16] 0.0, 128
        %3120 = vxpose.xlu0.b32.cont [13/16] 0.0, 128
        %3121 = vxpose.xlu0.b32.cont [14/16] 0.0, 128
        %3122 = vxpose.xlu0.b32.cont [15/16] 0.0, 128
        %3123 = vxpose.xlu0.b32.end [16/16] 0.0, 128
        %v3124 = vpop.trf.xlu0
        %v3125 = vpop.trf.xlu0
        %v3126 = vpop.trf.xlu0
        %v3127 = vpop.trf.xlu0
        %v3128 = vpop.trf.xlu0
        %v3129 = vpop.trf.xlu0
        %v3130 = vpop.trf.xlu0
        %v3131 = vpop.trf.xlu0
        %v3132 = vpop.trf.xlu0
        %v3133 = vpop.trf.xlu0
        %v3134 = vpop.trf.xlu0
        %v3135 = vpop.trf.xlu0
        %v3136 = vpop.trf.xlu0
        %v3137 = vpop.trf.xlu0
        %v3138 = vpop.trf.xlu0
        %v3139 = vpop.trf.xlu0
        %3140 = vxpose.xlu0.b32.start [1/16] %v3106, 128
        %3141 = vxpose.xlu0.b32.cont [2/16] 0.0, 128
        %3142 = vxpose.xlu0.b32.cont [3/16] 0.0, 128
        %3143 = vxpose.xlu0.b32.cont [4/16] 0.0, 128
        %3144 = vxpose.xlu0.b32.cont [5/16] 0.0, 128
        %3145 = vxpose.xlu0.b32.cont [6/16] 0.0, 128
        %3146 = vxpose.xlu0.b32.cont [7/16] 0.0, 128
        %3147 = vxpose.xlu0.b32.cont [8/16] 0.0, 128
        %3148 = vxpose.xlu0.b32.cont [9/16] 0.0, 128
        %3149 = vxpose.xlu0.b32.cont [10/16] 0.0, 128
        %3150 = vxpose.xlu0.b32.cont [11/16] 0.0, 128
        %3151 = vxpose.xlu0.b32.cont [12/16] 0.0, 128
        %3152 = vxpose.xlu0.b32.cont [13/16] 0.0, 128
        %3153 = vxpose.xlu0.b32.cont [14/16] 0.0, 128
        %3154 = vxpose.xlu0.b32.cont [15/16] 0.0, 128
        %3155 = vxpose.xlu0.b32.end [16/16] 0.0, 128
        %v3156 = vpop.trf.xlu0
        %v3157 = vpop.trf.xlu0
        %v3158 = vpop.trf.xlu0
        %v3159 = vpop.trf.xlu0
        %v3160 = vpop.trf.xlu0
        %v3161 = vpop.trf.xlu0
        %v3162 = vpop.trf.xlu0
        %v3163 = vpop.trf.xlu0
        %v3164 = vpop.trf.xlu0
        %v3165 = vpop.trf.xlu0
        %v3166 = vpop.trf.xlu0
        %v3167 = vpop.trf.xlu0
        %v3168 = vpop.trf.xlu0
        %v3169 = vpop.trf.xlu0
        %v3170 = vpop.trf.xlu0
        %v3171 = vpop.trf.xlu0
        %3172 = vxpose.xlu0.b32.start [1/16] %v3107, 128
        %3173 = vxpose.xlu0.b32.cont [2/16] 0.0, 128
        %3174 = vxpose.xlu0.b32.cont [3/16] 0.0, 128
        %3175 = vxpose.xlu0.b32.cont [4/16] 0.0, 128
        %3176 = vxpose.xlu0.b32.cont [5/16] 0.0, 128
        %3177 = vxpose.xlu0.b32.cont [6/16] 0.0, 128
        %3178 = vxpose.xlu0.b32.cont [7/16] 0.0, 128
        %3179 = vxpose.xlu0.b32.cont [8/16] 0.0, 128
        %3180 = vxpose.xlu0.b32.cont [9/16] 0.0, 128
        %3181 = vxpose.xlu0.b32.cont [10/16] 0.0, 128
        %3182 = vxpose.xlu0.b32.cont [11/16] 0.0, 128
        %3183 = vxpose.xlu0.b32.cont [12/16] 0.0, 128
        %3184 = vxpose.xlu0.b32.cont [13/16] 0.0, 128
        %3185 = vxpose.xlu0.b32.cont [14/16] 0.0, 128
        %3186 = vxpose.xlu0.b32.cont [15/16] 0.0, 128
        %3187 = vxpose.xlu0.b32.end [16/16] 0.0, 128
        %v3188 = vpop.trf.xlu0
        %v3189 = vpop.trf.xlu0
        %v3190 = vpop.trf.xlu0
        %v3191 = vpop.trf.xlu0
        %v3192 = vpop.trf.xlu0
        %v3193 = vpop.trf.xlu0
        %v3194 = vpop.trf.xlu0
        %v3195 = vpop.trf.xlu0
        %v3196 = vpop.trf.xlu0
        %v3197 = vpop.trf.xlu0
        %v3198 = vpop.trf.xlu0
        %v3199 = vpop.trf.xlu0
        %v3200 = vpop.trf.xlu0
        %v3201 = vpop.trf.xlu0
        %v3202 = vpop.trf.xlu0
        %v3203 = vpop.trf.xlu0
        %v3204 = vpack.c.bf16 %v3124, %v3124
        %v3205 = vpack.c.bf16 %v3125, %v3125
        %v3206 = vpack.c.bf16 %v3126, %v3126
        %v3207 = vpack.c.bf16 %v3127, %v3127
        %v3208 = vpack.c.bf16 %v3128, %v3128
        %v3209 = vpack.c.bf16 %v3129, %v3129
        %v3210 = vpack.c.bf16 %v3130, %v3130
        %v3211 = vpack.c.bf16 %v3131, %v3131
        %v3212 = vpack.c.bf16 %v3132, %v3132
        %v3213 = vpack.c.bf16 %v3133, %v3133
        %v3214 = vpack.c.bf16 %v3134, %v3134
        %v3215 = vpack.c.bf16 %v3135, %v3135
        %v3216 = vpack.c.bf16 %v3136, %v3136
        %v3217 = vpack.c.bf16 %v3137, %v3137
        %v3218 = vpack.c.bf16 %v3138, %v3138
        %v3219 = vpack.c.bf16 %v3139, %v3139
        %v3220 = vpack.c.bf16 %v3156, %v3156
        %v3221 = vpack.c.bf16 %v3157, %v3157
        %v3222 = vpack.c.bf16 %v3158, %v3158
        %v3223 = vpack.c.bf16 %v3159, %v3159
        %v3224 = vpack.c.bf16 %v3160, %v3160
        %v3225 = vpack.c.bf16 %v3161, %v3161
        %v3226 = vpack.c.bf16 %v3162, %v3162
        %v3227 = vpack.c.bf16 %v3163, %v3163
        %v3228 = vpack.c.bf16 %v3164, %v3164
        %v3229 = vpack.c.bf16 %v3165, %v3165
        %v3230 = vpack.c.bf16 %v3166, %v3166
        %v3231 = vpack.c.bf16 %v3167, %v3167
        %v3232 = vpack.c.bf16 %v3168, %v3168
        %v3233 = vpack.c.bf16 %v3169, %v3169
        %v3234 = vpack.c.bf16 %v3170, %v3170
        %v3235 = vpack.c.bf16 %v3171, %v3171
        %v3236 = vpack.c.bf16 %v3188, %v3188
        %v3237 = vpack.c.bf16 %v3189, %v3189
        %v3238 = vpack.c.bf16 %v3190, %v3190
        %v3239 = vpack.c.bf16 %v3191, %v3191
        %v3240 = vpack.c.bf16 %v3192, %v3192
        %v3241 = vpack.c.bf16 %v3193, %v3193
        %v3242 = vpack.c.bf16 %v3194, %v3194
        %v3243 = vpack.c.bf16 %v3195, %v3195
        %v3244 = vpack.c.bf16 %v3196, %v3196
        %v3245 = vpack.c.bf16 %v3197, %v3197
        %v3246 = vpack.c.bf16 %v3198, %v3198
        %v3247 = vpack.c.bf16 %v3199, %v3199
        %v3248 = vpack.c.bf16 %v3200, %v3200
        %v3249 = vpack.c.bf16 %v3201, %v3201
        %v3250 = vpack.c.bf16 %v3202, %v3202
        %v3251 = vpack.c.bf16 %v3203, %v3203
        %3252 = vst.msk [vmem:[#allocation3 + $0x10] sm:$0xf] %vm235, %v3204
        %3253 = vst.msk [vmem:[#allocation3 + $0x14] sm:$0xf] %vm235, %v3205
        %3254 = vst.msk [vmem:[#allocation3 + $0x18] sm:$0xf] %vm235, %v3206
        %3255 = vst.msk [vmem:[#allocation3 + $0x1c] sm:$0xf] %vm235, %v3207
        %3256 = vst.msk [vmem:[#allocation3 + $0x20] sm:$0xf] %vm235, %v3208
        %3257 = vst.msk [vmem:[#allocation3 + $0x24] sm:$0xf] %vm235, %v3209
        %3258 = vst.msk [vmem:[#allocation3 + $0x28] sm:$0xf] %vm235, %v3210
        %3259 = vst.msk [vmem:[#allocation3 + $0x2c] sm:$0xf] %vm235, %v3211
        %3260 = vst.msk [vmem:[#allocation3 + $0x30] sm:$0xf] %vm235, %v3212
        %3261 = vst.msk [vmem:[#allocation3 + $0x34] sm:$0xf] %vm235, %v3213
        %3262 = vst.msk [vmem:[#allocation3 + $0x38] sm:$0xf] %vm235, %v3214
        %3263 = vst.msk [vmem:[#allocation3 + $0x3c] sm:$0xf] %vm235, %v3215
        %3264 = vst.msk [vmem:[#allocation3 + $0x40] sm:$0xf] %vm235, %v3216
        %3265 = vst.msk [vmem:[#allocation3 + $0x44] sm:$0xf] %vm235, %v3217
        %3266 = vst.msk [vmem:[#allocation3 + $0x48] sm:$0xf] %vm235, %v3218
        %3267 = vst.msk [vmem:[#allocation3 + $0x4c] sm:$0xf] %vm235, %v3219
        %3268 = vst.msk [vmem:[#allocation3 + $0x50] sm:$0xf] %vm235, %v3220
        %3269 = vst.msk [vmem:[#allocation3 + $0x54] sm:$0xf] %vm235, %v3221
        %3270 = vst.msk [vmem:[#allocation3 + $0x58] sm:$0xf] %vm235, %v3222
        %3271 = vst.msk [vmem:[#allocation3 + $0x5c] sm:$0xf] %vm235, %v3223
        %3272 = vst.msk [vmem:[#allocation3 + $0x60] sm:$0xf] %vm235, %v3224
        %3273 = vst.msk [vmem:[#allocation3 + $0x64] sm:$0xf] %vm235, %v3225
        %3274 = vst.msk [vmem:[#allocation3 + $0x68] sm:$0xf] %vm235, %v3226
        %3275 = vst.msk [vmem:[#allocation3 + $0x6c] sm:$0xf] %vm235, %v3227
        %3276 = vst.msk [vmem:[#allocation3 + $0x70] sm:$0xf] %vm235, %v3228
        %3277 = vst.msk [vmem:[#allocation3 + $0x74] sm:$0xf] %vm235, %v3229
        %3278 = vst.msk [vmem:[#allocation3 + $0x78] sm:$0xf] %vm235, %v3230
        %3279 = vst.msk [vmem:[#allocation3 + $0x7c] sm:$0xf] %vm235, %v3231
        %3280 = vst.msk [vmem:[#allocation3 + $0x80] sm:$0xf] %vm235, %v3232
        %3281 = vst.msk [vmem:[#allocation3 + $0x84] sm:$0xf] %vm235, %v3233
        %3282 = vst.msk [vmem:[#allocation3 + $0x88] sm:$0xf] %vm235, %v3234
        %3283 = vst.msk [vmem:[#allocation3 + $0x8c] sm:$0xf] %vm235, %v3235
        %3284 = vst.msk [vmem:[#allocation3 + $0x90] sm:$0xf] %vm235, %v3236
        %3285 = vst.msk [vmem:[#allocation3 + $0x94] sm:$0xf] %vm235, %v3237
        %3286 = vst.msk [vmem:[#allocation3 + $0x98] sm:$0xf] %vm235, %v3238
        %3287 = vst.msk [vmem:[#allocation3 + $0x9c] sm:$0xf] %vm235, %v3239
        %3288 = vst.msk [vmem:[#allocation3 + $0xa0] sm:$0xf] %vm235, %v3240
        %3289 = vst.msk [vmem:[#allocation3 + $0xa4] sm:$0xf] %vm235, %v3241
        %3290 = vst.msk [vmem:[#allocation3 + $0xa8] sm:$0xf] %vm235, %v3242
        %3291 = vst.msk [vmem:[#allocation3 + $0xac] sm:$0xf] %vm235, %v3243
        %3292 = vst.msk [vmem:[#allocation3 + $0xb0] sm:$0xf] %vm235, %v3244
        %3293 = vst.msk [vmem:[#allocation3 + $0xb4] sm:$0xf] %vm235, %v3245
        %3294 = vst.msk [vmem:[#allocation3 + $0xb8] sm:$0xf] %vm235, %v3246
        %3295 = vst.msk [vmem:[#allocation3 + $0xbc] sm:$0xf] %vm235, %v3247
        %3296 = vst.msk [vmem:[#allocation3 + $0xc0] sm:$0xf] %vm235, %v3248
        %3297 = vst.msk [vmem:[#allocation3 + $0xc4] sm:$0xf] %vm235, %v3249
        %3298 = vst.msk [vmem:[#allocation3 + $0xc8] sm:$0xf] %vm235, %v3250
        %3299 = vst.msk [vmem:[#allocation3 + $0xcc] sm:$0xf] %vm235, %v3251
        %v3300 = vld [vmem:[#allocation3] sm:$0x8]
        %v3301 = vld [vmem:[#allocation3 + $0x4] sm:$0xf]
        %v3302 = vld [vmem:[#allocation3 + $0x8] sm:$0xf]
        %v3303 = vld [vmem:[#allocation3 + $0xc] sm:$0xf]
        %v3304 = vld [vmem:[#allocation3 + $0x10] sm:$0xf]
        %v3305 = vld [vmem:[#allocation3 + $0x14] sm:$0xf]
        %v3306 = vld [vmem:[#allocation3 + $0x18] sm:$0xf]
        %v3307 = vld [vmem:[#allocation3 + $0x1c] sm:$0xf]
        %v3308 = vld [vmem:[#allocation3 + $0x20] sm:$0xf]
        %v3309 = vld [vmem:[#allocation3 + $0x24] sm:$0xf]
        %v3310 = vld [vmem:[#allocation3 + $0x28] sm:$0xf]
        %v3311 = vld [vmem:[#allocation3 + $0x2c] sm:$0xf]
        %v3312 = vld [vmem:[#allocation3 + $0x30] sm:$0xf]
        %v3313 = vld [vmem:[#allocation3 + $0x34] sm:$0xf]
        %v3314 = vld [vmem:[#allocation3 + $0x38] sm:$0xf]
        %v3315 = vld [vmem:[#allocation3 + $0x3c] sm:$0xf]
        %v3316 = vld [vmem:[#allocation3 + $0x40] sm:$0xf]
        %v3317 = vld [vmem:[#allocation3 + $0x44] sm:$0xf]
        %v3318 = vld [vmem:[#allocation3 + $0x48] sm:$0xf]
        %v3319 = vld [vmem:[#allocation3 + $0x4c] sm:$0xf]
        %v3320 = vld [vmem:[#allocation3 + $0x50] sm:$0xf]
        %v3321 = vld [vmem:[#allocation3 + $0x54] sm:$0xf]
        %v3322 = vld [vmem:[#allocation3 + $0x58] sm:$0xf]
        %v3323 = vld [vmem:[#allocation3 + $0x5c] sm:$0xf]
        %v3324 = vld [vmem:[#allocation3 + $0x60] sm:$0xf]
        %v3325 = vld [vmem:[#allocation3 + $0x64] sm:$0xf]
        %v3326 = vld [vmem:[#allocation3 + $0x68] sm:$0xf]
        %v3327 = vld [vmem:[#allocation3 + $0x6c] sm:$0xf]
        %v3328 = vld [vmem:[#allocation3 + $0x70] sm:$0xf]
        %v3329 = vld [vmem:[#allocation3 + $0x74] sm:$0xf]
        %v3330 = vld [vmem:[#allocation3 + $0x78] sm:$0xf]
        %v3331 = vld [vmem:[#allocation3 + $0x7c] sm:$0xf]
        %v3332 = vld [vmem:[#allocation3 + $0x80] sm:$0xf]
        %v3333 = vld [vmem:[#allocation3 + $0x84] sm:$0xf]
        %v3334 = vld [vmem:[#allocation3 + $0x88] sm:$0xf]
        %v3335 = vld [vmem:[#allocation3 + $0x8c] sm:$0xf]
        %v3336 = vld [vmem:[#allocation3 + $0x90] sm:$0xf]
        %v3337 = vld [vmem:[#allocation3 + $0x94] sm:$0xf]
        %v3338 = vld [vmem:[#allocation3 + $0x98] sm:$0xf]
        %v3339 = vld [vmem:[#allocation3 + $0x9c] sm:$0xf]
        %v3340 = vld [vmem:[#allocation3 + $0xa0] sm:$0xf]
        %v3341 = vld [vmem:[#allocation3 + $0xa4] sm:$0xf]
        %v3342 = vld [vmem:[#allocation3 + $0xa8] sm:$0xf]
        %v3343 = vld [vmem:[#allocation3 + $0xac] sm:$0xf]
        %v3344 = vld [vmem:[#allocation3 + $0xb0] sm:$0xf]
        %v3345 = vld [vmem:[#allocation3 + $0xb4] sm:$0xf]
        %v3346 = vld [vmem:[#allocation3 + $0xb8] sm:$0xf]
        %v3347 = vld [vmem:[#allocation3 + $0xbc] sm:$0xf]
        %v3348 = vld [vmem:[#allocation3 + $0xc0] sm:$0xf]
        %v3349 = vld [vmem:[%s3] sm:$0xf]
        %s3350 = scalar_lea.vmem %s3, 4
        %v3351 = vld [vmem:[%s3350] sm:$0xf]
        %v3400 = vunpack.c.l.b16 %v3301
        %v3401 = vunpack.c.l.b16 %v3302
        %v3402 = vunpack.c.l.b16 %v3303
        %v3403 = vunpack.c.l.b16 %v3304
        %v3404 = vunpack.c.l.b16 %v3305
        %v3405 = vunpack.c.l.b16 %v3306
        %v3406 = vunpack.c.l.b16 %v3307
        %v3407 = vunpack.c.l.b16 %v3308
        %v3408 = vunpack.c.l.b16 %v3309
        %v3409 = vunpack.c.l.b16 %v3310
        %v3410 = vunpack.c.l.b16 %v3311
        %v3411 = vunpack.c.l.b16 %v3312
        %v3412 = vunpack.c.l.b16 %v3313
        %v3413 = vunpack.c.l.b16 %v3314
        %v3414 = vunpack.c.l.b16 %v3315
        %v3415 = vunpack.c.l.b16 %v3316
        %v3416 = vunpack.c.l.b16 %v3317
        %v3417 = vunpack.c.l.b16 %v3318
        %v3418 = vunpack.c.l.b16 %v3319
        %v3419 = vunpack.c.l.b16 %v3320
        %v3420 = vunpack.c.l.b16 %v3321
        %v3421 = vunpack.c.l.b16 %v3322
        %v3422 = vunpack.c.l.b16 %v3323
        %v3423 = vunpack.c.l.b16 %v3324
        %v3424 = vunpack.c.l.b16 %v3325
        %v3425 = vunpack.c.l.b16 %v3326
        %v3426 = vunpack.c.l.b16 %v3327
        %v3427 = vunpack.c.l.b16 %v3328
        %v3428 = vunpack.c.l.b16 %v3329
        %v3429 = vunpack.c.l.b16 %v3330
        %v3430 = vunpack.c.l.b16 %v3331
        %v3431 = vunpack.c.l.b16 %v3332
        %v3432 = vunpack.c.l.b16 %v3333
        %v3433 = vunpack.c.l.b16 %v3334
        %v3434 = vunpack.c.l.b16 %v3335
        %v3435 = vunpack.c.l.b16 %v3336
        %v3436 = vunpack.c.l.b16 %v3337
        %v3437 = vunpack.c.l.b16 %v3338
        %v3438 = vunpack.c.l.b16 %v3339
        %v3439 = vunpack.c.l.b16 %v3340
        %v3440 = vunpack.c.l.b16 %v3341
        %v3441 = vunpack.c.l.b16 %v3342
        %v3442 = vunpack.c.l.b16 %v3343
        %v3443 = vunpack.c.l.b16 %v3344
        %v3444 = vunpack.c.l.b16 %v3345
        %v3445 = vunpack.c.l.b16 %v3346
        %v3446 = vunpack.c.l.b16 %v3347
        %v3447 = vunpack.c.l.b16 %v3348
        %v3448 = vpack.c.b16 %v3401, %v3400
        %v3449 = vpack.c.b16 %v3403, %v3402
        %v3450 = vpack.c.b16 %v3405, %v3404
        %v3451 = vpack.c.b16 %v3407, %v3406
        %v3452 = vpack.c.b16 %v3409, %v3408
        %v3453 = vpack.c.b16 %v3411, %v3410
        %v3454 = vpack.c.b16 %v3413, %v3412
        %v3455 = vpack.c.b16 %v3415, %v3414
        %v3456 = vpack.c.b16 %v3417, %v3416
        %v3457 = vpack.c.b16 %v3419, %v3418
        %v3458 = vpack.c.b16 %v3421, %v3420
        %v3459 = vpack.c.b16 %v3423, %v3422
        %v3460 = vpack.c.b16 %v3425, %v3424
        %v3461 = vpack.c.b16 %v3427, %v3426
        %v3462 = vpack.c.b16 %v3429, %v3428
        %v3463 = vpack.c.b16 %v3431, %v3430
        %v3464 = vpack.c.b16 %v3433, %v3432
        %v3465 = vpack.c.b16 %v3435, %v3434
        %v3466 = vpack.c.b16 %v3437, %v3436
        %v3467 = vpack.c.b16 %v3439, %v3438
        %v3468 = vpack.c.b16 %v3441, %v3440
        %v3469 = vpack.c.b16 %v3443, %v3442
        %v3470 = vpack.c.b16 %v3445, %v3444
        %v3471 = vpack.c.b16 %v3447, %v3446
        %vm3472 = vcmask 64512
        %v3474 = vsel %vm3472, %v3351, 0
        %v3477 = vsel %vm3472, %v3448, 0
        %v3480 = vsel %vm3472, %v3449, 0
        %v3483 = vsel %vm3472, %v3450, 0
        %v3486 = vsel %vm3472, %v3451, 0
        %v3489 = vsel %vm3472, %v3452, 0
        %v3492 = vsel %vm3472, %v3453, 0
        %v3495 = vsel %vm3472, %v3454, 0
        %v3498 = vsel %vm3472, %v3455, 0
        %v3501 = vsel %vm3472, %v3456, 0
        %v3504 = vsel %vm3472, %v3457, 0
        %v3507 = vsel %vm3472, %v3458, 0
        %v3510 = vsel %vm3472, %v3459, 0
        %v3513 = vsel %vm3472, %v3460, 0
        %v3516 = vsel %vm3472, %v3461, 0
        %v3519 = vsel %vm3472, %v3462, 0
        %v3522 = vsel %vm3472, %v3463, 0
        %v3525 = vsel %vm3472, %v3464, 0
        %v3528 = vsel %vm3472, %v3465, 0
        %v3531 = vsel %vm3472, %v3466, 0
        %v3534 = vsel %vm3472, %v3467, 0
        %v3537 = vsel %vm3472, %v3468, 0
        %v3540 = vsel %vm3472, %v3469, 0
        %v3543 = vsel %vm3472, %v3470, 0
        %v3546 = vsel %vm3472, %v3471, 0
        %3548 = vmatpush.bf16.xpose.msra.mxu0 %v3498
        %3549 = vmatpush.bf16.xpose.msra.mxu0 %v3495
        %3550 = vmatpush.bf16.xpose.msra.mxu0 %v3492
        %3551 = vmatpush.bf16.xpose.msra.mxu0 %v3489
        %3552 = vmatpush.bf16.xpose.msra.mxu0 %v3486
        %3553 = vmatpush.bf16.xpose.msra.mxu0 %v3483
        %3554 = vmatpush.bf16.xpose.msra.mxu0 %v3480
        %3555 = vmatpush.bf16.xpose.msra.mxu0 %v3477
        %3556 = vmatmul.bf16.gmra.mxu0 %v3474
        %v3557 = vpop.f32.mrf.mxu0
        %v3558 = vadd.f32 0.0, %v3557
        %v3559 = vpop.f32.mrf.mxu0
        %3560 = vdwg.mxu0
        %3561 = vmatpush.bf16.xpose.msra.mxu0 %v3522
        %3562 = vmatpush.bf16.xpose.msra.mxu0 %v3519
        %3563 = vmatpush.bf16.xpose.msra.mxu0 %v3516
        %3564 = vmatpush.bf16.xpose.msra.mxu0 %v3513
        %3565 = vmatpush.bf16.xpose.msra.mxu0 %v3510
        %3566 = vmatpush.bf16.xpose.msra.mxu0 %v3507
        %3567 = vmatpush.bf16.xpose.msra.mxu0 %v3504
        %3568 = vmatpush.bf16.xpose.msra.mxu0 %v3501
        %3569 = vmatmul.bf16.gmra.mxu0 %v3474
        %v3570 = vpop.f32.mrf.mxu0
        %v3571 = vadd.f32 0.0, %v3570
        %v3572 = vpop.f32.mrf.mxu0
        %3573 = vdwg.mxu0
        %3574 = vmatpush.bf16.xpose.msra.mxu0 %v3546
        %3575 = vmatpush.bf16.xpose.msra.mxu0 %v3543
        %3576 = vmatpush.bf16.xpose.msra.mxu0 %v3540
        %3577 = vmatpush.bf16.xpose.msra.mxu0 %v3537
        %3578 = vmatpush.bf16.xpose.msra.mxu0 %v3534
        %3579 = vmatpush.bf16.xpose.msra.mxu0 %v3531
        %3580 = vmatpush.bf16.xpose.msra.mxu0 %v3528
        %3581 = vmatpush.bf16.xpose.msra.mxu0 %v3525
        %3582 = vmatmul.bf16.gmra.mxu0 %v3474
        %v3583 = vpop.f32.mrf.mxu0
        %v3584 = vadd.f32 0.0, %v3583
        %v3585 = vpop.f32.mrf.mxu0
        %3586 = vdwg.mxu0
        %v3588 = vunpack.c.l.b16 %v3300
        %v3589 = vpack.c.b16 %v3400, %v3588
        %v3590 = vpack.c.b16 %v3402, %v3401
        %v3591 = vpack.c.b16 %v3404, %v3403
        %v3592 = vpack.c.b16 %v3406, %v3405
        %v3593 = vpack.c.b16 %v3408, %v3407
        %v3594 = vpack.c.b16 %v3410, %v3409
        %v3595 = vpack.c.b16 %v3412, %v3411
        %v3596 = vpack.c.b16 %v3414, %v3413
        %v3597 = vpack.c.b16 %v3416, %v3415
        %v3598 = vpack.c.b16 %v3418, %v3417
        %v3599 = vpack.c.b16 %v3420, %v3419
        %v3600 = vpack.c.b16 %v3422, %v3421
        %v3601 = vpack.c.b16 %v3424, %v3423
        %v3602 = vpack.c.b16 %v3426, %v3425
        %v3603 = vpack.c.b16 %v3428, %v3427
        %v3604 = vpack.c.b16 %v3430, %v3429
        %v3605 = vpack.c.b16 %v3432, %v3431
        %v3606 = vpack.c.b16 %v3434, %v3433
        %v3607 = vpack.c.b16 %v3436, %v3435
        %v3608 = vpack.c.b16 %v3438, %v3437
        %v3609 = vpack.c.b16 %v3440, %v3439
        %v3610 = vpack.c.b16 %v3442, %v3441
        %v3611 = vpack.c.b16 %v3444, %v3443
        %v3612 = vpack.c.b16 %v3446, %v3445
        %v3613 = vpack.c.b16 %v3447, %v3447
        %vm3614 = vsmask.f32 4352
        %v3616 = vshrl.u32 %v3589, 16
        %v3618 = vrot.slane %v3616, 3
        %v3619 = vshll.u32 %v3589, 16
        %v3621 = vrot.slane %v3619, 4
        %v3622 = vor.u32 %v3618, %v3621
        %v3624 = vshrl.u32 %v3590, 16
        %v3626 = vrot.slane %v3624, 3
        %v3627 = vshll.u32 %v3590, 16
        %v3629 = vrot.slane %v3627, 4
        %v3630 = vor.u32 %v3626, %v3629
        %v3631 = vsel %vm3614, %v3622, %v3630
        %v3633 = vshrl.u32 %v3591, 16
        %v3635 = vrot.slane %v3633, 3
        %v3636 = vshll.u32 %v3591, 16
        %v3638 = vrot.slane %v3636, 4
        %v3639 = vor.u32 %v3635, %v3638
        %v3640 = vsel %vm3614, %v3630, %v3639
        %v3642 = vshrl.u32 %v3592, 16
        %v3644 = vrot.slane %v3642, 3
        %v3645 = vshll.u32 %v3592, 16
        %v3647 = vrot.slane %v3645, 4
        %v3648 = vor.u32 %v3644, %v3647
        %v3649 = vsel %vm3614, %v3639, %v3648
        %v3651 = vshrl.u32 %v3593, 16
        %v3653 = vrot.slane %v3651, 3
        %v3654 = vshll.u32 %v3593, 16
        %v3656 = vrot.slane %v3654, 4
        %v3657 = vor.u32 %v3653, %v3656
        %v3658 = vsel %vm3614, %v3648, %v3657
        %v3660 = vshrl.u32 %v3594, 16
        %v3662 = vrot.slane %v3660, 3
        %v3663 = vshll.u32 %v3594, 16
        %v3665 = vrot.slane %v3663, 4
        %v3666 = vor.u32 %v3662, %v3665
        %v3667 = vsel %vm3614, %v3657, %v3666
        %v3669 = vshrl.u32 %v3595, 16
        %v3671 = vrot.slane %v3669, 3
        %v3672 = vshll.u32 %v3595, 16
        %v3674 = vrot.slane %v3672, 4
        %v3675 = vor.u32 %v3671, %v3674
        %v3676 = vsel %vm3614, %v3666, %v3675
        %v3678 = vshrl.u32 %v3596, 16
        %v3680 = vrot.slane %v3678, 3
        %v3681 = vshll.u32 %v3596, 16
        %v3683 = vrot.slane %v3681, 4
        %v3684 = vor.u32 %v3680, %v3683
        %v3685 = vsel %vm3614, %v3675, %v3684
        %v3687 = vshrl.u32 %v3597, 16
        %v3689 = vrot.slane %v3687, 3
        %v3690 = vshll.u32 %v3597, 16
        %v3692 = vrot.slane %v3690, 4
        %v3693 = vor.u32 %v3689, %v3692
        %v3694 = vsel %vm3614, %v3684, %v3693
        %v3696 = vshrl.u32 %v3598, 16
        %v3698 = vrot.slane %v3696, 3
        %v3699 = vshll.u32 %v3598, 16
        %v3701 = vrot.slane %v3699, 4
        %v3702 = vor.u32 %v3698, %v3701
        %v3703 = vsel %vm3614, %v3693, %v3702
        %v3705 = vshrl.u32 %v3599, 16
        %v3707 = vrot.slane %v3705, 3
        %v3708 = vshll.u32 %v3599, 16
        %v3710 = vrot.slane %v3708, 4
        %v3711 = vor.u32 %v3707, %v3710
        %v3712 = vsel %vm3614, %v3702, %v3711
        %v3714 = vshrl.u32 %v3600, 16
        %v3716 = vrot.slane %v3714, 3
        %v3717 = vshll.u32 %v3600, 16
        %v3719 = vrot.slane %v3717, 4
        %v3720 = vor.u32 %v3716, %v3719
        %v3721 = vsel %vm3614, %v3711, %v3720
        %v3723 = vshrl.u32 %v3601, 16
        %v3725 = vrot.slane %v3723, 3
        %v3726 = vshll.u32 %v3601, 16
        %v3728 = vrot.slane %v3726, 4
        %v3729 = vor.u32 %v3725, %v3728
        %v3730 = vsel %vm3614, %v3720, %v3729
        %v3732 = vshrl.u32 %v3602, 16
        %v3734 = vrot.slane %v3732, 3
        %v3735 = vshll.u32 %v3602, 16
        %v3737 = vrot.slane %v3735, 4
        %v3738 = vor.u32 %v3734, %v3737
        %v3739 = vsel %vm3614, %v3729, %v3738
        %v3741 = vshrl.u32 %v3603, 16
        %v3743 = vrot.slane %v3741, 3
        %v3744 = vshll.u32 %v3603, 16
        %v3746 = vrot.slane %v3744, 4
        %v3747 = vor.u32 %v3743, %v3746
        %v3748 = vsel %vm3614, %v3738, %v3747
        %v3750 = vshrl.u32 %v3604, 16
        %v3752 = vrot.slane %v3750, 3
        %v3753 = vshll.u32 %v3604, 16
        %v3755 = vrot.slane %v3753, 4
        %v3756 = vor.u32 %v3752, %v3755
        %v3757 = vsel %vm3614, %v3747, %v3756
        %v3759 = vshrl.u32 %v3605, 16
        %v3761 = vrot.slane %v3759, 3
        %v3762 = vshll.u32 %v3605, 16
        %v3764 = vrot.slane %v3762, 4
        %v3765 = vor.u32 %v3761, %v3764
        %v3766 = vsel %vm3614, %v3756, %v3765
        %v3768 = vshrl.u32 %v3606, 16
        %v3770 = vrot.slane %v3768, 3
        %v3771 = vshll.u32 %v3606, 16
        %v3773 = vrot.slane %v3771, 4
        %v3774 = vor.u32 %v3770, %v3773
        %v3775 = vsel %vm3614, %v3765, %v3774
        %v3777 = vshrl.u32 %v3607, 16
        %v3779 = vrot.slane %v3777, 3
        %v3780 = vshll.u32 %v3607, 16
        %v3782 = vrot.slane %v3780, 4
        %v3783 = vor.u32 %v3779, %v3782
        %v3784 = vsel %vm3614, %v3774, %v3783
        %v3786 = vshrl.u32 %v3608, 16
        %v3788 = vrot.slane %v3786, 3
        %v3789 = vshll.u32 %v3608, 16
        %v3791 = vrot.slane %v3789, 4
        %v3792 = vor.u32 %v3788, %v3791
        %v3793 = vsel %vm3614, %v3783, %v3792
        %v3795 = vshrl.u32 %v3609, 16
        %v3797 = vrot.slane %v3795, 3
        %v3798 = vshll.u32 %v3609, 16
        %v3800 = vrot.slane %v3798, 4
        %v3801 = vor.u32 %v3797, %v3800
        %v3802 = vsel %vm3614, %v3792, %v3801
        %v3804 = vshrl.u32 %v3610, 16
        %v3806 = vrot.slane %v3804, 3
        %v3807 = vshll.u32 %v3610, 16
        %v3809 = vrot.slane %v3807, 4
        %v3810 = vor.u32 %v3806, %v3809
        %v3811 = vsel %vm3614, %v3801, %v3810
        %v3813 = vshrl.u32 %v3611, 16
        %v3815 = vrot.slane %v3813, 3
        %v3816 = vshll.u32 %v3611, 16
        %v3818 = vrot.slane %v3816, 4
        %v3819 = vor.u32 %v3815, %v3818
        %v3820 = vsel %vm3614, %v3810, %v3819
        %v3822 = vshrl.u32 %v3612, 16
        %v3824 = vrot.slane %v3822, 3
        %v3825 = vshll.u32 %v3612, 16
        %v3827 = vrot.slane %v3825, 4
        %v3828 = vor.u32 %v3824, %v3827
        %v3829 = vsel %vm3614, %v3819, %v3828
        %v3831 = vshrl.u32 %v3613, 16
        %v3833 = vrot.slane %v3831, 3
        %v3834 = vshll.u32 %v3613, 16
        %v3836 = vrot.slane %v3834, 4
        %v3837 = vor.u32 %v3833, %v3836
        %v3838 = vsel %vm3614, %v3828, %v3837
        %v3840 = vsel %vm3472, %v3349, 0
        %v3843 = vsel %vm3472, %v3631, 0
        %v3846 = vsel %vm3472, %v3640, 0
        %v3849 = vsel %vm3472, %v3649, 0
        %v3852 = vsel %vm3472, %v3658, 0
        %v3855 = vsel %vm3472, %v3667, 0
        %v3858 = vsel %vm3472, %v3676, 0
        %v3861 = vsel %vm3472, %v3685, 0
        %v3864 = vsel %vm3472, %v3694, 0
        %v3867 = vsel %vm3472, %v3703, 0
        %v3870 = vsel %vm3472, %v3712, 0
        %v3873 = vsel %vm3472, %v3721, 0
        %v3876 = vsel %vm3472, %v3730, 0
        %v3879 = vsel %vm3472, %v3739, 0
        %v3882 = vsel %vm3472, %v3748, 0
        %v3885 = vsel %vm3472, %v3757, 0
        %v3888 = vsel %vm3472, %v3766, 0
        %v3891 = vsel %vm3472, %v3775, 0
        %v3894 = vsel %vm3472, %v3784, 0
        %v3897 = vsel %vm3472, %v3793, 0
        %v3900 = vsel %vm3472, %v3802, 0
        %v3903 = vsel %vm3472, %v3811, 0
        %v3906 = vsel %vm3472, %v3820, 0
        %v3909 = vsel %vm3472, %v3829, 0
        %v3912 = vsel %vm3472, %v3838, 0
        %3914 = vmatpush.bf16.xpose.msra.mxu0 %v3864
        %3915 = vmatpush.bf16.xpose.msra.mxu0 %v3861
        %3916 = vmatpush.bf16.xpose.msra.mxu0 %v3858
        %3917 = vmatpush.bf16.xpose.msra.mxu0 %v3855
        %3918 = vmatpush.bf16.xpose.msra.mxu0 %v3852
        %3919 = vmatpush.bf16.xpose.msra.mxu0 %v3849
        %3920 = vmatpush.bf16.xpose.msra.mxu0 %v3846
        %3921 = vmatpush.bf16.xpose.msra.mxu0 %v3843
        %3922 = vmatmul.bf16.gmra.mxu0 %v3840
        %v3923 = vpop.f32.mrf.mxu0
        %v3924 = vadd.f32 %v3558, %v3923
        %v3925 = vpop.f32.mrf.mxu0
        %3926 = vdwg.mxu0
        %3927 = vmatpush.bf16.xpose.msra.mxu0 %v3888
        %3928 = vmatpush.bf16.xpose.msra.mxu0 %v3885
        %3929 = vmatpush.bf16.xpose.msra.mxu0 %v3882
        %3930 = vmatpush.bf16.xpose.msra.mxu0 %v3879
        %3931 = vmatpush.bf16.xpose.msra.mxu0 %v3876
        %3932 = vmatpush.bf16.xpose.msra.mxu0 %v3873
        %3933 = vmatpush.bf16.xpose.msra.mxu0 %v3870
        %3934 = vmatpush.bf16.xpose.msra.mxu0 %v3867
        %3935 = vmatmul.bf16.gmra.mxu0 %v3840
        %v3936 = vpop.f32.mrf.mxu0
        %v3937 = vadd.f32 %v3571, %v3936
        %v3938 = vpop.f32.mrf.mxu0
        %3939 = vdwg.mxu0
        %3940 = vmatpush.bf16.xpose.msra.mxu0 %v3912
        %3941 = vmatpush.bf16.xpose.msra.mxu0 %v3909
        %3942 = vmatpush.bf16.xpose.msra.mxu0 %v3906
        %3943 = vmatpush.bf16.xpose.msra.mxu0 %v3903
        %3944 = vmatpush.bf16.xpose.msra.mxu0 %v3900
        %3945 = vmatpush.bf16.xpose.msra.mxu0 %v3897
        %3946 = vmatpush.bf16.xpose.msra.mxu0 %v3894
        %3947 = vmatpush.bf16.xpose.msra.mxu0 %v3891
        %3948 = vmatmul.bf16.gmra.mxu0 %v3840
        %v3949 = vpop.f32.mrf.mxu0
        %v3950 = vadd.f32 %v3584, %v3949
        %v3951 = vpop.f32.mrf.mxu0
        %3952 = vdwg.mxu0
        %v3953 = vld [vmem:[#allocation3 + $0x4] sm:$0xf]
        %v3954 = vld [vmem:[#allocation3 + $0x8] sm:$0xf]
        %v3955 = vld [vmem:[#allocation3 + $0xc] sm:$0xf]
        %v3956 = vld [vmem:[#allocation3 + $0x10] sm:$0xf]
        %v3957 = vld [vmem:[#allocation3 + $0x14] sm:$0xf]
        %v3958 = vld [vmem:[#allocation3 + $0x18] sm:$0xf]
        %v3959 = vld [vmem:[#allocation3 + $0x1c] sm:$0xf]
        %v3960 = vld [vmem:[#allocation3 + $0x20] sm:$0xf]
        %v3961 = vld [vmem:[#allocation3 + $0x24] sm:$0xf]
        %v3962 = vld [vmem:[#allocation3 + $0x28] sm:$0xf]
        %v3963 = vld [vmem:[#allocation3 + $0x2c] sm:$0xf]
        %v3964 = vld [vmem:[#allocation3 + $0x30] sm:$0xf]
        %v3965 = vld [vmem:[#allocation3 + $0x34] sm:$0xf]
        %v3966 = vld [vmem:[#allocation3 + $0x38] sm:$0xf]
        %v3967 = vld [vmem:[#allocation3 + $0x3c] sm:$0xf]
        %v3968 = vld [vmem:[#allocation3 + $0x40] sm:$0xf]
        %v3969 = vld [vmem:[#allocation3 + $0x44] sm:$0xf]
        %v3970 = vld [vmem:[#allocation3 + $0x48] sm:$0xf]
        %v3971 = vld [vmem:[#allocation3 + $0x4c] sm:$0xf]
        %v3972 = vld [vmem:[#allocation3 + $0x50] sm:$0xf]
        %v3973 = vld [vmem:[#allocation3 + $0x54] sm:$0xf]
        %v3974 = vld [vmem:[#allocation3 + $0x58] sm:$0xf]
        %v3975 = vld [vmem:[#allocation3 + $0x5c] sm:$0xf]
        %v3976 = vld [vmem:[#allocation3 + $0x60] sm:$0xf]
        %v3977 = vld [vmem:[#allocation3 + $0x64] sm:$0xf]
        %v3978 = vld [vmem:[#allocation3 + $0x68] sm:$0xf]
        %v3979 = vld [vmem:[#allocation3 + $0x6c] sm:$0xf]
        %v3980 = vld [vmem:[#allocation3 + $0x70] sm:$0xf]
        %v3981 = vld [vmem:[#allocation3 + $0x74] sm:$0xf]
        %v3982 = vld [vmem:[#allocation3 + $0x78] sm:$0xf]
        %v3983 = vld [vmem:[#allocation3 + $0x7c] sm:$0xf]
        %v3984 = vld [vmem:[#allocation3 + $0x80] sm:$0xf]
        %v3985 = vld [vmem:[#allocation3 + $0x84] sm:$0xf]
        %v3986 = vld [vmem:[#allocation3 + $0x88] sm:$0xf]
        %v3987 = vld [vmem:[#allocation3 + $0x8c] sm:$0xf]
        %v3988 = vld [vmem:[#allocation3 + $0x90] sm:$0xf]
        %v3989 = vld [vmem:[#allocation3 + $0x94] sm:$0xf]
        %v3990 = vld [vmem:[#allocation3 + $0x98] sm:$0xf]
        %v3991 = vld [vmem:[#allocation3 + $0x9c] sm:$0xf]
        %v3992 = vld [vmem:[#allocation3 + $0xa0] sm:$0xf]
        %v3993 = vld [vmem:[#allocation3 + $0xa4] sm:$0xf]
        %v3994 = vld [vmem:[#allocation3 + $0xa8] sm:$0xf]
        %v3995 = vld [vmem:[#allocation3 + $0xac] sm:$0xf]
        %v3996 = vld [vmem:[#allocation3 + $0xb0] sm:$0xf]
        %v3997 = vld [vmem:[#allocation3 + $0xb4] sm:$0xf]
        %v3998 = vld [vmem:[#allocation3 + $0xb8] sm:$0xf]
        %v3999 = vld [vmem:[#allocation3 + $0xbc] sm:$0xf]
        %v4000 = vld [vmem:[#allocation3 + $0xc0] sm:$0xf]
        %v4001 = vld [vmem:[#allocation3 + $0xc4] sm:$0x1]
        %s4002 = scalar_lea.vmem %s3, 8
        %v4003 = vld [vmem:[%s4002] sm:$0xf]
        %v4053 = vunpack.c.l.b16 %v3953
        %v4054 = vunpack.c.l.b16 %v3954
        %v4055 = vunpack.c.l.b16 %v3955
        %v4056 = vunpack.c.l.b16 %v3956
        %v4057 = vunpack.c.l.b16 %v3957
        %v4058 = vunpack.c.l.b16 %v3958
        %v4059 = vunpack.c.l.b16 %v3959
        %v4060 = vunpack.c.l.b16 %v3960
        %v4061 = vunpack.c.l.b16 %v3961
        %v4062 = vunpack.c.l.b16 %v3962
        %v4063 = vunpack.c.l.b16 %v3963
        %v4064 = vunpack.c.l.b16 %v3964
        %v4065 = vunpack.c.l.b16 %v3965
        %v4066 = vunpack.c.l.b16 %v3966
        %v4067 = vunpack.c.l.b16 %v3967
        %v4068 = vunpack.c.l.b16 %v3968
        %v4069 = vunpack.c.l.b16 %v3969
        %v4070 = vunpack.c.l.b16 %v3970
        %v4071 = vunpack.c.l.b16 %v3971
        %v4072 = vunpack.c.l.b16 %v3972
        %v4073 = vunpack.c.l.b16 %v3973
        %v4074 = vunpack.c.l.b16 %v3974
        %v4075 = vunpack.c.l.b16 %v3975
        %v4076 = vunpack.c.l.b16 %v3976
        %v4077 = vunpack.c.l.b16 %v3977
        %v4078 = vunpack.c.l.b16 %v3978
        %v4079 = vunpack.c.l.b16 %v3979
        %v4080 = vunpack.c.l.b16 %v3980
        %v4081 = vunpack.c.l.b16 %v3981
        %v4082 = vunpack.c.l.b16 %v3982
        %v4083 = vunpack.c.l.b16 %v3983
        %v4084 = vunpack.c.l.b16 %v3984
        %v4085 = vunpack.c.l.b16 %v3985
        %v4086 = vunpack.c.l.b16 %v3986
        %v4087 = vunpack.c.l.b16 %v3987
        %v4088 = vunpack.c.l.b16 %v3988
        %v4089 = vunpack.c.l.b16 %v3989
        %v4090 = vunpack.c.l.b16 %v3990
        %v4091 = vunpack.c.l.b16 %v3991
        %v4092 = vunpack.c.l.b16 %v3992
        %v4093 = vunpack.c.l.b16 %v3993
        %v4094 = vunpack.c.l.b16 %v3994
        %v4095 = vunpack.c.l.b16 %v3995
        %v4096 = vunpack.c.l.b16 %v3996
        %v4097 = vunpack.c.l.b16 %v3997
        %v4098 = vunpack.c.l.b16 %v3998
        %v4099 = vunpack.c.l.b16 %v3999
        %v4100 = vunpack.c.l.b16 %v4000
        %v4101 = vunpack.c.l.b16 %v4001
        %v4102 = vpack.c.b16 %v4054, %v4053
        %v4103 = vpack.c.b16 %v4056, %v4055
        %v4104 = vpack.c.b16 %v4058, %v4057
        %v4105 = vpack.c.b16 %v4060, %v4059
        %v4106 = vpack.c.b16 %v4062, %v4061
        %v4107 = vpack.c.b16 %v4064, %v4063
        %v4108 = vpack.c.b16 %v4066, %v4065
        %v4109 = vpack.c.b16 %v4068, %v4067
        %v4110 = vpack.c.b16 %v4070, %v4069
        %v4111 = vpack.c.b16 %v4072, %v4071
        %v4112 = vpack.c.b16 %v4074, %v4073
        %v4113 = vpack.c.b16 %v4076, %v4075
        %v4114 = vpack.c.b16 %v4078, %v4077
        %v4115 = vpack.c.b16 %v4080, %v4079
        %v4116 = vpack.c.b16 %v4082, %v4081
        %v4117 = vpack.c.b16 %v4084, %v4083
        %v4118 = vpack.c.b16 %v4086, %v4085
        %v4119 = vpack.c.b16 %v4088, %v4087
        %v4120 = vpack.c.b16 %v4090, %v4089
        %v4121 = vpack.c.b16 %v4092, %v4091
        %v4122 = vpack.c.b16 %v4094, %v4093
        %v4123 = vpack.c.b16 %v4096, %v4095
        %v4124 = vpack.c.b16 %v4098, %v4097
        %v4125 = vpack.c.b16 %v4100, %v4099
        %v4126 = vpack.c.b16 %v4101, %v4101
        %v4128 = vshrl.u32 %v4102, 16
        %v4130 = vshll.u32 %v4102, 16
        %v4132 = vrot.slane %v4130, 1
        %v4133 = vor.u32 %v4128, %v4132
        %v4135 = vshll.u32 %v4103, 16
        %v4137 = vrot.slane %v4135, 1
        %v4138 = vsel %vm626, %v4133, %v4137
        %v4139 = vshrl.u32 %v4103, 16
        %v4141 = vor.u32 %v4139, %v4137
        %v4143 = vshll.u32 %v4104, 16
        %v4145 = vrot.slane %v4143, 1
        %v4146 = vsel %vm626, %v4141, %v4145
        %v4147 = vshrl.u32 %v4104, 16
        %v4149 = vor.u32 %v4147, %v4145
        %v4151 = vshll.u32 %v4105, 16
        %v4153 = vrot.slane %v4151, 1
        %v4154 = vsel %vm626, %v4149, %v4153
        %v4155 = vshrl.u32 %v4105, 16
        %v4157 = vor.u32 %v4155, %v4153
        %v4159 = vshll.u32 %v4106, 16
        %v4161 = vrot.slane %v4159, 1
        %v4162 = vsel %vm626, %v4157, %v4161
        %v4163 = vshrl.u32 %v4106, 16
        %v4165 = vor.u32 %v4163, %v4161
        %v4167 = vshll.u32 %v4107, 16
        %v4169 = vrot.slane %v4167, 1
        %v4170 = vsel %vm626, %v4165, %v4169
        %v4171 = vshrl.u32 %v4107, 16
        %v4173 = vor.u32 %v4171, %v4169
        %v4175 = vshll.u32 %v4108, 16
        %v4177 = vrot.slane %v4175, 1
        %v4178 = vsel %vm626, %v4173, %v4177
        %v4179 = vshrl.u32 %v4108, 16
        %v4181 = vor.u32 %v4179, %v4177
        %v4183 = vshll.u32 %v4109, 16
        %v4185 = vrot.slane %v4183, 1
        %v4186 = vsel %vm626, %v4181, %v4185
        %v4187 = vshrl.u32 %v4109, 16
        %v4189 = vor.u32 %v4187, %v4185
        %v4191 = vshll.u32 %v4110, 16
        %v4193 = vrot.slane %v4191, 1
        %v4194 = vsel %vm626, %v4189, %v4193
        %v4195 = vshrl.u32 %v4110, 16
        %v4197 = vor.u32 %v4195, %v4193
        %v4199 = vshll.u32 %v4111, 16
        %v4201 = vrot.slane %v4199, 1
        %v4202 = vsel %vm626, %v4197, %v4201
        %v4203 = vshrl.u32 %v4111, 16
        %v4205 = vor.u32 %v4203, %v4201
        %v4207 = vshll.u32 %v4112, 16
        %v4209 = vrot.slane %v4207, 1
        %v4210 = vsel %vm626, %v4205, %v4209
        %v4211 = vshrl.u32 %v4112, 16
        %v4213 = vor.u32 %v4211, %v4209
        %v4215 = vshll.u32 %v4113, 16
        %v4217 = vrot.slane %v4215, 1
        %v4218 = vsel %vm626, %v4213, %v4217
        %v4219 = vshrl.u32 %v4113, 16
        %v4221 = vor.u32 %v4219, %v4217
        %v4223 = vshll.u32 %v4114, 16
        %v4225 = vrot.slane %v4223, 1
        %v4226 = vsel %vm626, %v4221, %v4225
        %v4227 = vshrl.u32 %v4114, 16
        %v4229 = vor.u32 %v4227, %v4225
        %v4231 = vshll.u32 %v4115, 16
        %v4233 = vrot.slane %v4231, 1
        %v4234 = vsel %vm626, %v4229, %v4233
        %v4235 = vshrl.u32 %v4115, 16
        %v4237 = vor.u32 %v4235, %v4233
        %v4239 = vshll.u32 %v4116, 16
        %v4241 = vrot.slane %v4239, 1
        %v4242 = vsel %vm626, %v4237, %v4241
        %v4243 = vshrl.u32 %v4116, 16
        %v4245 = vor.u32 %v4243, %v4241
        %v4247 = vshll.u32 %v4117, 16
        %v4249 = vrot.slane %v4247, 1
        %v4250 = vsel %vm626, %v4245, %v4249
        %v4251 = vshrl.u32 %v4117, 16
        %v4253 = vor.u32 %v4251, %v4249
        %v4255 = vshll.u32 %v4118, 16
        %v4257 = vrot.slane %v4255, 1
        %v4258 = vsel %vm626, %v4253, %v4257
        %v4259 = vshrl.u32 %v4118, 16
        %v4261 = vor.u32 %v4259, %v4257
        %v4263 = vshll.u32 %v4119, 16
        %v4265 = vrot.slane %v4263, 1
        %v4266 = vsel %vm626, %v4261, %v4265
        %v4267 = vshrl.u32 %v4119, 16
        %v4269 = vor.u32 %v4267, %v4265
        %v4271 = vshll.u32 %v4120, 16
        %v4273 = vrot.slane %v4271, 1
        %v4274 = vsel %vm626, %v4269, %v4273
        %v4275 = vshrl.u32 %v4120, 16
        %v4277 = vor.u32 %v4275, %v4273
        %v4279 = vshll.u32 %v4121, 16
        %v4281 = vrot.slane %v4279, 1
        %v4282 = vsel %vm626, %v4277, %v4281
        %v4283 = vshrl.u32 %v4121, 16
        %v4285 = vor.u32 %v4283, %v4281
        %v4287 = vshll.u32 %v4122, 16
        %v4289 = vrot.slane %v4287, 1
        %v4290 = vsel %vm626, %v4285, %v4289
        %v4291 = vshrl.u32 %v4122, 16
        %v4293 = vor.u32 %v4291, %v4289
        %v4295 = vshll.u32 %v4123, 16
        %v4297 = vrot.slane %v4295, 1
        %v4298 = vsel %vm626, %v4293, %v4297
        %v4299 = vshrl.u32 %v4123, 16
        %v4301 = vor.u32 %v4299, %v4297
        %v4303 = vshll.u32 %v4124, 16
        %v4305 = vrot.slane %v4303, 1
        %v4306 = vsel %vm626, %v4301, %v4305
        %v4307 = vshrl.u32 %v4124, 16
        %v4309 = vor.u32 %v4307, %v4305
        %v4311 = vshll.u32 %v4125, 16
        %v4313 = vrot.slane %v4311, 1
        %v4314 = vsel %vm626, %v4309, %v4313
        %v4315 = vshrl.u32 %v4125, 16
        %v4317 = vor.u32 %v4315, %v4313
        %v4319 = vshll.u32 %v4126, 16
        %v4321 = vrot.slane %v4319, 1
        %v4322 = vsel %vm626, %v4317, %v4321
        %v4324 = vsel %vm3472, %v4003, 0
        %v4327 = vsel %vm3472, %v4138, 0
        %v4330 = vsel %vm3472, %v4146, 0
        %v4333 = vsel %vm3472, %v4154, 0
        %v4336 = vsel %vm3472, %v4162, 0
        %v4339 = vsel %vm3472, %v4170, 0
        %v4342 = vsel %vm3472, %v4178, 0
        %v4345 = vsel %vm3472, %v4186, 0
        %v4348 = vsel %vm3472, %v4194, 0
        %v4351 = vsel %vm3472, %v4202, 0
        %v4354 = vsel %vm3472, %v4210, 0
        %v4357 = vsel %vm3472, %v4218, 0
        %v4360 = vsel %vm3472, %v4226, 0
        %v4363 = vsel %vm3472, %v4234, 0
        %v4366 = vsel %vm3472, %v4242, 0
        %v4369 = vsel %vm3472, %v4250, 0
        %v4372 = vsel %vm3472, %v4258, 0
        %v4375 = vsel %vm3472, %v4266, 0
        %v4378 = vsel %vm3472, %v4274, 0
        %v4381 = vsel %vm3472, %v4282, 0
        %v4384 = vsel %vm3472, %v4290, 0
        %v4387 = vsel %vm3472, %v4298, 0
        %v4390 = vsel %vm3472, %v4306, 0
        %v4393 = vsel %vm3472, %v4314, 0
        %v4396 = vsel %vm3472, %v4322, 0
        %4398 = vmatpush.bf16.xpose.msra.mxu0 %v4348
        %4399 = vmatpush.bf16.xpose.msra.mxu0 %v4345
        %4400 = vmatpush.bf16.xpose.msra.mxu0 %v4342
        %4401 = vmatpush.bf16.xpose.msra.mxu0 %v4339
        %4402 = vmatpush.bf16.xpose.msra.mxu0 %v4336
        %4403 = vmatpush.bf16.xpose.msra.mxu0 %v4333
        %4404 = vmatpush.bf16.xpose.msra.mxu0 %v4330
        %4405 = vmatpush.bf16.xpose.msra.mxu0 %v4327
        %4406 = vmatmul.bf16.gmra.mxu0 %v4324
        %v4407 = vpop.f32.mrf.mxu0
        %v4408 = vadd.f32 0.0, %v4407
        %v4409 = vpop.f32.mrf.mxu0
        %4410 = vdwg.mxu0
        %4411 = vmatpush.bf16.xpose.msra.mxu0 %v4372
        %4412 = vmatpush.bf16.xpose.msra.mxu0 %v4369
        %4413 = vmatpush.bf16.xpose.msra.mxu0 %v4366
        %4414 = vmatpush.bf16.xpose.msra.mxu0 %v4363
        %4415 = vmatpush.bf16.xpose.msra.mxu0 %v4360
        %4416 = vmatpush.bf16.xpose.msra.mxu0 %v4357
        %4417 = vmatpush.bf16.xpose.msra.mxu0 %v4354
        %4418 = vmatpush.bf16.xpose.msra.mxu0 %v4351
        %4419 = vmatmul.bf16.gmra.mxu0 %v4324
        %v4420 = vpop.f32.mrf.mxu0
        %v4421 = vadd.f32 0.0, %v4420
        %v4422 = vpop.f32.mrf.mxu0
        %4423 = vdwg.mxu0
        %4424 = vmatpush.bf16.xpose.msra.mxu0 %v4396
        %4425 = vmatpush.bf16.xpose.msra.mxu0 %v4393
        %4426 = vmatpush.bf16.xpose.msra.mxu0 %v4390
        %4427 = vmatpush.bf16.xpose.msra.mxu0 %v4387
        %4428 = vmatpush.bf16.xpose.msra.mxu0 %v4384
        %4429 = vmatpush.bf16.xpose.msra.mxu0 %v4381
        %4430 = vmatpush.bf16.xpose.msra.mxu0 %v4378
        %4431 = vmatpush.bf16.xpose.msra.mxu0 %v4375
        %4432 = vmatmul.bf16.gmra.mxu0 %v4324
        %v4433 = vpop.f32.mrf.mxu0
        %v4434 = vadd.f32 0.0, %v4433
        %v4435 = vpop.f32.mrf.mxu0
        %4436 = vdwg.mxu0
        %v4437 = vadd.f32 %v3924, %v4408
        %v4438 = vadd.f32 %v3937, %v4421
        %v4439 = vadd.f32 %v3950, %v4434
        %v4440 = vld [vmem:[#allocation3 + $0xc] sm:$0x8]
        %v4441 = vld [vmem:[#allocation3 + $0x10] sm:$0xf]
        %v4442 = vld [vmem:[#allocation3 + $0x14] sm:$0xf]
        %v4443 = vld [vmem:[#allocation3 + $0x18] sm:$0xf]
        %v4444 = vld [vmem:[#allocation3 + $0x1c] sm:$0xf]
        %v4445 = vld [vmem:[#allocation3 + $0x20] sm:$0xf]
        %v4446 = vld [vmem:[#allocation3 + $0x24] sm:$0xf]
        %v4447 = vld [vmem:[#allocation3 + $0x28] sm:$0xf]
        %v4448 = vld [vmem:[#allocation3 + $0x2c] sm:$0xf]
        %v4449 = vld [vmem:[#allocation3 + $0x30] sm:$0xf]
        %v4450 = vld [vmem:[#allocation3 + $0x34] sm:$0xf]
        %v4451 = vld [vmem:[#allocation3 + $0x38] sm:$0xf]
        %v4452 = vld [vmem:[#allocation3 + $0x3c] sm:$0xf]
        %v4453 = vld [vmem:[#allocation3 + $0x40] sm:$0xf]
        %v4454 = vld [vmem:[#allocation3 + $0x44] sm:$0xf]
        %v4455 = vld [vmem:[#allocation3 + $0x48] sm:$0xf]
        %v4456 = vld [vmem:[#allocation3 + $0x4c] sm:$0xf]
        %v4457 = vld [vmem:[#allocation3 + $0x50] sm:$0xf]
        %v4458 = vld [vmem:[#allocation3 + $0x54] sm:$0xf]
        %v4459 = vld [vmem:[#allocation3 + $0x58] sm:$0xf]
        %v4460 = vld [vmem:[#allocation3 + $0x5c] sm:$0xf]
        %v4461 = vld [vmem:[#allocation3 + $0x60] sm:$0xf]
        %v4462 = vld [vmem:[#allocation3 + $0x64] sm:$0xf]
        %v4463 = vld [vmem:[#allocation3 + $0x68] sm:$0xf]
        %v4464 = vld [vmem:[#allocation3 + $0x6c] sm:$0xf]
        %v4465 = vld [vmem:[#allocation3 + $0x70] sm:$0xf]
        %v4466 = vld [vmem:[#allocation3 + $0x74] sm:$0xf]
        %v4467 = vld [vmem:[#allocation3 + $0x78] sm:$0xf]
        %v4468 = vld [vmem:[#allocation3 + $0x7c] sm:$0xf]
        %v4469 = vld [vmem:[#allocation3 + $0x80] sm:$0xf]
        %v4470 = vld [vmem:[#allocation3 + $0x84] sm:$0xf]
        %v4471 = vld [vmem:[#allocation3 + $0x88] sm:$0xf]
        %v4472 = vld [vmem:[#allocation3 + $0x8c] sm:$0xf]
        %v4473 = vld [vmem:[#allocation3 + $0x90] sm:$0xf]
        %v4474 = vld [vmem:[#allocation3 + $0x94] sm:$0xf]
        %v4475 = vld [vmem:[#allocation3 + $0x98] sm:$0xf]
        %v4476 = vld [vmem:[#allocation3 + $0x9c] sm:$0xf]
        %v4477 = vld [vmem:[#allocation3 + $0xa0] sm:$0xf]
        %v4478 = vld [vmem:[#allocation3 + $0xa4] sm:$0xf]
        %v4479 = vld [vmem:[#allocation3 + $0xa8] sm:$0xf]
        %v4480 = vld [vmem:[#allocation3 + $0xac] sm:$0xf]
        %v4481 = vld [vmem:[#allocation3 + $0xb0] sm:$0xf]
        %v4482 = vld [vmem:[#allocation3 + $0xb4] sm:$0xf]
        %v4483 = vld [vmem:[#allocation3 + $0xb8] sm:$0xf]
        %v4484 = vld [vmem:[#allocation3 + $0xbc] sm:$0xf]
        %v4485 = vld [vmem:[#allocation3 + $0xc0] sm:$0xf]
        %v4486 = vld [vmem:[#allocation3 + $0xc4] sm:$0xf]
        %v4487 = vld [vmem:[#allocation3 + $0xc8] sm:$0xf]
        %v4488 = vld [vmem:[#allocation3 + $0xcc] sm:$0xf]
        %s4489 = scalar_lea.vmem %s3, 12
        %v4490 = vld [vmem:[%s4489] sm:$0xf]
        %v4540 = vunpack.c.l.b16 %v4440
        %v4541 = vunpack.c.l.b16 %v4441
        %v4542 = vunpack.c.l.b16 %v4442
        %v4543 = vunpack.c.l.b16 %v4443
        %v4544 = vunpack.c.l.b16 %v4444
        %v4545 = vunpack.c.l.b16 %v4445
        %v4546 = vunpack.c.l.b16 %v4446
        %v4547 = vunpack.c.l.b16 %v4447
        %v4548 = vunpack.c.l.b16 %v4448
        %v4549 = vunpack.c.l.b16 %v4449
        %v4550 = vunpack.c.l.b16 %v4450
        %v4551 = vunpack.c.l.b16 %v4451
        %v4552 = vunpack.c.l.b16 %v4452
        %v4553 = vunpack.c.l.b16 %v4453
        %v4554 = vunpack.c.l.b16 %v4454
        %v4555 = vunpack.c.l.b16 %v4455
        %v4556 = vunpack.c.l.b16 %v4456
        %v4557 = vunpack.c.l.b16 %v4457
        %v4558 = vunpack.c.l.b16 %v4458
        %v4559 = vunpack.c.l.b16 %v4459
        %v4560 = vunpack.c.l.b16 %v4460
        %v4561 = vunpack.c.l.b16 %v4461
        %v4562 = vunpack.c.l.b16 %v4462
        %v4563 = vunpack.c.l.b16 %v4463
        %v4564 = vunpack.c.l.b16 %v4464
        %v4565 = vunpack.c.l.b16 %v4465
        %v4566 = vunpack.c.l.b16 %v4466
        %v4567 = vunpack.c.l.b16 %v4467
        %v4568 = vunpack.c.l.b16 %v4468
        %v4569 = vunpack.c.l.b16 %v4469
        %v4570 = vunpack.c.l.b16 %v4470
        %v4571 = vunpack.c.l.b16 %v4471
        %v4572 = vunpack.c.l.b16 %v4472
        %v4573 = vunpack.c.l.b16 %v4473
        %v4574 = vunpack.c.l.b16 %v4474
        %v4575 = vunpack.c.l.b16 %v4475
        %v4576 = vunpack.c.l.b16 %v4476
        %v4577 = vunpack.c.l.b16 %v4477
        %v4578 = vunpack.c.l.b16 %v4478
        %v4579 = vunpack.c.l.b16 %v4479
        %v4580 = vunpack.c.l.b16 %v4480
        %v4581 = vunpack.c.l.b16 %v4481
        %v4582 = vunpack.c.l.b16 %v4482
        %v4583 = vunpack.c.l.b16 %v4483
        %v4584 = vunpack.c.l.b16 %v4484
        %v4585 = vunpack.c.l.b16 %v4485
        %v4586 = vunpack.c.l.b16 %v4486
        %v4587 = vunpack.c.l.b16 %v4487
        %v4588 = vunpack.c.l.b16 %v4488
        %v4589 = vpack.c.b16 %v4541, %v4540
        %v4590 = vpack.c.b16 %v4543, %v4542
        %v4591 = vpack.c.b16 %v4545, %v4544
        %v4592 = vpack.c.b16 %v4547, %v4546
        %v4593 = vpack.c.b16 %v4549, %v4548
        %v4594 = vpack.c.b16 %v4551, %v4550
        %v4595 = vpack.c.b16 %v4553, %v4552
        %v4596 = vpack.c.b16 %v4555, %v4554
        %v4597 = vpack.c.b16 %v4557, %v4556
        %v4598 = vpack.c.b16 %v4559, %v4558
        %v4599 = vpack.c.b16 %v4561, %v4560
        %v4600 = vpack.c.b16 %v4563, %v4562
        %v4601 = vpack.c.b16 %v4565, %v4564
        %v4602 = vpack.c.b16 %v4567, %v4566
        %v4603 = vpack.c.b16 %v4569, %v4568
        %v4604 = vpack.c.b16 %v4571, %v4570
        %v4605 = vpack.c.b16 %v4573, %v4572
        %v4606 = vpack.c.b16 %v4575, %v4574
        %v4607 = vpack.c.b16 %v4577, %v4576
        %v4608 = vpack.c.b16 %v4579, %v4578
        %v4609 = vpack.c.b16 %v4581, %v4580
        %v4610 = vpack.c.b16 %v4583, %v4582
        %v4611 = vpack.c.b16 %v4585, %v4584
        %v4612 = vpack.c.b16 %v4587, %v4586
        %v4613 = vpack.c.b16 %v4588, %v4588
        %v4615 = vshrl.u32 %v4589, 16
        %v4617 = vrot.slane %v4615, 3
        %v4618 = vshll.u32 %v4589, 16
        %v4620 = vrot.slane %v4618, 4
        %v4621 = vor.u32 %v4617, %v4620
        %v4623 = vshrl.u32 %v4590, 16
        %v4625 = vrot.slane %v4623, 3
        %v4626 = vshll.u32 %v4590, 16
        %v4628 = vrot.slane %v4626, 4
        %v4629 = vor.u32 %v4625, %v4628
        %v4630 = vsel %vm3614, %v4621, %v4629
        %v4632 = vshrl.u32 %v4591, 16
        %v4634 = vrot.slane %v4632, 3
        %v4635 = vshll.u32 %v4591, 16
        %v4637 = vrot.slane %v4635, 4
        %v4638 = vor.u32 %v4634, %v4637
        %v4639 = vsel %vm3614, %v4629, %v4638
        %v4641 = vshrl.u32 %v4592, 16
        %v4643 = vrot.slane %v4641, 3
        %v4644 = vshll.u32 %v4592, 16
        %v4646 = vrot.slane %v4644, 4
        %v4647 = vor.u32 %v4643, %v4646
        %v4648 = vsel %vm3614, %v4638, %v4647
        %v4650 = vshrl.u32 %v4593, 16
        %v4652 = vrot.slane %v4650, 3
        %v4653 = vshll.u32 %v4593, 16
        %v4655 = vrot.slane %v4653, 4
        %v4656 = vor.u32 %v4652, %v4655
        %v4657 = vsel %vm3614, %v4647, %v4656
        %v4659 = vshrl.u32 %v4594, 16
        %v4661 = vrot.slane %v4659, 3
        %v4662 = vshll.u32 %v4594, 16
        %v4664 = vrot.slane %v4662, 4
        %v4665 = vor.u32 %v4661, %v4664
        %v4666 = vsel %vm3614, %v4656, %v4665
        %v4668 = vshrl.u32 %v4595, 16
        %v4670 = vrot.slane %v4668, 3
        %v4671 = vshll.u32 %v4595, 16
        %v4673 = vrot.slane %v4671, 4
        %v4674 = vor.u32 %v4670, %v4673
        %v4675 = vsel %vm3614, %v4665, %v4674
        %v4677 = vshrl.u32 %v4596, 16
        %v4679 = vrot.slane %v4677, 3
        %v4680 = vshll.u32 %v4596, 16
        %v4682 = vrot.slane %v4680, 4
        %v4683 = vor.u32 %v4679, %v4682
        %v4684 = vsel %vm3614, %v4674, %v4683
        %v4686 = vshrl.u32 %v4597, 16
        %v4688 = vrot.slane %v4686, 3
        %v4689 = vshll.u32 %v4597, 16
        %v4691 = vrot.slane %v4689, 4
        %v4692 = vor.u32 %v4688, %v4691
        %v4693 = vsel %vm3614, %v4683, %v4692
        %v4695 = vshrl.u32 %v4598, 16
        %v4697 = vrot.slane %v4695, 3
        %v4698 = vshll.u32 %v4598, 16
        %v4700 = vrot.slane %v4698, 4
        %v4701 = vor.u32 %v4697, %v4700
        %v4702 = vsel %vm3614, %v4692, %v4701
        %v4704 = vshrl.u32 %v4599, 16
        %v4706 = vrot.slane %v4704, 3
        %v4707 = vshll.u32 %v4599, 16
        %v4709 = vrot.slane %v4707, 4
        %v4710 = vor.u32 %v4706, %v4709
        %v4711 = vsel %vm3614, %v4701, %v4710
        %v4713 = vshrl.u32 %v4600, 16
        %v4715 = vrot.slane %v4713, 3
        %v4716 = vshll.u32 %v4600, 16
        %v4718 = vrot.slane %v4716, 4
        %v4719 = vor.u32 %v4715, %v4718
        %v4720 = vsel %vm3614, %v4710, %v4719
        %v4722 = vshrl.u32 %v4601, 16
        %v4724 = vrot.slane %v4722, 3
        %v4725 = vshll.u32 %v4601, 16
        %v4727 = vrot.slane %v4725, 4
        %v4728 = vor.u32 %v4724, %v4727
        %v4729 = vsel %vm3614, %v4719, %v4728
        %v4731 = vshrl.u32 %v4602, 16
        %v4733 = vrot.slane %v4731, 3
        %v4734 = vshll.u32 %v4602, 16
        %v4736 = vrot.slane %v4734, 4
        %v4737 = vor.u32 %v4733, %v4736
        %v4738 = vsel %vm3614, %v4728, %v4737
        %v4740 = vshrl.u32 %v4603, 16
        %v4742 = vrot.slane %v4740, 3
        %v4743 = vshll.u32 %v4603, 16
        %v4745 = vrot.slane %v4743, 4
        %v4746 = vor.u32 %v4742, %v4745
        %v4747 = vsel %vm3614, %v4737, %v4746
        %v4749 = vshrl.u32 %v4604, 16
        %v4751 = vrot.slane %v4749, 3
        %v4752 = vshll.u32 %v4604, 16
        %v4754 = vrot.slane %v4752, 4
        %v4755 = vor.u32 %v4751, %v4754
        %v4756 = vsel %vm3614, %v4746, %v4755
        %v4758 = vshrl.u32 %v4605, 16
        %v4760 = vrot.slane %v4758, 3
        %v4761 = vshll.u32 %v4605, 16
        %v4763 = vrot.slane %v4761, 4
        %v4764 = vor.u32 %v4760, %v4763
        %v4765 = vsel %vm3614, %v4755, %v4764
        %v4767 = vshrl.u32 %v4606, 16
        %v4769 = vrot.slane %v4767, 3
        %v4770 = vshll.u32 %v4606, 16
        %v4772 = vrot.slane %v4770, 4
        %v4773 = vor.u32 %v4769, %v4772
        %v4774 = vsel %vm3614, %v4764, %v4773
        %v4776 = vshrl.u32 %v4607, 16
        %v4778 = vrot.slane %v4776, 3
        %v4779 = vshll.u32 %v4607, 16
        %v4781 = vrot.slane %v4779, 4
        %v4782 = vor.u32 %v4778, %v4781
        %v4783 = vsel %vm3614, %v4773, %v4782
        %v4785 = vshrl.u32 %v4608, 16
        %v4787 = vrot.slane %v4785, 3
        %v4788 = vshll.u32 %v4608, 16
        %v4790 = vrot.slane %v4788, 4
        %v4791 = vor.u32 %v4787, %v4790
        %v4792 = vsel %vm3614, %v4782, %v4791
        %v4794 = vshrl.u32 %v4609, 16
        %v4796 = vrot.slane %v4794, 3
        %v4797 = vshll.u32 %v4609, 16
        %v4799 = vrot.slane %v4797, 4
        %v4800 = vor.u32 %v4796, %v4799
        %v4801 = vsel %vm3614, %v4791, %v4800
        %v4803 = vshrl.u32 %v4610, 16
        %v4805 = vrot.slane %v4803, 3
        %v4806 = vshll.u32 %v4610, 16
        %v4808 = vrot.slane %v4806, 4
        %v4809 = vor.u32 %v4805, %v4808
        %v4810 = vsel %vm3614, %v4800, %v4809
        %v4812 = vshrl.u32 %v4611, 16
        %v4814 = vrot.slane %v4812, 3
        %v4815 = vshll.u32 %v4611, 16
        %v4817 = vrot.slane %v4815, 4
        %v4818 = vor.u32 %v4814, %v4817
        %v4819 = vsel %vm3614, %v4809, %v4818
        %v4821 = vshrl.u32 %v4612, 16
        %v4823 = vrot.slane %v4821, 3
        %v4824 = vshll.u32 %v4612, 16
        %v4826 = vrot.slane %v4824, 4
        %v4827 = vor.u32 %v4823, %v4826
        %v4828 = vsel %vm3614, %v4818, %v4827
        %v4830 = vshrl.u32 %v4613, 16
        %v4832 = vrot.slane %v4830, 3
        %v4833 = vshll.u32 %v4613, 16
        %v4835 = vrot.slane %v4833, 4
        %v4836 = vor.u32 %v4832, %v4835
        %v4837 = vsel %vm3614, %v4827, %v4836
        %v4839 = vsel %vm3472, %v4490, 0
        %v4842 = vsel %vm3472, %v4630, 0
        %v4845 = vsel %vm3472, %v4639, 0
        %v4848 = vsel %vm3472, %v4648, 0
        %v4851 = vsel %vm3472, %v4657, 0
        %v4854 = vsel %vm3472, %v4666, 0
        %v4857 = vsel %vm3472, %v4675, 0
        %v4860 = vsel %vm3472, %v4684, 0
        %v4863 = vsel %vm3472, %v4693, 0
        %v4866 = vsel %vm3472, %v4702, 0
        %v4869 = vsel %vm3472, %v4711, 0
        %v4872 = vsel %vm3472, %v4720, 0
        %v4875 = vsel %vm3472, %v4729, 0
        %v4878 = vsel %vm3472, %v4738, 0
        %v4881 = vsel %vm3472, %v4747, 0
        %v4884 = vsel %vm3472, %v4756, 0
        %v4887 = vsel %vm3472, %v4765, 0
        %v4890 = vsel %vm3472, %v4774, 0
        %v4893 = vsel %vm3472, %v4783, 0
        %v4896 = vsel %vm3472, %v4792, 0
        %v4899 = vsel %vm3472, %v4801, 0
        %v4902 = vsel %vm3472, %v4810, 0
        %v4905 = vsel %vm3472, %v4819, 0
        %v4908 = vsel %vm3472, %v4828, 0
        %v4911 = vsel %vm3472, %v4837, 0
        %4913 = vmatpush.bf16.xpose.msra.mxu0 %v4863
        %4914 = vmatpush.bf16.xpose.msra.mxu0 %v4860
        %4915 = vmatpush.bf16.xpose.msra.mxu0 %v4857
        %4916 = vmatpush.bf16.xpose.msra.mxu0 %v4854
        %4917 = vmatpush.bf16.xpose.msra.mxu0 %v4851
        %4918 = vmatpush.bf16.xpose.msra.mxu0 %v4848
        %4919 = vmatpush.bf16.xpose.msra.mxu0 %v4845
        %4920 = vmatpush.bf16.xpose.msra.mxu0 %v4842
        %4921 = vmatmul.bf16.gmra.mxu0 %v4839
        %v4922 = vpop.f32.mrf.mxu0
        %v4923 = vadd.f32 0.0, %v4922
        %v4924 = vpop.f32.mrf.mxu0
        %4925 = vdwg.mxu0
        %4926 = vmatpush.bf16.xpose.msra.mxu0 %v4887
        %4927 = vmatpush.bf16.xpose.msra.mxu0 %v4884
        %4928 = vmatpush.bf16.xpose.msra.mxu0 %v4881
        %4929 = vmatpush.bf16.xpose.msra.mxu0 %v4878
        %4930 = vmatpush.bf16.xpose.msra.mxu0 %v4875
        %4931 = vmatpush.bf16.xpose.msra.mxu0 %v4872
        %4932 = vmatpush.bf16.xpose.msra.mxu0 %v4869
        %4933 = vmatpush.bf16.xpose.msra.mxu0 %v4866
        %4934 = vmatmul.bf16.gmra.mxu0 %v4839
        %v4935 = vpop.f32.mrf.mxu0
        %v4936 = vadd.f32 0.0, %v4935
        %v4937 = vpop.f32.mrf.mxu0
        %4938 = vdwg.mxu0
        %4939 = vmatpush.bf16.xpose.msra.mxu0 %v4911
        %4940 = vmatpush.bf16.xpose.msra.mxu0 %v4908
        %4941 = vmatpush.bf16.xpose.msra.mxu0 %v4905
        %4942 = vmatpush.bf16.xpose.msra.mxu0 %v4902
        %4943 = vmatpush.bf16.xpose.msra.mxu0 %v4899
        %4944 = vmatpush.bf16.xpose.msra.mxu0 %v4896
        %4945 = vmatpush.bf16.xpose.msra.mxu0 %v4893
        %4946 = vmatpush.bf16.xpose.msra.mxu0 %v4890
        %4947 = vmatmul.bf16.gmra.mxu0 %v4839
        %v4948 = vpop.f32.mrf.mxu0
        %v4949 = vadd.f32 0.0, %v4948
        %v4950 = vpop.f32.mrf.mxu0
        %4951 = vdwg.mxu0
        %v4952 = vadd.f32 %v4437, %v4923
        %v4953 = vadd.f32 %v4438, %v4936
        %v4954 = vadd.f32 %v4439, %v4949
        %s4955 = scalar_lea.vmem %s3, 16
        %v4956 = vld [vmem:[%s4955] sm:$0xf]
        %v4957 = vpack.c.b16 %v4542, %v4541
        %v4958 = vpack.c.b16 %v4544, %v4543
        %v4959 = vpack.c.b16 %v4546, %v4545
        %v4960 = vpack.c.b16 %v4548, %v4547
        %v4961 = vpack.c.b16 %v4550, %v4549
        %v4962 = vpack.c.b16 %v4552, %v4551
        %v4963 = vpack.c.b16 %v4554, %v4553
        %v4964 = vpack.c.b16 %v4556, %v4555
        %v4965 = vpack.c.b16 %v4558, %v4557
        %v4966 = vpack.c.b16 %v4560, %v4559
        %v4967 = vpack.c.b16 %v4562, %v4561
        %v4968 = vpack.c.b16 %v4564, %v4563
        %v4969 = vpack.c.b16 %v4566, %v4565
        %v4970 = vpack.c.b16 %v4568, %v4567
        %v4971 = vpack.c.b16 %v4570, %v4569
        %v4972 = vpack.c.b16 %v4572, %v4571
        %v4973 = vpack.c.b16 %v4574, %v4573
        %v4974 = vpack.c.b16 %v4576, %v4575
        %v4975 = vpack.c.b16 %v4578, %v4577
        %v4976 = vpack.c.b16 %v4580, %v4579
        %v4977 = vpack.c.b16 %v4582, %v4581
        %v4978 = vpack.c.b16 %v4584, %v4583
        %v4979 = vpack.c.b16 %v4586, %v4585
        %v4980 = vpack.c.b16 %v4588, %v4587
        %v4982 = vsel %vm3472, %v4956, 0
        %v4985 = vsel %vm3472, %v4957, 0
        %v4988 = vsel %vm3472, %v4958, 0
        %v4991 = vsel %vm3472, %v4959, 0
        %v4994 = vsel %vm3472, %v4960, 0
        %v4997 = vsel %vm3472, %v4961, 0
        %v5000 = vsel %vm3472, %v4962, 0
        %v5003 = vsel %vm3472, %v4963, 0
        %v5006 = vsel %vm3472, %v4964, 0
        %v5009 = vsel %vm3472, %v4965, 0
        %v5012 = vsel %vm3472, %v4966, 0
        %v5015 = vsel %vm3472, %v4967, 0
        %v5018 = vsel %vm3472, %v4968, 0
        %v5021 = vsel %vm3472, %v4969, 0
        %v5024 = vsel %vm3472, %v4970, 0
        %v5027 = vsel %vm3472, %v4971, 0
        %v5030 = vsel %vm3472, %v4972, 0
        %v5033 = vsel %vm3472, %v4973, 0
        %v5036 = vsel %vm3472, %v4974, 0
        %v5039 = vsel %vm3472, %v4975, 0
        %v5042 = vsel %vm3472, %v4976, 0
        %v5045 = vsel %vm3472, %v4977, 0
        %v5048 = vsel %vm3472, %v4978, 0
        %v5051 = vsel %vm3472, %v4979, 0
        %v5054 = vsel %vm3472, %v4980, 0
        %5056 = vmatpush.bf16.xpose.msra.mxu0 %v5006
        %5057 = vmatpush.bf16.xpose.msra.mxu0 %v5003
        %5058 = vmatpush.bf16.xpose.msra.mxu0 %v5000
        %5059 = vmatpush.bf16.xpose.msra.mxu0 %v4997
        %5060 = vmatpush.bf16.xpose.msra.mxu0 %v4994
        %5061 = vmatpush.bf16.xpose.msra.mxu0 %v4991
        %5062 = vmatpush.bf16.xpose.msra.mxu0 %v4988
        %5063 = vmatpush.bf16.xpose.msra.mxu0 %v4985
        %5064 = vmatmul.bf16.gmra.mxu0 %v4982
        %v5065 = vpop.f32.mrf.mxu0
        %v5066 = vadd.f32 0.0, %v5065
        %v5067 = vpop.f32.mrf.mxu0
        %5068 = vdwg.mxu0
        %5069 = vmatpush.bf16.xpose.msra.mxu0 %v5030
        %5070 = vmatpush.bf16.xpose.msra.mxu0 %v5027
        %5071 = vmatpush.bf16.xpose.msra.mxu0 %v5024
        %5072 = vmatpush.bf16.xpose.msra.mxu0 %v5021
        %5073 = vmatpush.bf16.xpose.msra.mxu0 %v5018
        %5074 = vmatpush.bf16.xpose.msra.mxu0 %v5015
        %5075 = vmatpush.bf16.xpose.msra.mxu0 %v5012
        %5076 = vmatpush.bf16.xpose.msra.mxu0 %v5009
        %5077 = vmatmul.bf16.gmra.mxu0 %v4982
        %v5078 = vpop.f32.mrf.mxu0
        %v5079 = vadd.f32 0.0, %v5078
        %v5080 = vpop.f32.mrf.mxu0
        %5081 = vdwg.mxu0
        %5082 = vmatpush.bf16.xpose.msra.mxu0 %v5054
        %5083 = vmatpush.bf16.xpose.msra.mxu0 %v5051
        %5084 = vmatpush.bf16.xpose.msra.mxu0 %v5048
        %5085 = vmatpush.bf16.xpose.msra.mxu0 %v5045
        %5086 = vmatpush.bf16.xpose.msra.mxu0 %v5042
        %5087 = vmatpush.bf16.xpose.msra.mxu0 %v5039
        %5088 = vmatpush.bf16.xpose.msra.mxu0 %v5036
        %5089 = vmatpush.bf16.xpose.msra.mxu0 %v5033
        %5090 = vmatmul.bf16.gmra.mxu0 %v4982
        %v5091 = vpop.f32.mrf.mxu0
        %v5092 = vadd.f32 0.0, %v5091
        %v5093 = vpop.f32.mrf.mxu0
        %5094 = vdwg.mxu0
        %v5095 = vadd.f32 %v4952, %v5066
        %v5096 = vadd.f32 %v4953, %v5079
        %v5097 = vadd.f32 %v4954, %v5092
        %v5098 = vld [vmem:[#allocation3 + $0x10] sm:$0xf]
        %v5099 = vld [vmem:[#allocation3 + $0x14] sm:$0xf]
        %v5100 = vld [vmem:[#allocation3 + $0x18] sm:$0xf]
        %v5101 = vld [vmem:[#allocation3 + $0x1c] sm:$0xf]
        %v5102 = vld [vmem:[#allocation3 + $0x20] sm:$0xf]
        %v5103 = vld [vmem:[#allocation3 + $0x24] sm:$0xf]
        %v5104 = vld [vmem:[#allocation3 + $0x28] sm:$0xf]
        %v5105 = vld [vmem:[#allocation3 + $0x2c] sm:$0xf]
        %v5106 = vld [vmem:[#allocation3 + $0x30] sm:$0xf]
        %v5107 = vld [vmem:[#allocation3 + $0x34] sm:$0xf]
        %v5108 = vld [vmem:[#allocation3 + $0x38] sm:$0xf]
        %v5109 = vld [vmem:[#allocation3 + $0x3c] sm:$0xf]
        %v5110 = vld [vmem:[#allocation3 + $0x40] sm:$0xf]
        %v5111 = vld [vmem:[#allocation3 + $0x44] sm:$0xf]
        %v5112 = vld [vmem:[#allocation3 + $0x48] sm:$0xf]
        %v5113 = vld [vmem:[#allocation3 + $0x4c] sm:$0xf]
        %v5114 = vld [vmem:[#allocation3 + $0x50] sm:$0xf]
        %v5115 = vld [vmem:[#allocation3 + $0x54] sm:$0xf]
        %v5116 = vld [vmem:[#allocation3 + $0x58] sm:$0xf]
        %v5117 = vld [vmem:[#allocation3 + $0x5c] sm:$0xf]
        %v5118 = vld [vmem:[#allocation3 + $0x60] sm:$0xf]
        %v5119 = vld [vmem:[#allocation3 + $0x64] sm:$0xf]
        %v5120 = vld [vmem:[#allocation3 + $0x68] sm:$0xf]
        %v5121 = vld [vmem:[#allocation3 + $0x6c] sm:$0xf]
        %v5122 = vld [vmem:[#allocation3 + $0x70] sm:$0xf]
        %v5123 = vld [vmem:[#allocation3 + $0x74] sm:$0xf]
        %v5124 = vld [vmem:[#allocation3 + $0x78] sm:$0xf]
        %v5125 = vld [vmem:[#allocation3 + $0x7c] sm:$0xf]
        %v5126 = vld [vmem:[#allocation3 + $0x80] sm:$0xf]
        %v5127 = vld [vmem:[#allocation3 + $0x84] sm:$0xf]
        %v5128 = vld [vmem:[#allocation3 + $0x88] sm:$0xf]
        %v5129 = vld [vmem:[#allocation3 + $0x8c] sm:$0xf]
        %v5130 = vld [vmem:[#allocation3 + $0x90] sm:$0xf]
        %v5131 = vld [vmem:[#allocation3 + $0x94] sm:$0xf]
        %v5132 = vld [vmem:[#allocation3 + $0x98] sm:$0xf]
        %v5133 = vld [vmem:[#allocation3 + $0x9c] sm:$0xf]
        %v5134 = vld [vmem:[#allocation3 + $0xa0] sm:$0xf]
        %v5135 = vld [vmem:[#allocation3 + $0xa4] sm:$0xf]
        %v5136 = vld [vmem:[#allocation3 + $0xa8] sm:$0xf]
        %v5137 = vld [vmem:[#allocation3 + $0xac] sm:$0xf]
        %v5138 = vld [vmem:[#allocation3 + $0xb0] sm:$0xf]
        %v5139 = vld [vmem:[#allocation3 + $0xb4] sm:$0xf]
        %v5140 = vld [vmem:[#allocation3 + $0xb8] sm:$0xf]
        %v5141 = vld [vmem:[#allocation3 + $0xbc] sm:$0xf]
        %v5142 = vld [vmem:[#allocation3 + $0xc0] sm:$0xf]
        %v5143 = vld [vmem:[#allocation3 + $0xc4] sm:$0xf]
        %v5144 = vld [vmem:[#allocation3 + $0xc8] sm:$0xf]
        %v5145 = vld [vmem:[#allocation3 + $0xcc] sm:$0xf]
        %v5146 = vld [vmem:[#allocation3 + $0xd0] sm:$0x1]
        %s5147 = scalar_lea.vmem %s3, 20
        %v5148 = vld [vmem:[%s5147] sm:$0xf]
        %v5198 = vunpack.c.l.b16 %v5098
        %v5199 = vunpack.c.l.b16 %v5099
        %v5200 = vunpack.c.l.b16 %v5100
        %v5201 = vunpack.c.l.b16 %v5101
        %v5202 = vunpack.c.l.b16 %v5102
        %v5203 = vunpack.c.l.b16 %v5103
        %v5204 = vunpack.c.l.b16 %v5104
        %v5205 = vunpack.c.l.b16 %v5105
        %v5206 = vunpack.c.l.b16 %v5106
        %v5207 = vunpack.c.l.b16 %v5107
        %v5208 = vunpack.c.l.b16 %v5108
        %v5209 = vunpack.c.l.b16 %v5109
        %v5210 = vunpack.c.l.b16 %v5110
        %v5211 = vunpack.c.l.b16 %v5111
        %v5212 = vunpack.c.l.b16 %v5112
        %v5213 = vunpack.c.l.b16 %v5113
        %v5214 = vunpack.c.l.b16 %v5114
        %v5215 = vunpack.c.l.b16 %v5115
        %v5216 = vunpack.c.l.b16 %v5116
        %v5217 = vunpack.c.l.b16 %v5117
        %v5218 = vunpack.c.l.b16 %v5118
        %v5219 = vunpack.c.l.b16 %v5119
        %v5220 = vunpack.c.l.b16 %v5120
        %v5221 = vunpack.c.l.b16 %v5121
        %v5222 = vunpack.c.l.b16 %v5122
        %v5223 = vunpack.c.l.b16 %v5123
        %v5224 = vunpack.c.l.b16 %v5124
        %v5225 = vunpack.c.l.b16 %v5125
        %v5226 = vunpack.c.l.b16 %v5126
        %v5227 = vunpack.c.l.b16 %v5127
        %v5228 = vunpack.c.l.b16 %v5128
        %v5229 = vunpack.c.l.b16 %v5129
        %v5230 = vunpack.c.l.b16 %v5130
        %v5231 = vunpack.c.l.b16 %v5131
        %v5232 = vunpack.c.l.b16 %v5132
        %v5233 = vunpack.c.l.b16 %v5133
        %v5234 = vunpack.c.l.b16 %v5134
        %v5235 = vunpack.c.l.b16 %v5135
        %v5236 = vunpack.c.l.b16 %v5136
        %v5237 = vunpack.c.l.b16 %v5137
        %v5238 = vunpack.c.l.b16 %v5138
        %v5239 = vunpack.c.l.b16 %v5139
        %v5240 = vunpack.c.l.b16 %v5140
        %v5241 = vunpack.c.l.b16 %v5141
        %v5242 = vunpack.c.l.b16 %v5142
        %v5243 = vunpack.c.l.b16 %v5143
        %v5244 = vunpack.c.l.b16 %v5144
        %v5245 = vunpack.c.l.b16 %v5145
        %v5246 = vunpack.c.l.b16 %v5146
        %v5247 = vpack.c.b16 %v5199, %v5198
        %v5248 = vpack.c.b16 %v5201, %v5200
        %v5249 = vpack.c.b16 %v5203, %v5202
        %v5250 = vpack.c.b16 %v5205, %v5204
        %v5251 = vpack.c.b16 %v5207, %v5206
        %v5252 = vpack.c.b16 %v5209, %v5208
        %v5253 = vpack.c.b16 %v5211, %v5210
        %v5254 = vpack.c.b16 %v5213, %v5212
        %v5255 = vpack.c.b16 %v5215, %v5214
        %v5256 = vpack.c.b16 %v5217, %v5216
        %v5257 = vpack.c.b16 %v5219, %v5218
        %v5258 = vpack.c.b16 %v5221, %v5220
        %v5259 = vpack.c.b16 %v5223, %v5222
        %v5260 = vpack.c.b16 %v5225, %v5224
        %v5261 = vpack.c.b16 %v5227, %v5226
        %v5262 = vpack.c.b16 %v5229, %v5228
        %v5263 = vpack.c.b16 %v5231, %v5230
        %v5264 = vpack.c.b16 %v5233, %v5232
        %v5265 = vpack.c.b16 %v5235, %v5234
        %v5266 = vpack.c.b16 %v5237, %v5236
        %v5267 = vpack.c.b16 %v5239, %v5238
        %v5268 = vpack.c.b16 %v5241, %v5240
        %v5269 = vpack.c.b16 %v5243, %v5242
        %v5270 = vpack.c.b16 %v5245, %v5244
        %v5271 = vpack.c.b16 %v5246, %v5246
        %v5273 = vshrl.u32 %v5247, 16
        %v5275 = vshll.u32 %v5247, 16
        %v5277 = vrot.slane %v5275, 1
        %v5278 = vor.u32 %v5273, %v5277
        %v5280 = vshll.u32 %v5248, 16
        %v5282 = vrot.slane %v5280, 1
        %v5283 = vsel %vm626, %v5278, %v5282
        %v5284 = vshrl.u32 %v5248, 16
        %v5286 = vor.u32 %v5284, %v5282
        %v5288 = vshll.u32 %v5249, 16
        %v5290 = vrot.slane %v5288, 1
        %v5291 = vsel %vm626, %v5286, %v5290
        %v5292 = vshrl.u32 %v5249, 16
        %v5294 = vor.u32 %v5292, %v5290
        %v5296 = vshll.u32 %v5250, 16
        %v5298 = vrot.slane %v5296, 1
        %v5299 = vsel %vm626, %v5294, %v5298
        %v5300 = vshrl.u32 %v5250, 16
        %v5302 = vor.u32 %v5300, %v5298
        %v5304 = vshll.u32 %v5251, 16
        %v5306 = vrot.slane %v5304, 1
        %v5307 = vsel %vm626, %v5302, %v5306
        %v5308 = vshrl.u32 %v5251, 16
        %v5310 = vor.u32 %v5308, %v5306
        %v5312 = vshll.u32 %v5252, 16
        %v5314 = vrot.slane %v5312, 1
        %v5315 = vsel %vm626, %v5310, %v5314
        %v5316 = vshrl.u32 %v5252, 16
        %v5318 = vor.u32 %v5316, %v5314
        %v5320 = vshll.u32 %v5253, 16
        %v5322 = vrot.slane %v5320, 1
        %v5323 = vsel %vm626, %v5318, %v5322
        %v5324 = vshrl.u32 %v5253, 16
        %v5326 = vor.u32 %v5324, %v5322
        %v5328 = vshll.u32 %v5254, 16
        %v5330 = vrot.slane %v5328, 1
        %v5331 = vsel %vm626, %v5326, %v5330
        %v5332 = vshrl.u32 %v5254, 16
        %v5334 = vor.u32 %v5332, %v5330
        %v5336 = vshll.u32 %v5255, 16
        %v5338 = vrot.slane %v5336, 1
        %v5339 = vsel %vm626, %v5334, %v5338
        %v5340 = vshrl.u32 %v5255, 16
        %v5342 = vor.u32 %v5340, %v5338
        %v5344 = vshll.u32 %v5256, 16
        %v5346 = vrot.slane %v5344, 1
        %v5347 = vsel %vm626, %v5342, %v5346
        %v5348 = vshrl.u32 %v5256, 16
        %v5350 = vor.u32 %v5348, %v5346
        %v5352 = vshll.u32 %v5257, 16
        %v5354 = vrot.slane %v5352, 1
        %v5355 = vsel %vm626, %v5350, %v5354
        %v5356 = vshrl.u32 %v5257, 16
        %v5358 = vor.u32 %v5356, %v5354
        %v5360 = vshll.u32 %v5258, 16
        %v5362 = vrot.slane %v5360, 1
        %v5363 = vsel %vm626, %v5358, %v5362
        %v5364 = vshrl.u32 %v5258, 16
        %v5366 = vor.u32 %v5364, %v5362
        %v5368 = vshll.u32 %v5259, 16
        %v5370 = vrot.slane %v5368, 1
        %v5371 = vsel %vm626, %v5366, %v5370
        %v5372 = vshrl.u32 %v5259, 16
        %v5374 = vor.u32 %v5372, %v5370
        %v5376 = vshll.u32 %v5260, 16
        %v5378 = vrot.slane %v5376, 1
        %v5379 = vsel %vm626, %v5374, %v5378
        %v5380 = vshrl.u32 %v5260, 16
        %v5382 = vor.u32 %v5380, %v5378
        %v5384 = vshll.u32 %v5261, 16
        %v5386 = vrot.slane %v5384, 1
        %v5387 = vsel %vm626, %v5382, %v5386
        %v5388 = vshrl.u32 %v5261, 16
        %v5390 = vor.u32 %v5388, %v5386
        %v5392 = vshll.u32 %v5262, 16
        %v5394 = vrot.slane %v5392, 1
        %v5395 = vsel %vm626, %v5390, %v5394
        %v5396 = vshrl.u32 %v5262, 16
        %v5398 = vor.u32 %v5396, %v5394
        %v5400 = vshll.u32 %v5263, 16
        %v5402 = vrot.slane %v5400, 1
        %v5403 = vsel %vm626, %v5398, %v5402
        %v5404 = vshrl.u32 %v5263, 16
        %v5406 = vor.u32 %v5404, %v5402
        %v5408 = vshll.u32 %v5264, 16
        %v5410 = vrot.slane %v5408, 1
        %v5411 = vsel %vm626, %v5406, %v5410
        %v5412 = vshrl.u32 %v5264, 16
        %v5414 = vor.u32 %v5412, %v5410
        %v5416 = vshll.u32 %v5265, 16
        %v5418 = vrot.slane %v5416, 1
        %v5419 = vsel %vm626, %v5414, %v5418
        %v5420 = vshrl.u32 %v5265, 16
        %v5422 = vor.u32 %v5420, %v5418
        %v5424 = vshll.u32 %v5266, 16
        %v5426 = vrot.slane %v5424, 1
        %v5427 = vsel %vm626, %v5422, %v5426
        %v5428 = vshrl.u32 %v5266, 16
        %v5430 = vor.u32 %v5428, %v5426
        %v5432 = vshll.u32 %v5267, 16
        %v5434 = vrot.slane %v5432, 1
        %v5435 = vsel %vm626, %v5430, %v5434
        %v5436 = vshrl.u32 %v5267, 16
        %v5438 = vor.u32 %v5436, %v5434
        %v5440 = vshll.u32 %v5268, 16
        %v5442 = vrot.slane %v5440, 1
        %v5443 = vsel %vm626, %v5438, %v5442
        %v5444 = vshrl.u32 %v5268, 16
        %v5446 = vor.u32 %v5444, %v5442
        %v5448 = vshll.u32 %v5269, 16
        %v5450 = vrot.slane %v5448, 1
        %v5451 = vsel %vm626, %v5446, %v5450
        %v5452 = vshrl.u32 %v5269, 16
        %v5454 = vor.u32 %v5452, %v5450
        %v5456 = vshll.u32 %v5270, 16
        %v5458 = vrot.slane %v5456, 1
        %v5459 = vsel %vm626, %v5454, %v5458
        %v5460 = vshrl.u32 %v5270, 16
        %v5462 = vor.u32 %v5460, %v5458
        %v5464 = vshll.u32 %v5271, 16
        %v5466 = vrot.slane %v5464, 1
        %v5467 = vsel %vm626, %v5462, %v5466
        %v5469 = vsel %vm3472, %v5148, 0
        %v5472 = vsel %vm3472, %v5283, 0
        %v5475 = vsel %vm3472, %v5291, 0
        %v5478 = vsel %vm3472, %v5299, 0
        %v5481 = vsel %vm3472, %v5307, 0
        %v5484 = vsel %vm3472, %v5315, 0
        %v5487 = vsel %vm3472, %v5323, 0
        %v5490 = vsel %vm3472, %v5331, 0
        %v5493 = vsel %vm3472, %v5339, 0
        %v5496 = vsel %vm3472, %v5347, 0
        %v5499 = vsel %vm3472, %v5355, 0
        %v5502 = vsel %vm3472, %v5363, 0
        %v5505 = vsel %vm3472, %v5371, 0
        %v5508 = vsel %vm3472, %v5379, 0
        %v5511 = vsel %vm3472, %v5387, 0
        %v5514 = vsel %vm3472, %v5395, 0
        %v5517 = vsel %vm3472, %v5403, 0
        %v5520 = vsel %vm3472, %v5411, 0
        %v5523 = vsel %vm3472, %v5419, 0
        %v5526 = vsel %vm3472, %v5427, 0
        %v5529 = vsel %vm3472, %v5435, 0
        %v5532 = vsel %vm3472, %v5443, 0
        %v5535 = vsel %vm3472, %v5451, 0
        %v5538 = vsel %vm3472, %v5459, 0
        %v5541 = vsel %vm3472, %v5467, 0
        %5543 = vmatpush.bf16.xpose.msra.mxu0 %v5493
        %5544 = vmatpush.bf16.xpose.msra.mxu0 %v5490
        %5545 = vmatpush.bf16.xpose.msra.mxu0 %v5487
        %5546 = vmatpush.bf16.xpose.msra.mxu0 %v5484
        %5547 = vmatpush.bf16.xpose.msra.mxu0 %v5481
        %5548 = vmatpush.bf16.xpose.msra.mxu0 %v5478
        %5549 = vmatpush.bf16.xpose.msra.mxu0 %v5475
        %5550 = vmatpush.bf16.xpose.msra.mxu0 %v5472
        %5551 = vmatmul.bf16.gmra.mxu0 %v5469
        %v5552 = vpop.f32.mrf.mxu0
        %v5553 = vadd.f32 0.0, %v5552
        %v5554 = vpop.f32.mrf.mxu0
        %5555 = vdwg.mxu0
        %5556 = vmatpush.bf16.xpose.msra.mxu0 %v5517
        %5557 = vmatpush.bf16.xpose.msra.mxu0 %v5514
        %5558 = vmatpush.bf16.xpose.msra.mxu0 %v5511
        %5559 = vmatpush.bf16.xpose.msra.mxu0 %v5508
        %5560 = vmatpush.bf16.xpose.msra.mxu0 %v5505
        %5561 = vmatpush.bf16.xpose.msra.mxu0 %v5502
        %5562 = vmatpush.bf16.xpose.msra.mxu0 %v5499
        %5563 = vmatpush.bf16.xpose.msra.mxu0 %v5496
        %5564 = vmatmul.bf16.gmra.mxu0 %v5469
        %v5565 = vpop.f32.mrf.mxu0
        %v5566 = vadd.f32 0.0, %v5565
        %v5567 = vpop.f32.mrf.mxu0
        %5568 = vdwg.mxu0
        %5569 = vmatpush.bf16.xpose.msra.mxu0 %v5541
        %5570 = vmatpush.bf16.xpose.msra.mxu0 %v5538
        %5571 = vmatpush.bf16.xpose.msra.mxu0 %v5535
        %5572 = vmatpush.bf16.xpose.msra.mxu0 %v5532
        %5573 = vmatpush.bf16.xpose.msra.mxu0 %v5529
        %5574 = vmatpush.bf16.xpose.msra.mxu0 %v5526
        %5575 = vmatpush.bf16.xpose.msra.mxu0 %v5523
        %5576 = vmatpush.bf16.xpose.msra.mxu0 %v5520
        %5577 = vmatmul.bf16.gmra.mxu0 %v5469
        %v5578 = vpop.f32.mrf.mxu0
        %v5579 = vadd.f32 0.0, %v5578
        %v5580 = vpop.f32.mrf.mxu0
        %5581 = vdwg.mxu0
        %v5582 = vadd.f32 %v5095, %v5553
        %v5583 = vadd.f32 %v5096, %v5566
        %v5584 = vadd.f32 %v5097, %v5579
        %v5585 = vld [vmem:[#allocation3 + $0x18] sm:$0x8]
        %v5586 = vld [vmem:[#allocation3 + $0x1c] sm:$0xf]
        %v5587 = vld [vmem:[#allocation3 + $0x20] sm:$0xf]
        %v5588 = vld [vmem:[#allocation3 + $0x24] sm:$0xf]
        %v5589 = vld [vmem:[#allocation3 + $0x28] sm:$0xf]
        %v5590 = vld [vmem:[#allocation3 + $0x2c] sm:$0xf]
        %v5591 = vld [vmem:[#allocation3 + $0x30] sm:$0xf]
        %v5592 = vld [vmem:[#allocation3 + $0x34] sm:$0xf]
        %v5593 = vld [vmem:[#allocation3 + $0x38] sm:$0xf]
        %v5594 = vld [vmem:[#allocation3 + $0x3c] sm:$0xf]
        %v5595 = vld [vmem:[#allocation3 + $0x40] sm:$0xf]
        %v5596 = vld [vmem:[#allocation3 + $0x44] sm:$0xf]
        %v5597 = vld [vmem:[#allocation3 + $0x48] sm:$0xf]
        %v5598 = vld [vmem:[#allocation3 + $0x4c] sm:$0xf]
        %v5599 = vld [vmem:[#allocation3 + $0x50] sm:$0xf]
        %v5600 = vld [vmem:[#allocation3 + $0x54] sm:$0xf]
        %v5601 = vld [vmem:[#allocation3 + $0x58] sm:$0xf]
        %v5602 = vld [vmem:[#allocation3 + $0x5c] sm:$0xf]
        %v5603 = vld [vmem:[#allocation3 + $0x60] sm:$0xf]
        %v5604 = vld [vmem:[#allocation3 + $0x64] sm:$0xf]
        %v5605 = vld [vmem:[#allocation3 + $0x68] sm:$0xf]
        %v5606 = vld [vmem:[#allocation3 + $0x6c] sm:$0xf]
        %v5607 = vld [vmem:[#allocation3 + $0x70] sm:$0xf]
        %v5608 = vld [vmem:[#allocation3 + $0x74] sm:$0xf]
        %v5609 = vld [vmem:[#allocation3 + $0x78] sm:$0xf]
        %v5610 = vld [vmem:[#allocation3 + $0x7c] sm:$0xf]
        %v5611 = vld [vmem:[#allocation3 + $0x80] sm:$0xf]
        %v5612 = vld [vmem:[#allocation3 + $0x84] sm:$0xf]
        %v5613 = vld [vmem:[#allocation3 + $0x88] sm:$0xf]
        %v5614 = vld [vmem:[#allocation3 + $0x8c] sm:$0xf]
        %v5615 = vld [vmem:[#allocation3 + $0x90] sm:$0xf]
        %v5616 = vld [vmem:[#allocation3 + $0x94] sm:$0xf]
        %v5617 = vld [vmem:[#allocation3 + $0x98] sm:$0xf]
        %v5618 = vld [vmem:[#allocation3 + $0x9c] sm:$0xf]
        %v5619 = vld [vmem:[#allocation3 + $0xa0] sm:$0xf]
        %v5620 = vld [vmem:[#allocation3 + $0xa4] sm:$0xf]
        %v5621 = vld [vmem:[#allocation3 + $0xa8] sm:$0xf]
        %v5622 = vld [vmem:[#allocation3 + $0xac] sm:$0xf]
        %v5623 = vld [vmem:[#allocation3 + $0xb0] sm:$0xf]
        %v5624 = vld [vmem:[#allocation3 + $0xb4] sm:$0xf]
        %v5625 = vld [vmem:[#allocation3 + $0xb8] sm:$0xf]
        %v5626 = vld [vmem:[#allocation3 + $0xbc] sm:$0xf]
        %v5627 = vld [vmem:[#allocation3 + $0xc0] sm:$0xf]
        %v5628 = vld [vmem:[#allocation3 + $0xc4] sm:$0xf]
        %v5629 = vld [vmem:[#allocation3 + $0xc8] sm:$0xf]
        %v5630 = vld [vmem:[#allocation3 + $0xcc] sm:$0xf]
        %v5631 = vld [vmem:[#allocation3 + $0xd0] sm:$0xf]
        %v5632 = vld [vmem:[#allocation3 + $0xd4] sm:$0xf]
        %v5633 = vld [vmem:[#allocation3 + $0xd8] sm:$0xf]
        %s5634 = scalar_lea.vmem %s3, 24
        %v5635 = vld [vmem:[%s5634] sm:$0xf]
        %v5685 = vunpack.c.l.b16 %v5585
        %v5686 = vunpack.c.l.b16 %v5586
        %v5687 = vunpack.c.l.b16 %v5587
        %v5688 = vunpack.c.l.b16 %v5588
        %v5689 = vunpack.c.l.b16 %v5589
        %v5690 = vunpack.c.l.b16 %v5590
        %v5691 = vunpack.c.l.b16 %v5591
        %v5692 = vunpack.c.l.b16 %v5592
        %v5693 = vunpack.c.l.b16 %v5593
        %v5694 = vunpack.c.l.b16 %v5594
        %v5695 = vunpack.c.l.b16 %v5595
        %v5696 = vunpack.c.l.b16 %v5596
        %v5697 = vunpack.c.l.b16 %v5597
        %v5698 = vunpack.c.l.b16 %v5598
        %v5699 = vunpack.c.l.b16 %v5599
        %v5700 = vunpack.c.l.b16 %v5600
        %v5701 = vunpack.c.l.b16 %v5601
        %v5702 = vunpack.c.l.b16 %v5602
        %v5703 = vunpack.c.l.b16 %v5603
        %v5704 = vunpack.c.l.b16 %v5604
        %v5705 = vunpack.c.l.b16 %v5605
        %v5706 = vunpack.c.l.b16 %v5606
        %v5707 = vunpack.c.l.b16 %v5607
        %v5708 = vunpack.c.l.b16 %v5608
        %v5709 = vunpack.c.l.b16 %v5609
        %v5710 = vunpack.c.l.b16 %v5610
        %v5711 = vunpack.c.l.b16 %v5611
        %v5712 = vunpack.c.l.b16 %v5612
        %v5713 = vunpack.c.l.b16 %v5613
        %v5714 = vunpack.c.l.b16 %v5614
        %v5715 = vunpack.c.l.b16 %v5615
        %v5716 = vunpack.c.l.b16 %v5616
        %v5717 = vunpack.c.l.b16 %v5617
        %v5718 = vunpack.c.l.b16 %v5618
        %v5719 = vunpack.c.l.b16 %v5619
        %v5720 = vunpack.c.l.b16 %v5620
        %v5721 = vunpack.c.l.b16 %v5621
        %v5722 = vunpack.c.l.b16 %v5622
        %v5723 = vunpack.c.l.b16 %v5623
        %v5724 = vunpack.c.l.b16 %v5624
        %v5725 = vunpack.c.l.b16 %v5625
        %v5726 = vunpack.c.l.b16 %v5626
        %v5727 = vunpack.c.l.b16 %v5627
        %v5728 = vunpack.c.l.b16 %v5628
        %v5729 = vunpack.c.l.b16 %v5629
        %v5730 = vunpack.c.l.b16 %v5630
        %v5731 = vunpack.c.l.b16 %v5631
        %v5732 = vunpack.c.l.b16 %v5632
        %v5733 = vunpack.c.l.b16 %v5633
        %v5734 = vpack.c.b16 %v5686, %v5685
        %v5735 = vpack.c.b16 %v5688, %v5687
        %v5736 = vpack.c.b16 %v5690, %v5689
        %v5737 = vpack.c.b16 %v5692, %v5691
        %v5738 = vpack.c.b16 %v5694, %v5693
        %v5739 = vpack.c.b16 %v5696, %v5695
        %v5740 = vpack.c.b16 %v5698, %v5697
        %v5741 = vpack.c.b16 %v5700, %v5699
        %v5742 = vpack.c.b16 %v5702, %v5701
        %v5743 = vpack.c.b16 %v5704, %v5703
        %v5744 = vpack.c.b16 %v5706, %v5705
        %v5745 = vpack.c.b16 %v5708, %v5707
        %v5746 = vpack.c.b16 %v5710, %v5709
        %v5747 = vpack.c.b16 %v5712, %v5711
        %v5748 = vpack.c.b16 %v5714, %v5713
        %v5749 = vpack.c.b16 %v5716, %v5715
        %v5750 = vpack.c.b16 %v5718, %v5717
        %v5751 = vpack.c.b16 %v5720, %v5719
        %v5752 = vpack.c.b16 %v5722, %v5721
        %v5753 = vpack.c.b16 %v5724, %v5723
        %v5754 = vpack.c.b16 %v5726, %v5725
        %v5755 = vpack.c.b16 %v5728, %v5727
        %v5756 = vpack.c.b16 %v5730, %v5729
        %v5757 = vpack.c.b16 %v5732, %v5731
        %v5758 = vpack.c.b16 %v5733, %v5733
        %v5760 = vshrl.u32 %v5734, 16
        %v5762 = vrot.slane %v5760, 3
        %v5763 = vshll.u32 %v5734, 16
        %v5765 = vrot.slane %v5763, 4
        %v5766 = vor.u32 %v5762, %v5765
        %v5768 = vshrl.u32 %v5735, 16
        %v5770 = vrot.slane %v5768, 3
        %v5771 = vshll.u32 %v5735, 16
        %v5773 = vrot.slane %v5771, 4
        %v5774 = vor.u32 %v5770, %v5773
        %v5775 = vsel %vm3614, %v5766, %v5774
        %v5777 = vshrl.u32 %v5736, 16
        %v5779 = vrot.slane %v5777, 3
        %v5780 = vshll.u32 %v5736, 16
        %v5782 = vrot.slane %v5780, 4
        %v5783 = vor.u32 %v5779, %v5782
        %v5784 = vsel %vm3614, %v5774, %v5783
        %v5786 = vshrl.u32 %v5737, 16
        %v5788 = vrot.slane %v5786, 3
        %v5789 = vshll.u32 %v5737, 16
        %v5791 = vrot.slane %v5789, 4
        %v5792 = vor.u32 %v5788, %v5791
        %v5793 = vsel %vm3614, %v5783, %v5792
        %v5795 = vshrl.u32 %v5738, 16
        %v5797 = vrot.slane %v5795, 3
        %v5798 = vshll.u32 %v5738, 16
        %v5800 = vrot.slane %v5798, 4
        %v5801 = vor.u32 %v5797, %v5800
        %v5802 = vsel %vm3614, %v5792, %v5801
        %v5804 = vshrl.u32 %v5739, 16
        %v5806 = vrot.slane %v5804, 3
        %v5807 = vshll.u32 %v5739, 16
        %v5809 = vrot.slane %v5807, 4
        %v5810 = vor.u32 %v5806, %v5809
        %v5811 = vsel %vm3614, %v5801, %v5810
        %v5813 = vshrl.u32 %v5740, 16
        %v5815 = vrot.slane %v5813, 3
        %v5816 = vshll.u32 %v5740, 16
        %v5818 = vrot.slane %v5816, 4
        %v5819 = vor.u32 %v5815, %v5818
        %v5820 = vsel %vm3614, %v5810, %v5819
        %v5822 = vshrl.u32 %v5741, 16
        %v5824 = vrot.slane %v5822, 3
        %v5825 = vshll.u32 %v5741, 16
        %v5827 = vrot.slane %v5825, 4
        %v5828 = vor.u32 %v5824, %v5827
        %v5829 = vsel %vm3614, %v5819, %v5828
        %v5831 = vshrl.u32 %v5742, 16
        %v5833 = vrot.slane %v5831, 3
        %v5834 = vshll.u32 %v5742, 16
        %v5836 = vrot.slane %v5834, 4
        %v5837 = vor.u32 %v5833, %v5836
        %v5838 = vsel %vm3614, %v5828, %v5837
        %v5840 = vshrl.u32 %v5743, 16
        %v5842 = vrot.slane %v5840, 3
        %v5843 = vshll.u32 %v5743, 16
        %v5845 = vrot.slane %v5843, 4
        %v5846 = vor.u32 %v5842, %v5845
        %v5847 = vsel %vm3614, %v5837, %v5846
        %v5849 = vshrl.u32 %v5744, 16
        %v5851 = vrot.slane %v5849, 3
        %v5852 = vshll.u32 %v5744, 16
        %v5854 = vrot.slane %v5852, 4
        %v5855 = vor.u32 %v5851, %v5854
        %v5856 = vsel %vm3614, %v5846, %v5855
        %v5858 = vshrl.u32 %v5745, 16
        %v5860 = vrot.slane %v5858, 3
        %v5861 = vshll.u32 %v5745, 16
        %v5863 = vrot.slane %v5861, 4
        %v5864 = vor.u32 %v5860, %v5863
        %v5865 = vsel %vm3614, %v5855, %v5864
        %v5867 = vshrl.u32 %v5746, 16
        %v5869 = vrot.slane %v5867, 3
        %v5870 = vshll.u32 %v5746, 16
        %v5872 = vrot.slane %v5870, 4
        %v5873 = vor.u32 %v5869, %v5872
        %v5874 = vsel %vm3614, %v5864, %v5873
        %v5876 = vshrl.u32 %v5747, 16
        %v5878 = vrot.slane %v5876, 3
        %v5879 = vshll.u32 %v5747, 16
        %v5881 = vrot.slane %v5879, 4
        %v5882 = vor.u32 %v5878, %v5881
        %v5883 = vsel %vm3614, %v5873, %v5882
        %v5885 = vshrl.u32 %v5748, 16
        %v5887 = vrot.slane %v5885, 3
        %v5888 = vshll.u32 %v5748, 16
        %v5890 = vrot.slane %v5888, 4
        %v5891 = vor.u32 %v5887, %v5890
        %v5892 = vsel %vm3614, %v5882, %v5891
        %v5894 = vshrl.u32 %v5749, 16
        %v5896 = vrot.slane %v5894, 3
        %v5897 = vshll.u32 %v5749, 16
        %v5899 = vrot.slane %v5897, 4
        %v5900 = vor.u32 %v5896, %v5899
        %v5901 = vsel %vm3614, %v5891, %v5900
        %v5903 = vshrl.u32 %v5750, 16
        %v5905 = vrot.slane %v5903, 3
        %v5906 = vshll.u32 %v5750, 16
        %v5908 = vrot.slane %v5906, 4
        %v5909 = vor.u32 %v5905, %v5908
        %v5910 = vsel %vm3614, %v5900, %v5909
        %v5912 = vshrl.u32 %v5751, 16
        %v5914 = vrot.slane %v5912, 3
        %v5915 = vshll.u32 %v5751, 16
        %v5917 = vrot.slane %v5915, 4
        %v5918 = vor.u32 %v5914, %v5917
        %v5919 = vsel %vm3614, %v5909, %v5918
        %v5921 = vshrl.u32 %v5752, 16
        %v5923 = vrot.slane %v5921, 3
        %v5924 = vshll.u32 %v5752, 16
        %v5926 = vrot.slane %v5924, 4
        %v5927 = vor.u32 %v5923, %v5926
        %v5928 = vsel %vm3614, %v5918, %v5927
        %v5930 = vshrl.u32 %v5753, 16
        %v5932 = vrot.slane %v5930, 3
        %v5933 = vshll.u32 %v5753, 16
        %v5935 = vrot.slane %v5933, 4
        %v5936 = vor.u32 %v5932, %v5935
        %v5937 = vsel %vm3614, %v5927, %v5936
        %v5939 = vshrl.u32 %v5754, 16
        %v5941 = vrot.slane %v5939, 3
        %v5942 = vshll.u32 %v5754, 16
        %v5944 = vrot.slane %v5942, 4
        %v5945 = vor.u32 %v5941, %v5944
        %v5946 = vsel %vm3614, %v5936, %v5945
        %v5948 = vshrl.u32 %v5755, 16
        %v5950 = vrot.slane %v5948, 3
        %v5951 = vshll.u32 %v5755, 16
        %v5953 = vrot.slane %v5951, 4
        %v5954 = vor.u32 %v5950, %v5953
        %v5955 = vsel %vm3614, %v5945, %v5954
        %v5957 = vshrl.u32 %v5756, 16
        %v5959 = vrot.slane %v5957, 3
        %v5960 = vshll.u32 %v5756, 16
        %v5962 = vrot.slane %v5960, 4
        %v5963 = vor.u32 %v5959, %v5962
        %v5964 = vsel %vm3614, %v5954, %v5963
        %v5966 = vshrl.u32 %v5757, 16
        %v5968 = vrot.slane %v5966, 3
        %v5969 = vshll.u32 %v5757, 16
        %v5971 = vrot.slane %v5969, 4
        %v5972 = vor.u32 %v5968, %v5971
        %v5973 = vsel %vm3614, %v5963, %v5972
        %v5975 = vshrl.u32 %v5758, 16
        %v5977 = vrot.slane %v5975, 3
        %v5978 = vshll.u32 %v5758, 16
        %v5980 = vrot.slane %v5978, 4
        %v5981 = vor.u32 %v5977, %v5980
        %v5982 = vsel %vm3614, %v5972, %v5981
        %v5984 = vsel %vm3472, %v5635, 0
        %v5987 = vsel %vm3472, %v5775, 0
        %v5990 = vsel %vm3472, %v5784, 0
        %v5993 = vsel %vm3472, %v5793, 0
        %v5996 = vsel %vm3472, %v5802, 0
        %v5999 = vsel %vm3472, %v5811, 0
        %v6002 = vsel %vm3472, %v5820, 0
        %v6005 = vsel %vm3472, %v5829, 0
        %v6008 = vsel %vm3472, %v5838, 0
        %v6011 = vsel %vm3472, %v5847, 0
        %v6014 = vsel %vm3472, %v5856, 0
        %v6017 = vsel %vm3472, %v5865, 0
        %v6020 = vsel %vm3472, %v5874, 0
        %v6023 = vsel %vm3472, %v5883, 0
        %v6026 = vsel %vm3472, %v5892, 0
        %v6029 = vsel %vm3472, %v5901, 0
        %v6032 = vsel %vm3472, %v5910, 0
        %v6035 = vsel %vm3472, %v5919, 0
        %v6038 = vsel %vm3472, %v5928, 0
        %v6041 = vsel %vm3472, %v5937, 0
        %v6044 = vsel %vm3472, %v5946, 0
        %v6047 = vsel %vm3472, %v5955, 0
        %v6050 = vsel %vm3472, %v5964, 0
        %v6053 = vsel %vm3472, %v5973, 0
        %v6056 = vsel %vm3472, %v5982, 0
        %6058 = vmatpush.bf16.xpose.msra.mxu0 %v6008
        %6059 = vmatpush.bf16.xpose.msra.mxu0 %v6005
        %6060 = vmatpush.bf16.xpose.msra.mxu0 %v6002
        %6061 = vmatpush.bf16.xpose.msra.mxu0 %v5999
        %6062 = vmatpush.bf16.xpose.msra.mxu0 %v5996
        %6063 = vmatpush.bf16.xpose.msra.mxu0 %v5993
        %6064 = vmatpush.bf16.xpose.msra.mxu0 %v5990
        %6065 = vmatpush.bf16.xpose.msra.mxu0 %v5987
        %6066 = vmatmul.bf16.gmra.mxu0 %v5984
        %v6067 = vpop.f32.mrf.mxu0
        %v6068 = vadd.f32 0.0, %v6067
        %v6069 = vpop.f32.mrf.mxu0
        %6070 = vdwg.mxu0
        %6071 = vmatpush.bf16.xpose.msra.mxu0 %v6032
        %6072 = vmatpush.bf16.xpose.msra.mxu0 %v6029
        %6073 = vmatpush.bf16.xpose.msra.mxu0 %v6026
        %6074 = vmatpush.bf16.xpose.msra.mxu0 %v6023
        %6075 = vmatpush.bf16.xpose.msra.mxu0 %v6020
        %6076 = vmatpush.bf16.xpose.msra.mxu0 %v6017
        %6077 = vmatpush.bf16.xpose.msra.mxu0 %v6014
        %6078 = vmatpush.bf16.xpose.msra.mxu0 %v6011
        %6079 = vmatmul.bf16.gmra.mxu0 %v5984
        %v6080 = vpop.f32.mrf.mxu0
        %v6081 = vadd.f32 0.0, %v6080
        %v6082 = vpop.f32.mrf.mxu0
        %6083 = vdwg.mxu0
        %6084 = vmatpush.bf16.xpose.msra.mxu0 %v6056
        %6085 = vmatpush.bf16.xpose.msra.mxu0 %v6053
        %6086 = vmatpush.bf16.xpose.msra.mxu0 %v6050
        %6087 = vmatpush.bf16.xpose.msra.mxu0 %v6047
        %6088 = vmatpush.bf16.xpose.msra.mxu0 %v6044
        %6089 = vmatpush.bf16.xpose.msra.mxu0 %v6041
        %6090 = vmatpush.bf16.xpose.msra.mxu0 %v6038
        %6091 = vmatpush.bf16.xpose.msra.mxu0 %v6035
        %6092 = vmatmul.bf16.gmra.mxu0 %v5984
        %v6093 = vpop.f32.mrf.mxu0
        %v6094 = vadd.f32 0.0, %v6093
        %v6095 = vpop.f32.mrf.mxu0
        %6096 = vdwg.mxu0
        %v6097 = vadd.f32 %v5582, %v6068
        %v6098 = vadd.f32 %v5583, %v6081
        %v6099 = vadd.f32 %v5584, %v6094
        %s6100 = scalar_lea.vmem %s3, 28
        %v6101 = vld [vmem:[%s6100] sm:$0xf]
        %v6102 = vpack.c.b16 %v5687, %v5686
        %v6103 = vpack.c.b16 %v5689, %v5688
        %v6104 = vpack.c.b16 %v5691, %v5690
        %v6105 = vpack.c.b16 %v5693, %v5692
        %v6106 = vpack.c.b16 %v5695, %v5694
        %v6107 = vpack.c.b16 %v5697, %v5696
        %v6108 = vpack.c.b16 %v5699, %v5698
        %v6109 = vpack.c.b16 %v5701, %v5700
        %v6110 = vpack.c.b16 %v5703, %v5702
        %v6111 = vpack.c.b16 %v5705, %v5704
        %v6112 = vpack.c.b16 %v5707, %v5706
        %v6113 = vpack.c.b16 %v5709, %v5708
        %v6114 = vpack.c.b16 %v5711, %v5710
        %v6115 = vpack.c.b16 %v5713, %v5712
        %v6116 = vpack.c.b16 %v5715, %v5714
        %v6117 = vpack.c.b16 %v5717, %v5716
        %v6118 = vpack.c.b16 %v5719, %v5718
        %v6119 = vpack.c.b16 %v5721, %v5720
        %v6120 = vpack.c.b16 %v5723, %v5722
        %v6121 = vpack.c.b16 %v5725, %v5724
        %v6122 = vpack.c.b16 %v5727, %v5726
        %v6123 = vpack.c.b16 %v5729, %v5728
        %v6124 = vpack.c.b16 %v5731, %v5730
        %v6125 = vpack.c.b16 %v5733, %v5732
        %v6127 = vsel %vm3472, %v6101, 0
        %v6130 = vsel %vm3472, %v6102, 0
        %v6133 = vsel %vm3472, %v6103, 0
        %v6136 = vsel %vm3472, %v6104, 0
        %v6139 = vsel %vm3472, %v6105, 0
        %v6142 = vsel %vm3472, %v6106, 0
        %v6145 = vsel %vm3472, %v6107, 0
        %v6148 = vsel %vm3472, %v6108, 0
        %v6151 = vsel %vm3472, %v6109, 0
        %v6154 = vsel %vm3472, %v6110, 0
        %v6157 = vsel %vm3472, %v6111, 0
        %v6160 = vsel %vm3472, %v6112, 0
        %v6163 = vsel %vm3472, %v6113, 0
        %v6166 = vsel %vm3472, %v6114, 0
        %v6169 = vsel %vm3472, %v6115, 0
        %v6172 = vsel %vm3472, %v6116, 0
        %v6175 = vsel %vm3472, %v6117, 0
        %v6178 = vsel %vm3472, %v6118, 0
        %v6181 = vsel %vm3472, %v6119, 0
        %v6184 = vsel %vm3472, %v6120, 0
        %v6187 = vsel %vm3472, %v6121, 0
        %v6190 = vsel %vm3472, %v6122, 0
        %v6193 = vsel %vm3472, %v6123, 0
        %v6196 = vsel %vm3472, %v6124, 0
        %v6199 = vsel %vm3472, %v6125, 0
        %6201 = vmatpush.bf16.xpose.msra.mxu0 %v6151
        %6202 = vmatpush.bf16.xpose.msra.mxu0 %v6148
        %6203 = vmatpush.bf16.xpose.msra.mxu0 %v6145
        %6204 = vmatpush.bf16.xpose.msra.mxu0 %v6142
        %6205 = vmatpush.bf16.xpose.msra.mxu0 %v6139
        %6206 = vmatpush.bf16.xpose.msra.mxu0 %v6136
        %6207 = vmatpush.bf16.xpose.msra.mxu0 %v6133
        %6208 = vmatpush.bf16.xpose.msra.mxu0 %v6130
        %6209 = vmatmul.bf16.gmra.mxu0 %v6127
        %v6210 = vpop.f32.mrf.mxu0
        %v6211 = vadd.f32 0.0, %v6210
        %v6212 = vpop.f32.mrf.mxu0
        %6213 = vdwg.mxu0
        %6214 = vmatpush.bf16.xpose.msra.mxu0 %v6175
        %6215 = vmatpush.bf16.xpose.msra.mxu0 %v6172
        %6216 = vmatpush.bf16.xpose.msra.mxu0 %v6169
        %6217 = vmatpush.bf16.xpose.msra.mxu0 %v6166
        %6218 = vmatpush.bf16.xpose.msra.mxu0 %v6163
        %6219 = vmatpush.bf16.xpose.msra.mxu0 %v6160
        %6220 = vmatpush.bf16.xpose.msra.mxu0 %v6157
        %6221 = vmatpush.bf16.xpose.msra.mxu0 %v6154
        %6222 = vmatmul.bf16.gmra.mxu0 %v6127
        %v6223 = vpop.f32.mrf.mxu0
        %v6224 = vadd.f32 0.0, %v6223
        %v6225 = vpop.f32.mrf.mxu0
        %6226 = vdwg.mxu0
        %6227 = vmatpush.bf16.xpose.msra.mxu0 %v6199
        %6228 = vmatpush.bf16.xpose.msra.mxu0 %v6196
        %6229 = vmatpush.bf16.xpose.msra.mxu0 %v6193
        %6230 = vmatpush.bf16.xpose.msra.mxu0 %v6190
        %6231 = vmatpush.bf16.xpose.msra.mxu0 %v6187
        %6232 = vmatpush.bf16.xpose.msra.mxu0 %v6184
        %6233 = vmatpush.bf16.xpose.msra.mxu0 %v6181
        %6234 = vmatpush.bf16.xpose.msra.mxu0 %v6178
        %6235 = vmatmul.bf16.gmra.mxu0 %v6127
        %v6236 = vpop.f32.mrf.mxu0
        %v6237 = vadd.f32 0.0, %v6236
        %v6238 = vpop.f32.mrf.mxu0
        %6239 = vdwg.mxu0
        %v6240 = vadd.f32 %v6097, %v6211
        %v6241 = vadd.f32 %v6098, %v6224
        %v6242 = vadd.f32 %v6099, %v6237
        %v6243 = vld [vmem:[#allocation3 + $0x1c] sm:$0xf]
        %v6244 = vld [vmem:[#allocation3 + $0x20] sm:$0xf]
        %v6245 = vld [vmem:[#allocation3 + $0x24] sm:$0xf]
        %v6246 = vld [vmem:[#allocation3 + $0x28] sm:$0xf]
        %v6247 = vld [vmem:[#allocation3 + $0x2c] sm:$0xf]
        %v6248 = vld [vmem:[#allocation3 + $0x30] sm:$0xf]
        %v6249 = vld [vmem:[#allocation3 + $0x34] sm:$0xf]
        %v6250 = vld [vmem:[#allocation3 + $0x38] sm:$0xf]
        %v6251 = vld [vmem:[#allocation3 + $0x3c] sm:$0xf]
        %v6252 = vld [vmem:[#allocation3 + $0x40] sm:$0xf]
        %v6253 = vld [vmem:[#allocation3 + $0x44] sm:$0xf]
        %v6254 = vld [vmem:[#allocation3 + $0x48] sm:$0xf]
        %v6255 = vld [vmem:[#allocation3 + $0x4c] sm:$0xf]
        %v6256 = vld [vmem:[#allocation3 + $0x50] sm:$0xf]
        %v6257 = vld [vmem:[#allocation3 + $0x54] sm:$0xf]
        %v6258 = vld [vmem:[#allocation3 + $0x58] sm:$0xf]
        %v6259 = vld [vmem:[#allocation3 + $0x5c] sm:$0xf]
        %v6260 = vld [vmem:[#allocation3 + $0x60] sm:$0xf]
        %v6261 = vld [vmem:[#allocation3 + $0x64] sm:$0xf]
        %v6262 = vld [vmem:[#allocation3 + $0x68] sm:$0xf]
        %v6263 = vld [vmem:[#allocation3 + $0x6c] sm:$0xf]
        %v6264 = vld [vmem:[#allocation3 + $0x70] sm:$0xf]
        %v6265 = vld [vmem:[#allocation3 + $0x74] sm:$0xf]
        %v6266 = vld [vmem:[#allocation3 + $0x78] sm:$0xf]
        %v6267 = vld [vmem:[#allocation3 + $0x7c] sm:$0xf]
        %v6268 = vld [vmem:[#allocation3 + $0x80] sm:$0xf]
        %v6269 = vld [vmem:[#allocation3 + $0x84] sm:$0xf]
        %v6270 = vld [vmem:[#allocation3 + $0x88] sm:$0xf]
        %v6271 = vld [vmem:[#allocation3 + $0x8c] sm:$0xf]
        %v6272 = vld [vmem:[#allocation3 + $0x90] sm:$0xf]
        %v6273 = vld [vmem:[#allocation3 + $0x94] sm:$0xf]
        %v6274 = vld [vmem:[#allocation3 + $0x98] sm:$0xf]
        %v6275 = vld [vmem:[#allocation3 + $0x9c] sm:$0xf]
        %v6276 = vld [vmem:[#allocation3 + $0xa0] sm:$0xf]
        %v6277 = vld [vmem:[#allocation3 + $0xa4] sm:$0xf]
        %v6278 = vld [vmem:[#allocation3 + $0xa8] sm:$0xf]
        %v6279 = vld [vmem:[#allocation3 + $0xac] sm:$0xf]
        %v6280 = vld [vmem:[#allocation3 + $0xb0] sm:$0xf]
        %v6281 = vld [vmem:[#allocation3 + $0xb4] sm:$0xf]
        %v6282 = vld [vmem:[#allocation3 + $0xb8] sm:$0xf]
        %v6283 = vld [vmem:[#allocation3 + $0xbc] sm:$0xf]
        %v6284 = vld [vmem:[#allocation3 + $0xc0] sm:$0xf]
        %v6285 = vld [vmem:[#allocation3 + $0xc4] sm:$0xf]
        %v6286 = vld [vmem:[#allocation3 + $0xc8] sm:$0xf]
        %v6287 = vld [vmem:[#allocation3 + $0xcc] sm:$0xf]
        %v6288 = vld [vmem:[#allocation3 + $0xd0] sm:$0xf]
        %v6289 = vld [vmem:[#allocation3 + $0xd4] sm:$0xf]
        %v6290 = vld [vmem:[#allocation3 + $0xd8] sm:$0xf]
        %v6291 = vld [vmem:[#allocation3 + $0xdc] sm:$0x1]
        %s6292 = scalar_lea.vmem %s3, 32
        %v6293 = vld [vmem:[%s6292] sm:$0xf]
        %v6343 = vunpack.c.l.b16 %v6243
        %v6344 = vunpack.c.l.b16 %v6244
        %v6345 = vunpack.c.l.b16 %v6245
        %v6346 = vunpack.c.l.b16 %v6246
        %v6347 = vunpack.c.l.b16 %v6247
        %v6348 = vunpack.c.l.b16 %v6248
        %v6349 = vunpack.c.l.b16 %v6249
        %v6350 = vunpack.c.l.b16 %v6250
        %v6351 = vunpack.c.l.b16 %v6251
        %v6352 = vunpack.c.l.b16 %v6252
        %v6353 = vunpack.c.l.b16 %v6253
        %v6354 = vunpack.c.l.b16 %v6254
        %v6355 = vunpack.c.l.b16 %v6255
        %v6356 = vunpack.c.l.b16 %v6256
        %v6357 = vunpack.c.l.b16 %v6257
        %v6358 = vunpack.c.l.b16 %v6258
        %v6359 = vunpack.c.l.b16 %v6259
        %v6360 = vunpack.c.l.b16 %v6260
        %v6361 = vunpack.c.l.b16 %v6261
        %v6362 = vunpack.c.l.b16 %v6262
        %v6363 = vunpack.c.l.b16 %v6263
        %v6364 = vunpack.c.l.b16 %v6264
        %v6365 = vunpack.c.l.b16 %v6265
        %v6366 = vunpack.c.l.b16 %v6266
        %v6367 = vunpack.c.l.b16 %v6267
        %v6368 = vunpack.c.l.b16 %v6268
        %v6369 = vunpack.c.l.b16 %v6269
        %v6370 = vunpack.c.l.b16 %v6270
        %v6371 = vunpack.c.l.b16 %v6271
        %v6372 = vunpack.c.l.b16 %v6272
        %v6373 = vunpack.c.l.b16 %v6273
        %v6374 = vunpack.c.l.b16 %v6274
        %v6375 = vunpack.c.l.b16 %v6275
        %v6376 = vunpack.c.l.b16 %v6276
        %v6377 = vunpack.c.l.b16 %v6277
        %v6378 = vunpack.c.l.b16 %v6278
        %v6379 = vunpack.c.l.b16 %v6279
        %v6380 = vunpack.c.l.b16 %v6280
        %v6381 = vunpack.c.l.b16 %v6281
        %v6382 = vunpack.c.l.b16 %v6282
        %v6383 = vunpack.c.l.b16 %v6283
        %v6384 = vunpack.c.l.b16 %v6284
        %v6385 = vunpack.c.l.b16 %v6285
        %v6386 = vunpack.c.l.b16 %v6286
        %v6387 = vunpack.c.l.b16 %v6287
        %v6388 = vunpack.c.l.b16 %v6288
        %v6389 = vunpack.c.l.b16 %v6289
        %v6390 = vunpack.c.l.b16 %v6290
        %v6391 = vunpack.c.l.b16 %v6291
        %v6392 = vpack.c.b16 %v6344, %v6343
        %v6393 = vpack.c.b16 %v6346, %v6345
        %v6394 = vpack.c.b16 %v6348, %v6347
        %v6395 = vpack.c.b16 %v6350, %v6349
        %v6396 = vpack.c.b16 %v6352, %v6351
        %v6397 = vpack.c.b16 %v6354, %v6353
        %v6398 = vpack.c.b16 %v6356, %v6355
        %v6399 = vpack.c.b16 %v6358, %v6357
        %v6400 = vpack.c.b16 %v6360, %v6359
        %v6401 = vpack.c.b16 %v6362, %v6361
        %v6402 = vpack.c.b16 %v6364, %v6363
        %v6403 = vpack.c.b16 %v6366, %v6365
        %v6404 = vpack.c.b16 %v6368, %v6367
        %v6405 = vpack.c.b16 %v6370, %v6369
        %v6406 = vpack.c.b16 %v6372, %v6371
        %v6407 = vpack.c.b16 %v6374, %v6373
        %v6408 = vpack.c.b16 %v6376, %v6375
        %v6409 = vpack.c.b16 %v6378, %v6377
        %v6410 = vpack.c.b16 %v6380, %v6379
        %v6411 = vpack.c.b16 %v6382, %v6381
        %v6412 = vpack.c.b16 %v6384, %v6383
        %v6413 = vpack.c.b16 %v6386, %v6385
        %v6414 = vpack.c.b16 %v6388, %v6387
        %v6415 = vpack.c.b16 %v6390, %v6389
        %v6416 = vpack.c.b16 %v6391, %v6391
        %v6418 = vshrl.u32 %v6392, 16
        %v6420 = vshll.u32 %v6392, 16
        %v6422 = vrot.slane %v6420, 1
        %v6423 = vor.u32 %v6418, %v6422
        %v6425 = vshll.u32 %v6393, 16
        %v6427 = vrot.slane %v6425, 1
        %v6428 = vsel %vm626, %v6423, %v6427
        %v6429 = vshrl.u32 %v6393, 16
        %v6431 = vor.u32 %v6429, %v6427
        %v6433 = vshll.u32 %v6394, 16
        %v6435 = vrot.slane %v6433, 1
        %v6436 = vsel %vm626, %v6431, %v6435
        %v6437 = vshrl.u32 %v6394, 16
        %v6439 = vor.u32 %v6437, %v6435
        %v6441 = vshll.u32 %v6395, 16
        %v6443 = vrot.slane %v6441, 1
        %v6444 = vsel %vm626, %v6439, %v6443
        %v6445 = vshrl.u32 %v6395, 16
        %v6447 = vor.u32 %v6445, %v6443
        %v6449 = vshll.u32 %v6396, 16
        %v6451 = vrot.slane %v6449, 1
        %v6452 = vsel %vm626, %v6447, %v6451
        %v6453 = vshrl.u32 %v6396, 16
        %v6455 = vor.u32 %v6453, %v6451
        %v6457 = vshll.u32 %v6397, 16
        %v6459 = vrot.slane %v6457, 1
        %v6460 = vsel %vm626, %v6455, %v6459
        %v6461 = vshrl.u32 %v6397, 16
        %v6463 = vor.u32 %v6461, %v6459
        %v6465 = vshll.u32 %v6398, 16
        %v6467 = vrot.slane %v6465, 1
        %v6468 = vsel %vm626, %v6463, %v6467
        %v6469 = vshrl.u32 %v6398, 16
        %v6471 = vor.u32 %v6469, %v6467
        %v6473 = vshll.u32 %v6399, 16
        %v6475 = vrot.slane %v6473, 1
        %v6476 = vsel %vm626, %v6471, %v6475
        %v6477 = vshrl.u32 %v6399, 16
        %v6479 = vor.u32 %v6477, %v6475
        %v6481 = vshll.u32 %v6400, 16
        %v6483 = vrot.slane %v6481, 1
        %v6484 = vsel %vm626, %v6479, %v6483
        %v6485 = vshrl.u32 %v6400, 16
        %v6487 = vor.u32 %v6485, %v6483
        %v6489 = vshll.u32 %v6401, 16
        %v6491 = vrot.slane %v6489, 1
        %v6492 = vsel %vm626, %v6487, %v6491
        %v6493 = vshrl.u32 %v6401, 16
        %v6495 = vor.u32 %v6493, %v6491
        %v6497 = vshll.u32 %v6402, 16
        %v6499 = vrot.slane %v6497, 1
        %v6500 = vsel %vm626, %v6495, %v6499
        %v6501 = vshrl.u32 %v6402, 16
        %v6503 = vor.u32 %v6501, %v6499
        %v6505 = vshll.u32 %v6403, 16
        %v6507 = vrot.slane %v6505, 1
        %v6508 = vsel %vm626, %v6503, %v6507
        %v6509 = vshrl.u32 %v6403, 16
        %v6511 = vor.u32 %v6509, %v6507
        %v6513 = vshll.u32 %v6404, 16
        %v6515 = vrot.slane %v6513, 1
        %v6516 = vsel %vm626, %v6511, %v6515
        %v6517 = vshrl.u32 %v6404, 16
        %v6519 = vor.u32 %v6517, %v6515
        %v6521 = vshll.u32 %v6405, 16
        %v6523 = vrot.slane %v6521, 1
        %v6524 = vsel %vm626, %v6519, %v6523
        %v6525 = vshrl.u32 %v6405, 16
        %v6527 = vor.u32 %v6525, %v6523
        %v6529 = vshll.u32 %v6406, 16
        %v6531 = vrot.slane %v6529, 1
        %v6532 = vsel %vm626, %v6527, %v6531
        %v6533 = vshrl.u32 %v6406, 16
        %v6535 = vor.u32 %v6533, %v6531
        %v6537 = vshll.u32 %v6407, 16
        %v6539 = vrot.slane %v6537, 1
        %v6540 = vsel %vm626, %v6535, %v6539
        %v6541 = vshrl.u32 %v6407, 16
        %v6543 = vor.u32 %v6541, %v6539
        %v6545 = vshll.u32 %v6408, 16
        %v6547 = vrot.slane %v6545, 1
        %v6548 = vsel %vm626, %v6543, %v6547
        %v6549 = vshrl.u32 %v6408, 16
        %v6551 = vor.u32 %v6549, %v6547
        %v6553 = vshll.u32 %v6409, 16
        %v6555 = vrot.slane %v6553, 1
        %v6556 = vsel %vm626, %v6551, %v6555
        %v6557 = vshrl.u32 %v6409, 16
        %v6559 = vor.u32 %v6557, %v6555
        %v6561 = vshll.u32 %v6410, 16
        %v6563 = vrot.slane %v6561, 1
        %v6564 = vsel %vm626, %v6559, %v6563
        %v6565 = vshrl.u32 %v6410, 16
        %v6567 = vor.u32 %v6565, %v6563
        %v6569 = vshll.u32 %v6411, 16
        %v6571 = vrot.slane %v6569, 1
        %v6572 = vsel %vm626, %v6567, %v6571
        %v6573 = vshrl.u32 %v6411, 16
        %v6575 = vor.u32 %v6573, %v6571
        %v6577 = vshll.u32 %v6412, 16
        %v6579 = vrot.slane %v6577, 1
        %v6580 = vsel %vm626, %v6575, %v6579
        %v6581 = vshrl.u32 %v6412, 16
        %v6583 = vor.u32 %v6581, %v6579
        %v6585 = vshll.u32 %v6413, 16
        %v6587 = vrot.slane %v6585, 1
        %v6588 = vsel %vm626, %v6583, %v6587
        %v6589 = vshrl.u32 %v6413, 16
        %v6591 = vor.u32 %v6589, %v6587
        %v6593 = vshll.u32 %v6414, 16
        %v6595 = vrot.slane %v6593, 1
        %v6596 = vsel %vm626, %v6591, %v6595
        %v6597 = vshrl.u32 %v6414, 16
        %v6599 = vor.u32 %v6597, %v6595
        %v6601 = vshll.u32 %v6415, 16
        %v6603 = vrot.slane %v6601, 1
        %v6604 = vsel %vm626, %v6599, %v6603
        %v6605 = vshrl.u32 %v6415, 16
        %v6607 = vor.u32 %v6605, %v6603
        %v6609 = vshll.u32 %v6416, 16
        %v6611 = vrot.slane %v6609, 1
        %v6612 = vsel %vm626, %v6607, %v6611
        %v6614 = vsel %vm3472, %v6293, 0
        %v6617 = vsel %vm3472, %v6428, 0
        %v6620 = vsel %vm3472, %v6436, 0
        %v6623 = vsel %vm3472, %v6444, 0
        %v6626 = vsel %vm3472, %v6452, 0
        %v6629 = vsel %vm3472, %v6460, 0
        %v6632 = vsel %vm3472, %v6468, 0
        %v6635 = vsel %vm3472, %v6476, 0
        %v6638 = vsel %vm3472, %v6484, 0
        %v6641 = vsel %vm3472, %v6492, 0
        %v6644 = vsel %vm3472, %v6500, 0
        %v6647 = vsel %vm3472, %v6508, 0
        %v6650 = vsel %vm3472, %v6516, 0
        %v6653 = vsel %vm3472, %v6524, 0
        %v6656 = vsel %vm3472, %v6532, 0
        %v6659 = vsel %vm3472, %v6540, 0
        %v6662 = vsel %vm3472, %v6548, 0
        %v6665 = vsel %vm3472, %v6556, 0
        %v6668 = vsel %vm3472, %v6564, 0
        %v6671 = vsel %vm3472, %v6572, 0
        %v6674 = vsel %vm3472, %v6580, 0
        %v6677 = vsel %vm3472, %v6588, 0
        %v6680 = vsel %vm3472, %v6596, 0
        %v6683 = vsel %vm3472, %v6604, 0
        %v6686 = vsel %vm3472, %v6612, 0
        %6688 = vmatpush.bf16.xpose.msra.mxu0 %v6638
        %6689 = vmatpush.bf16.xpose.msra.mxu0 %v6635
        %6690 = vmatpush.bf16.xpose.msra.mxu0 %v6632
        %6691 = vmatpush.bf16.xpose.msra.mxu0 %v6629
        %6692 = vmatpush.bf16.xpose.msra.mxu0 %v6626
        %6693 = vmatpush.bf16.xpose.msra.mxu0 %v6623
        %6694 = vmatpush.bf16.xpose.msra.mxu0 %v6620
        %6695 = vmatpush.bf16.xpose.msra.mxu0 %v6617
        %6696 = vmatmul.bf16.gmra.mxu0 %v6614
        %v6697 = vpop.f32.mrf.mxu0
        %v6698 = vadd.f32 0.0, %v6697
        %v6699 = vpop.f32.mrf.mxu0
        %6700 = vdwg.mxu0
        %6701 = vmatpush.bf16.xpose.msra.mxu0 %v6662
        %6702 = vmatpush.bf16.xpose.msra.mxu0 %v6659
        %6703 = vmatpush.bf16.xpose.msra.mxu0 %v6656
        %6704 = vmatpush.bf16.xpose.msra.mxu0 %v6653
        %6705 = vmatpush.bf16.xpose.msra.mxu0 %v6650
        %6706 = vmatpush.bf16.xpose.msra.mxu0 %v6647
        %6707 = vmatpush.bf16.xpose.msra.mxu0 %v6644
        %6708 = vmatpush.bf16.xpose.msra.mxu0 %v6641
        %6709 = vmatmul.bf16.gmra.mxu0 %v6614
        %v6710 = vpop.f32.mrf.mxu0
        %v6711 = vadd.f32 0.0, %v6710
        %v6712 = vpop.f32.mrf.mxu0
        %6713 = vdwg.mxu0
        %6714 = vmatpush.bf16.xpose.msra.mxu0 %v6686
        %6715 = vmatpush.bf16.xpose.msra.mxu0 %v6683
        %6716 = vmatpush.bf16.xpose.msra.mxu0 %v6680
        %6717 = vmatpush.bf16.xpose.msra.mxu0 %v6677
        %6718 = vmatpush.bf16.xpose.msra.mxu0 %v6674
        %6719 = vmatpush.bf16.xpose.msra.mxu0 %v6671
        %6720 = vmatpush.bf16.xpose.msra.mxu0 %v6668
        %6721 = vmatpush.bf16.xpose.msra.mxu0 %v6665
        %6722 = vmatmul.bf16.gmra.mxu0 %v6614
        %v6723 = vpop.f32.mrf.mxu0
        %v6724 = vadd.f32 0.0, %v6723
        %v6725 = vpop.f32.mrf.mxu0
        %6726 = vdwg.mxu0
        %v6727 = vadd.f32 %v6240, %v6698
        %v6728 = vadd.f32 %v6241, %v6711
        %v6729 = vadd.f32 %v6242, %v6724
        %v6730 = vld [vmem:[%s4] sm:$0xff]
        %6732 = vset.pattern.permute.xlu0 0
        %6733 = vperm.xlu0 %6732, %v6730
        %v6734 = vpop.permute.xlu0 %6733
        %v6736 = vadd.f32 %v6727, %v6734
        %v6737 = vadd.f32 %v6728, %v6734
        %v6738 = vadd.f32 %v6729, %v6734
        %v6739 = vmax.f32 %v6736, 0.0
        %v6740 = vmax.f32 %v6737, 0.0
        %v6741 = vmax.f32 %v6738, 0.0
        %6742 = vst [vmem:[%s217] sm:$0xff] %v6739
        %6743 = vst [vmem:[%s217 + $0x8] sm:$0xff] %v6740
        %6744 = vst [vmem:[%s217 + $0x10] sm:$0xff] %v6741
        %s6745 = sand.u32 %s137, 1
        %s6746 = scalar_lea.sflag [#allocation5], %s6745
        %s6747 = sand.u32 %s137, 1
        %s6748 = smul.addr %s6747, 24
        %s6749 = scalar_lea.vmem [#allocation4], %s6748
        // Predicated region
        $region41: #{tpu_custom_call.1} parent=39 // pred_check
          %p6750 = pneg %p147
        $region42: #{tpu_custom_call.1} parent=39 // pred_check_branch
          %6752 = sbr.rel (%p6750) target = $region44
        $region43: #{tpu_custom_call.1} parent=39 // pred_region
          %6754 = vsyncadd %s6746, 0
          %s6755 = smul.addr %s19, 3
          %s6756 = smul.addr %s6755, 8
          %s6757 = scalar_lea.hbm %s5, %s6756
          %s6759 = sshll.u32 %s6749, 4
          %s6760 = int_to_ptr.vmem [resolvable:$true] %s6759
          %s6761 = sshll.u32 %s6757, 4
          %s6762 = int_to_ptr.hbm [resolvable:$true] %s6761
          %6764 = dma.vmem_to_hbm [thread:$0]  %s6760, 384, %s6762, %s6746
        $region44: #{tpu_custom_call.1} parent=39 // pred_fallthru
          _
      $region40: #{tpu_custom_call.1} parent=5 // pred_fallthru
        _
      %p6765 = scmp.le.s32.totalorder 2, %s14
      // Predicated region
      $region45: #{tpu_custom_call.1} parent=5 // pred_check
        %p6766 = pneg %p6765
      $region46: #{tpu_custom_call.1} parent=5 // pred_check_branch
        %6768 = sbr.rel (%p6766) target = $region48
      $region47: #{tpu_custom_call.1} parent=5 // pred_region
        %s6769 = ssub.s32 %s14, 2
        // Predicated region
        $region49: #{tpu_custom_call.1} parent=47 // pred_check
          %p6770 = pneg %p153
        $region50: #{tpu_custom_call.1} parent=47 // pred_check_branch
          %6772 = sbr.rel (%p6770) target = $region52
        $region51: #{tpu_custom_call.1} parent=47 // pred_region
          %s6773 = sand.u32 %s138, 1
          %s6774 = scalar_lea.sflag [#allocation5], %s6773
          %s6775 = sand.u32 %s138, 1
          %s6776 = smul.addr %s6775, 24
          %s6777 = scalar_lea.vmem [#allocation4], %s6776
          %6779 = dma.done %s6774, 384
        $region52: #{tpu_custom_call.1} parent=47 // pred_fallthru
          _
      $region48: #{tpu_custom_call.1} parent=5 // pred_fallthru
        _
    $region6: #{tpu_custom_call.1} parent=1 // loop_footer
      %s18 = sadd.s32 1, %s14
    $region7: #{tpu_custom_call.1} parent=1 // loop_footer_branch
      %13 = sbr.rel target = $region3
    $region8: #{tpu_custom_call.1} parent=1 // loop_exit
      _
    %6780 = vsyncpa [#allocation5], 1
    %s6781 = scalar_lea.sflag [#allocation5], 1
    %6782 = vsyncpa %s6781, 1

</llo_original>
